<compile_context>
chip_gen: v6e
topology: v6e:2x2x1
jax: 0.10.0
libtpu: 0.0.40
codegen_flags: <defaults>
</compile_context>

<pallas_src>
import functools

import numpy as np
import jax
import jax.numpy as jnp
from jax.experimental import pallas as pl
from jax.experimental.pallas import tpu as pltpu

_BN_EPS = 1e-5
_HAL = 16                       # halo columns on each side of every pixel buffer
_PITCH = 8                      # padded W pitch of every spatial layout
_TAPS = tuple(di * _PITCH + dj for di in (-1, 0, 1) for dj in (-1, 0, 1))
_K_STEM = 256                   # stem contraction: 49 taps x 3 ch = 147 -> 256


# ----------------------------------------------------------------------------
# The single fused Pallas kernel (all compute + all layout moves)
# ----------------------------------------------------------------------------
def _backbone_kernel(xs_ref, w0_ref, sb0_ref,
                     sp_ref, sep_ref, ser1_ref,
                     w11a_ref, sb11a_ref, w11b_ref, sb11b_ref,
                     w12a_ref, sb12a_ref, w12b_ref, sb12b_ref,
                     sstr_ref, semb2_ref, ser2_ref, sout_ref,
                     w21a_ref, sb21a_ref, w21b_ref, sb21b_ref, wd_ref, sbd_ref,
                     w22a_ref, sb22a_ref, w22b_ref, sb22b_ref,
                     o_ref, *, n_batch):
    f32 = jnp.float32
    bf16 = jnp.bfloat16
    mpool = n_batch * 16        # pooled pixels   (N, 4, 4)
    mr1 = n_batch * 48          # layer1 region   (N, 6, 8)
    mr2 = n_batch * 32          # layer2 region   (N, 4, 8)

    def conv_bn(slab16, w_ref, sb_ref, relu):
        # (C_out, K) @ (K, M) dense-K bf16 matmul, f32 accumulate, folded-BN epilogue.
        acc = jnp.dot(w_ref[...], slab16, preferred_element_type=f32)
        y = acc * sb_ref[:, 0:1] + sb_ref[:, 1:2]
        return jnp.maximum(y, 0.0) if relu else y

    def pack_taps(buf16, m):
        # K-packed conv operand: 9 shifted pixel-slices stacked on the sublane axis.
        return jnp.concatenate(
            [buf16[:, _HAL + off:_HAL + off + m] for off in _TAPS], axis=0)

    def basic_block(xb, wa_ref, sba_ref, wb_ref, sbb_ref, semb_ref, m):
        # Stride-1 BasicBlock: conv1+BN+ReLU -> conv2+BN -> +identity -> ReLU.
        # `semb` re-embeds region pixels into the zero-frame/halo buffer and masks
        # the (garbage) frame pixels in one one-hot matmul.
        xb16 = xb.astype(bf16)                                        # hoisted cast
        y1 = conv_bn(pack_taps(xb16, m), wa_ref, sba_ref, True)
        y1b16 = jnp.dot(y1, semb_ref[...], preferred_element_type=f32).astype(bf16)
        y2 = conv_bn(pack_taps(y1b16, m), wb_ref, sbb_ref, False)
        out = jnp.maximum(y2 + xb[:, _HAL:_HAL + m], 0.0)
        return jnp.dot(out, semb_ref[...], preferred_element_type=f32)

    # ---- stem: 7x7 / stride 2 conv as ONE K=256-dense matmul + BN + ReLU ----
    y0 = conv_bn(xs_ref[...], w0_ref, sb0_ref, True)                  # (16, N*64) f32

    # ---- maxpool 3x3 / stride 2 / pad 1, fused: one tap-gather matmul + 8 maxes
    # (input is post-ReLU, so the zero padding baked into sp_ref is exact).
    g = jnp.dot(y0, sp_ref[...], preferred_element_type=f32)          # (16, 9*mpool)
    pooled = g[:, 0:mpool]
    for t in range(1, 9):
        pooled = jnp.maximum(pooled, g[:, t * mpool:(t + 1) * mpool])
    xb = jnp.dot(pooled, sep_ref[...], preferred_element_type=f32)    # (16, Mb1) L1 buffer

    # ---- layer1: two fused stride-1 BasicBlocks (16ch, K = 9*16 = 144) ----
    xb = basic_block(xb, w11a_ref, sb11a_ref, w11b_ref, sb11b_ref, ser1_ref, mr1)
    xb = basic_block(xb, w12a_ref, sb12a_ref, w12b_ref, sb12b_ref, ser1_ref, mr1)

    # ---- layer2 block1: stride-2 conv1 + 1x1/s2 downsample + conv2 + add + ReLU
    # Only the 8 strided output pixels are computed (one-hot column selection
    # applied to the packed slab before the conv matmul).
    xb16 = xb.astype(bf16)
    slab = pack_taps(xb16, mr1)                                       # (144, mr1) bf16
    slab_s = jnp.dot(slab, sstr_ref[...],
                     preferred_element_type=f32).astype(bf16)         # (144, N*4)
    y1 = conv_bn(slab_s, w21a_ref, sb21a_ref, True)                   # (32, N*4)
    x_s = jnp.dot(xb16[:, _HAL:_HAL + mr1], sstr_ref[...],
                  preferred_element_type=f32).astype(bf16)            # (16, N*4)
    d = conv_bn(x_s, wd_ref, sbd_ref, False)                          # (32, N*4)
    y1b16 = jnp.dot(y1, semb2_ref[...], preferred_element_type=f32).astype(bf16)
    y2 = conv_bn(pack_taps(y1b16, mr2), w21b_ref, sb21b_ref, False)   # (32, mr2)
    d_r = jnp.dot(d, semb2_ref[...],
                  preferred_element_type=f32)[:, _HAL:_HAL + mr2]     # (32, mr2)
    xb2 = jnp.dot(jnp.maximum(y2 + d_r, 0.0), ser2_ref[...],
                  preferred_element_type=f32)                         # (32, Mb2)

    # ---- layer2 block2: fused stride-1 BasicBlock (32ch, K = 9*32 = 288) ----
    xb2 = basic_block(xb2, w22a_ref, sb22a_ref, w22b_ref, sb22b_ref, ser2_ref, mr2)

    # ---- final interior 2x2 crop -> channels-major (32, N*4) feature map ----
    o_ref[...] = jnp.dot(xb2, sout_ref[...], preferred_element_type=f32)


# ----------------------------------------------------------------------------
# Host-side constants: one-hot gather / scatter matrices (tiny, built once)
# ----------------------------------------------------------------------------
def _make_selectors(n):
    hal = _HAL
    m0 = n * 64                                   # stem output pixels (N, 8, 8)
    mpool = n * 16                                # pooled pixels      (N, 4, 4)
    mr1, mb1 = n * 48, 2 * hal + n * 48           # layer1 region / buffer
    mr2, mb2 = n * 32, 2 * hal + n * 32           # layer2 region / buffer
    ms = n * 4                                    # strided / final pixels (N, 2, 2)

    s_pool = np.zeros((m0, 9 * mpool), np.float32)
    s_emb_pool = np.zeros((mpool, mb1), np.float32)
    for b in range(n):
        for oi in range(4):
            for oj in range(4):
                p = b * 16 + oi * 4 + oj
                s_emb_pool[p, hal + b * 48 + (1 + oi) * 8 + (1 + oj)] = 1.0
                for di in range(3):
                    for dj in range(3):
                        iy, ix = 2 * oi - 1 + di, 2 * oj - 1 + dj
                        if 0 <= iy < 8 and 0 <= ix < 8:
                            s_pool[b * 64 + iy * 8 + ix,
                                   (di * 3 + dj) * mpool + p] = 1.0

    s_emb_r1 = np.zeros((mr1, mb1), np.float32)
    for b in range(n):
        for h in range(6):
            for w in range(8):
                if 1 <= h <= 4 and 1 <= w <= 4:
                    c = b * 48 + h * 8 + w
                    s_emb_r1[c, hal + c] = 1.0

    s_emb_r2 = np.zeros((mr2, mb2), np.float32)
    for b in range(n):
        for h in range(4):
            for w in range(8):
                if 1 <= h <= 2 and 1 <= w <= 2:
                    c = b * 32 + h * 8 + w
                    s_emb_r2[c, hal + c] = 1.0

    s_str = np.zeros((mr1, ms), np.float32)
    s_emb2 = np.zeros((ms, mb2), np.float32)
    s_out = np.zeros((mb2, ms), np.float32)
    for b in range(n):
        for oi in range(2):
            for oj in range(2):
                q = b * 4 + oi * 2 + oj
                s_str[b * 48 + (1 + 2 * oi) * 8 + (1 + 2 * oj), q] = 1.0
                s_emb2[q, hal + b * 32 + (1 + oi) * 8 + (1 + oj)] = 1.0
                s_out[hal + b * 32 + (1 + oi) * 8 + (1 + oj), q] = 1.0

    return {"pool": jnp.asarray(s_pool),
            "emb_pool": jnp.asarray(s_emb_pool),
            "emb_r1": jnp.asarray(s_emb_r1),
            "emb_r2": jnp.asarray(s_emb_r2),
            "str": jnp.asarray(s_str, dtype=jnp.bfloat16),
            "emb2": jnp.asarray(s_emb2),
            "out": jnp.asarray(s_out)}


# ----------------------------------------------------------------------------
# Parameters (deterministic synthetic, BN folded to scale/bias, K-packed bf16)
# ----------------------------------------------------------------------------
def _make_conv(key, k, c_in, c_out, k_pad=None):
    kk = k * k
    w = jax.random.normal(key, (kk, c_in, c_out), jnp.float32)
    w = w * (2.0 / (kk * c_in)) ** 0.5
    wp = w.reshape(kk * c_in, c_out).T                   # (c_out, kk*c_in), tap-major K
    if k_pad is not None and k_pad > kk * c_in:
        wp = jnp.pad(wp, ((0, 0), (0, k_pad - kk * c_in)))
    scale = jnp.full((c_out,), 1.0 / (1.0 + _BN_EPS) ** 0.5, jnp.float32)
    bias = jnp.zeros((c_out,), jnp.float32)
    return {"w": wp.astype(jnp.bfloat16), "sb": jnp.stack([scale, bias], axis=1)}


def make_params(key, c_in=3, c_stem=16, c_l1=16, c_l2=32):
    ks = jax.random.split(key, 10)
    return {"stem":   _make_conv(ks[0], 7, c_in, c_stem, k_pad=_K_STEM),
            "l1b1c1": _make_conv(ks[1], 3, c_stem, c_l1),
            "l1b1c2": _make_conv(ks[2], 3, c_l1, c_l1),
            "l1b2c1": _make_conv(ks[3], 3, c_l1, c_l1),
            "l1b2c2": _make_conv(ks[4], 3, c_l1, c_l1),
            "l2b1c1": _make_conv(ks[5], 3, c_l1, c_l2),
            "l2b1c2": _make_conv(ks[6], 3, c_l2, c_l2),
            "l2b1dn": _make_conv(ks[7], 1, c_l1, c_l2),
            "l2b2c1": _make_conv(ks[8], 3, c_l2, c_l2),
            "l2b2c2": _make_conv(ks[9], 3, c_l2, c_l2)}


# ----------------------------------------------------------------------------
# Tiny XLA glue: one-time im2col of the 11 KB input for the stem (K-packed,
# channels-major, stride-2 handled here so the kernel only computes kept rows).
# ----------------------------------------------------------------------------
def _stem_patches(x_nchw):
    n = x_nchw.shape[0]
    x = jnp.transpose(x_nchw.astype(jnp.float32), (0, 2, 3, 1))       # NCHW -> NHWC
    xp = jnp.pad(x, ((0, 0), (3, 3), (3, 3), (0, 0)))                 # (n,22,22,3)
    pieces = [xp[:, dy:dy + 16:2, dx:dx + 16:2, :]                    # (n,8,8,3) per tap
              for dy in range(7) for dx in range(7)]
    xs = jnp.stack(pieces, axis=3).reshape(n * 64, 49 * 3)            # rows=(n,oy,ox)
    xs = jnp.pad(xs, ((0, 0), (0, _K_STEM - 49 * 3)))                 # K: 147 -> 256
    return jnp.transpose(xs, (1, 0)).astype(jnp.bfloat16)             # (256, n*64)


def _fs(a):
    assert a.ndim == 2
    return pl.BlockSpec(a.shape, lambda i: (0, 0))


# ----------------------------------------------------------------------------
# Forward (== Backbone.forward == net.forward_features at mini sizes)
# ----------------------------------------------------------------------------
def backbone_forward_features(x_nchw, params):
    n, c_in, h, w = x_nchw.shape
    assert (c_in, h, w) == (3, 16, 16), x_nchw.shape
    c_out = params["l2b2c2"]["sb"].shape[0]
    sel = _make_selectors(n)
    xs = _stem_patches(x_nchw)

    inputs = [xs,
              params["stem"]["w"], params["stem"]["sb"],
              sel["pool"], sel["emb_pool"], sel["emb_r1"],
              params["l1b1c1"]["w"], params["l1b1c1"]["sb"],
              params["l1b1c2"]["w"], params["l1b1c2"]["sb"],
              params["l1b2c1"]["w"], params["l1b2c1"]["sb"],
              params["l1b2c2"]["w"], params["l1b2c2"]["sb"],
              sel["str"], sel["emb2"], sel["emb_r2"], sel["out"],
              params["l2b1c1"]["w"], params["l2b1c1"]["sb"],
              params["l2b1c2"]["w"], params["l2b1c2"]["sb"],
              params["l2b1dn"]["w"], params["l2b1dn"]["sb"],
              params["l2b2c1"]["w"], params["l2b2c1"]["sb"],
              params["l2b2c2"]["w"], params["l2b2c2"]["sb"]]

    out_cm = pl.pallas_call(
        functools.partial(_backbone_kernel, n_batch=n),
        grid=(1,),
        in_specs=[_fs(a) for a in inputs],
        out_specs=pl.BlockSpec((c_out, n * 4), lambda i: (0, 0)),
        out_shape=jax.ShapeDtypeStruct((c_out, n * 4), jnp.float32),
        compiler_params=pltpu.CompilerParams(dimension_semantics=("arbitrary",)),
    )(*inputs)

    # channels-major (C, n*2*2) -> NCHW (n, C, 2, 2)
    return out_cm.reshape(c_out, n, 2, 2).transpose(1, 0, 2, 3)


if __name__ == "__main__":
    key = jax.random.PRNGKey(0)
    k_x, k_p = jax.random.split(key)
    x = jax.random.normal(k_x, (2, 3, 16, 16), jnp.float32)   # NCHW like PyTorch
    params = make_params(k_p)

    fwd = jax.jit(backbone_forward_features)
    y = fwd(x, params)
    jax.block_until_ready(y)

    assert y.shape == (2, 32, 2, 2), y.shape
    assert bool(jnp.all(jnp.isfinite(y)))
    print("KERNEL_OK")
</pallas_src>

<mosaic_0001>
module attributes {stable_mosaic.version = 11 : i64} {
  func.func @_backbone_kernel(%arg0: i32, %arg1: memref<256x128xbf16, #tpu.memory_space<vmem>>, %arg2: memref<16x256xbf16, #tpu.memory_space<vmem>>, %arg3: memref<16x2xf32, #tpu.memory_space<vmem>>, %arg4: memref<128x288xf32, #tpu.memory_space<vmem>>, %arg5: memref<32x128xf32, #tpu.memory_space<vmem>>, %arg6: memref<96x128xf32, #tpu.memory_space<vmem>>, %arg7: memref<16x144xbf16, #tpu.memory_space<vmem>>, %arg8: memref<16x2xf32, #tpu.memory_space<vmem>>, %arg9: memref<16x144xbf16, #tpu.memory_space<vmem>>, %arg10: memref<16x2xf32, #tpu.memory_space<vmem>>, %arg11: memref<16x144xbf16, #tpu.memory_space<vmem>>, %arg12: memref<16x2xf32, #tpu.memory_space<vmem>>, %arg13: memref<16x144xbf16, #tpu.memory_space<vmem>>, %arg14: memref<16x2xf32, #tpu.memory_space<vmem>>, %arg15: memref<96x8xbf16, #tpu.memory_space<vmem>>, %arg16: memref<8x96xf32, #tpu.memory_space<vmem>>, %arg17: memref<64x96xf32, #tpu.memory_space<vmem>>, %arg18: memref<96x8xf32, #tpu.memory_space<vmem>>, %arg19: memref<32x144xbf16, #tpu.memory_space<vmem>>, %arg20: memref<32x2xf32, #tpu.memory_space<vmem>>, %arg21: memref<32x288xbf16, #tpu.memory_space<vmem>>, %arg22: memref<32x2xf32, #tpu.memory_space<vmem>>, %arg23: memref<32x16xbf16, #tpu.memory_space<vmem>>, %arg24: memref<32x2xf32, #tpu.memory_space<vmem>>, %arg25: memref<32x288xbf16, #tpu.memory_space<vmem>>, %arg26: memref<32x2xf32, #tpu.memory_space<vmem>>, %arg27: memref<32x288xbf16, #tpu.memory_space<vmem>>, %arg28: memref<32x2xf32, #tpu.memory_space<vmem>>, %arg29: memref<32x8xf32, #tpu.memory_space<vmem>>) attributes {dimension_semantics = [#tpu.dimension_semantics<arbitrary>], iteration_bounds = array<i64: 1>, scalar_prefetch = 0 : i64, scratch_operands = 0 : i64, tpu.core_type = #tpu.core_type<tc>, window_params = [{pipeline_mode = #tpu.pipeline_mode<synchronous>, transform_indices = @transform_0, window_bounds = array<i64: 256, 128>}, {pipeline_mode = #tpu.pipeline_mode<synchronous>, transform_indices = @transform_1, window_bounds = array<i64: 16, 256>}, {pipeline_mode = #tpu.pipeline_mode<synchronous>, transform_indices = @transform_2, window_bounds = array<i64: 16, 2>}, {pipeline_mode = #tpu.pipeline_mode<synchronous>, transform_indices = @transform_3, window_bounds = array<i64: 128, 288>}, {pipeline_mode = #tpu.pipeline_mode<synchronous>, transform_indices = @transform_4, window_bounds = array<i64: 32, 128>}, {pipeline_mode = #tpu.pipeline_mode<synchronous>, transform_indices = @transform_5, window_bounds = array<i64: 96, 128>}, {pipeline_mode = #tpu.pipeline_mode<synchronous>, transform_indices = @transform_6, window_bounds = array<i64: 16, 144>}, {pipeline_mode = #tpu.pipeline_mode<synchronous>, transform_indices = @transform_7, window_bounds = array<i64: 16, 2>}, {pipeline_mode = #tpu.pipeline_mode<synchronous>, transform_indices = @transform_8, window_bounds = array<i64: 16, 144>}, {pipeline_mode = #tpu.pipeline_mode<synchronous>, transform_indices = @transform_9, window_bounds = array<i64: 16, 2>}, {pipeline_mode = #tpu.pipeline_mode<synchronous>, transform_indices = @transform_10, window_bounds = array<i64: 16, 144>}, {pipeline_mode = #tpu.pipeline_mode<synchronous>, transform_indices = @transform_11, window_bounds = array<i64: 16, 2>}, {pipeline_mode = #tpu.pipeline_mode<synchronous>, transform_indices = @transform_12, window_bounds = array<i64: 16, 144>}, {pipeline_mode = #tpu.pipeline_mode<synchronous>, transform_indices = @transform_13, window_bounds = array<i64: 16, 2>}, {pipeline_mode = #tpu.pipeline_mode<synchronous>, transform_indices = @transform_14, window_bounds = array<i64: 96, 8>}, {pipeline_mode = #tpu.pipeline_mode<synchronous>, transform_indices = @transform_15, window_bounds = array<i64: 8, 96>}, {pipeline_mode = #tpu.pipeline_mode<synchronous>, transform_indices = @transform_16, window_bounds = array<i64: 64, 96>}, {pipeline_mode = #tpu.pipeline_mode<synchronous>, transform_indices = @transform_17, window_bounds = array<i64: 96, 8>}, {pipeline_mode = #tpu.pipeline_mode<synchronous>, transform_indices = @transform_18, window_bounds = array<i64: 32, 144>}, {pipeline_mode = #tpu.pipeline_mode<synchronous>, transform_indices = @transform_19, window_bounds = array<i64: 32, 2>}, {pipeline_mode = #tpu.pipeline_mode<synchronous>, transform_indices = @transform_20, window_bounds = array<i64: 32, 288>}, {pipeline_mode = #tpu.pipeline_mode<synchronous>, transform_indices = @transform_21, window_bounds = array<i64: 32, 2>}, {pipeline_mode = #tpu.pipeline_mode<synchronous>, transform_indices = @transform_22, window_bounds = array<i64: 32, 16>}, {pipeline_mode = #tpu.pipeline_mode<synchronous>, transform_indices = @transform_23, window_bounds = array<i64: 32, 2>}, {pipeline_mode = #tpu.pipeline_mode<synchronous>, transform_indices = @transform_24, window_bounds = array<i64: 32, 288>}, {pipeline_mode = #tpu.pipeline_mode<synchronous>, transform_indices = @transform_25, window_bounds = array<i64: 32, 2>}, {pipeline_mode = #tpu.pipeline_mode<synchronous>, transform_indices = @transform_26, window_bounds = array<i64: 32, 288>}, {pipeline_mode = #tpu.pipeline_mode<synchronous>, transform_indices = @transform_27, window_bounds = array<i64: 32, 2>}, {pipeline_mode = #tpu.pipeline_mode<synchronous>, transform_indices = @transform_28, window_bounds = array<i64: 32, 8>}]} {
    %c0 = arith.constant 0 : index
    %c0_0 = arith.constant 0 : index
    %0 = vector.load %arg1[%c0, %c0_0] : memref<256x128xbf16, #tpu.memory_space<vmem>>, vector<256x128xbf16>
    %c0_1 = arith.constant 0 : index
    %c0_2 = arith.constant 0 : index
    %1 = vector.load %arg2[%c0_1, %c0_2] : memref<16x256xbf16, #tpu.memory_space<vmem>>, vector<16x256xbf16>
    %cst = arith.constant dense<0.000000e+00> : vector<16x128xf32>
    %2 = tpu.matmul %1, %0, %cst {dimension_numbers = #tpu.dot_dimension_numbers<[1], [0], [0], [1], [0, 0, 1, 1], [], []>} : vector<16x256xbf16>, vector<256x128xbf16>, vector<16x128xf32> -> vector<16x128xf32>
    %c0_3 = arith.constant 0 : index
    %c0_4 = arith.constant 0 : index
    %3 = vector.load %arg3[%c0_3, %c0_4] : memref<16x2xf32, #tpu.memory_space<vmem>>, vector<16x1xf32>
    %4 = vector.broadcast %3 : vector<16x1xf32> to vector<16x128xf32>
    %5 = arith.mulf %2, %4 : vector<16x128xf32>
    %c0_5 = arith.constant 0 : index
    %c1 = arith.constant 1 : index
    %6 = vector.load %arg3[%c0_5, %c1] : memref<16x2xf32, #tpu.memory_space<vmem>>, vector<16x1xf32>
    %7 = vector.broadcast %6 : vector<16x1xf32> to vector<16x128xf32>
    %8 = arith.addf %5, %7 : vector<16x128xf32>
    %cst_6 = arith.constant 0.000000e+00 : f32
    %9 = vector.broadcast %cst_6 : f32 to vector<16x128xf32>
    %10 = arith.maximumf %8, %9 : vector<16x128xf32>
    %c0_7 = arith.constant 0 : index
    %c0_8 = arith.constant 0 : index
    %11 = vector.load %arg4[%c0_7, %c0_8] : memref<128x288xf32, #tpu.memory_space<vmem>>, vector<128x288xf32>
    %cst_9 = arith.constant dense<0.000000e+00> : vector<16x288xf32>
    %12 = tpu.matmul %10, %11, %cst_9 {dimension_numbers = #tpu.dot_dimension_numbers<[1], [0], [0], [1], [0, 0, 1, 1], [], []>} : vector<16x128xf32>, vector<128x288xf32>, vector<16x288xf32> -> vector<16x288xf32>
    %13 = vector.extract_strided_slice %12 {offsets = [0, 0], sizes = [16, 32], strides = [1, 1]} : vector<16x288xf32> to vector<16x32xf32>
    %14 = vector.extract_strided_slice %12 {offsets = [0, 32], sizes = [16, 32], strides = [1, 1]} : vector<16x288xf32> to vector<16x32xf32>
    %15 = arith.maximumf %13, %14 : vector<16x32xf32>
    %16 = vector.extract_strided_slice %12 {offsets = [0, 64], sizes = [16, 32], strides = [1, 1]} : vector<16x288xf32> to vector<16x32xf32>
    %17 = arith.maximumf %15, %16 : vector<16x32xf32>
    %18 = vector.extract_strided_slice %12 {offsets = [0, 96], sizes = [16, 32], strides = [1, 1]} : vector<16x288xf32> to vector<16x32xf32>
    %19 = arith.maximumf %17, %18 : vector<16x32xf32>
    %20 = vector.extract_strided_slice %12 {offsets = [0, 128], sizes = [16, 32], strides = [1, 1]} : vector<16x288xf32> to vector<16x32xf32>
    %21 = arith.maximumf %19, %20 : vector<16x32xf32>
    %22 = vector.extract_strided_slice %12 {offsets = [0, 160], sizes = [16, 32], strides = [1, 1]} : vector<16x288xf32> to vector<16x32xf32>
    %23 = arith.maximumf %21, %22 : vector<16x32xf32>
    %24 = vector.extract_strided_slice %12 {offsets = [0, 192], sizes = [16, 32], strides = [1, 1]} : vector<16x288xf32> to vector<16x32xf32>
    %25 = arith.maximumf %23, %24 : vector<16x32xf32>
    %26 = vector.extract_strided_slice %12 {offsets = [0, 224], sizes = [16, 32], strides = [1, 1]} : vector<16x288xf32> to vector<16x32xf32>
    %27 = arith.maximumf %25, %26 : vector<16x32xf32>
    %28 = vector.extract_strided_slice %12 {offsets = [0, 256], sizes = [16, 32], strides = [1, 1]} : vector<16x288xf32> to vector<16x32xf32>
    %29 = arith.maximumf %27, %28 : vector<16x32xf32>
    %c0_10 = arith.constant 0 : index
    %c0_11 = arith.constant 0 : index
    %30 = vector.load %arg5[%c0_10, %c0_11] : memref<32x128xf32, #tpu.memory_space<vmem>>, vector<32x128xf32>
    %cst_12 = arith.constant dense<0.000000e+00> : vector<16x128xf32>
    %31 = tpu.matmul %29, %30, %cst_12 {dimension_numbers = #tpu.dot_dimension_numbers<[1], [0], [0], [1], [0, 0, 1, 1], [], []>} : vector<16x32xf32>, vector<32x128xf32>, vector<16x128xf32> -> vector<16x128xf32>
    %32 = arith.truncf %31 : vector<16x128xf32> to vector<16x128xbf16>
    %33 = vector.extract_strided_slice %32 {offsets = [0, 7], sizes = [16, 96], strides = [1, 1]} : vector<16x128xbf16> to vector<16x96xbf16>
    %34 = vector.extract_strided_slice %32 {offsets = [0, 8], sizes = [16, 96], strides = [1, 1]} : vector<16x128xbf16> to vector<16x96xbf16>
    %35 = vector.extract_strided_slice %32 {offsets = [0, 9], sizes = [16, 96], strides = [1, 1]} : vector<16x128xbf16> to vector<16x96xbf16>
    %36 = vector.extract_strided_slice %32 {offsets = [0, 15], sizes = [16, 96], strides = [1, 1]} : vector<16x128xbf16> to vector<16x96xbf16>
    %37 = vector.extract_strided_slice %32 {offsets = [0, 16], sizes = [16, 96], strides = [1, 1]} : vector<16x128xbf16> to vector<16x96xbf16>
    %38 = vector.extract_strided_slice %32 {offsets = [0, 17], sizes = [16, 96], strides = [1, 1]} : vector<16x128xbf16> to vector<16x96xbf16>
    %39 = vector.extract_strided_slice %32 {offsets = [0, 23], sizes = [16, 96], strides = [1, 1]} : vector<16x128xbf16> to vector<16x96xbf16>
    %40 = vector.extract_strided_slice %32 {offsets = [0, 24], sizes = [16, 96], strides = [1, 1]} : vector<16x128xbf16> to vector<16x96xbf16>
    %41 = vector.extract_strided_slice %32 {offsets = [0, 25], sizes = [16, 96], strides = [1, 1]} : vector<16x128xbf16> to vector<16x96xbf16>
    %42 = tpu.concatenate %33, %34, %35, %36, %37, %38, %39, %40, %41 in 0 : vector<16x96xbf16>, vector<16x96xbf16>, vector<16x96xbf16>, vector<16x96xbf16>, vector<16x96xbf16>, vector<16x96xbf16>, vector<16x96xbf16>, vector<16x96xbf16>, vector<16x96xbf16> -> vector<144x96xbf16>
    %c0_13 = arith.constant 0 : index
    %c0_14 = arith.constant 0 : index
    %43 = vector.load %arg7[%c0_13, %c0_14] : memref<16x144xbf16, #tpu.memory_space<vmem>>, vector<16x144xbf16>
    %cst_15 = arith.constant dense<0.000000e+00> : vector<16x96xf32>
    %44 = tpu.matmul %43, %42, %cst_15 {dimension_numbers = #tpu.dot_dimension_numbers<[1], [0], [0], [1], [0, 0, 1, 1], [], []>} : vector<16x144xbf16>, vector<144x96xbf16>, vector<16x96xf32> -> vector<16x96xf32>
    %c0_16 = arith.constant 0 : index
    %c0_17 = arith.constant 0 : index
    %45 = vector.load %arg8[%c0_16, %c0_17] : memref<16x2xf32, #tpu.memory_space<vmem>>, vector<16x1xf32>
    %46 = vector.broadcast %45 : vector<16x1xf32> to vector<16x96xf32>
    %47 = arith.mulf %44, %46 : vector<16x96xf32>
    %c0_18 = arith.constant 0 : index
    %c1_19 = arith.constant 1 : index
    %48 = vector.load %arg8[%c0_18, %c1_19] : memref<16x2xf32, #tpu.memory_space<vmem>>, vector<16x1xf32>
    %49 = vector.broadcast %48 : vector<16x1xf32> to vector<16x96xf32>
    %50 = arith.addf %47, %49 : vector<16x96xf32>
    %cst_20 = arith.constant 0.000000e+00 : f32
    %51 = vector.broadcast %cst_20 : f32 to vector<16x96xf32>
    %52 = arith.maximumf %50, %51 : vector<16x96xf32>
    %c0_21 = arith.constant 0 : index
    %c0_22 = arith.constant 0 : index
    %53 = vector.load %arg6[%c0_21, %c0_22] : memref<96x128xf32, #tpu.memory_space<vmem>>, vector<96x128xf32>
    %cst_23 = arith.constant dense<0.000000e+00> : vector<16x128xf32>
    %54 = tpu.matmul %52, %53, %cst_23 {dimension_numbers = #tpu.dot_dimension_numbers<[1], [0], [0], [1], [0, 0, 1, 1], [], []>} : vector<16x96xf32>, vector<96x128xf32>, vector<16x128xf32> -> vector<16x128xf32>
    %55 = arith.truncf %54 : vector<16x128xf32> to vector<16x128xbf16>
    %56 = vector.extract_strided_slice %55 {offsets = [0, 7], sizes = [16, 96], strides = [1, 1]} : vector<16x128xbf16> to vector<16x96xbf16>
    %57 = vector.extract_strided_slice %55 {offsets = [0, 8], sizes = [16, 96], strides = [1, 1]} : vector<16x128xbf16> to vector<16x96xbf16>
    %58 = vector.extract_strided_slice %55 {offsets = [0, 9], sizes = [16, 96], strides = [1, 1]} : vector<16x128xbf16> to vector<16x96xbf16>
    %59 = vector.extract_strided_slice %55 {offsets = [0, 15], sizes = [16, 96], strides = [1, 1]} : vector<16x128xbf16> to vector<16x96xbf16>
    %60 = vector.extract_strided_slice %55 {offsets = [0, 16], sizes = [16, 96], strides = [1, 1]} : vector<16x128xbf16> to vector<16x96xbf16>
    %61 = vector.extract_strided_slice %55 {offsets = [0, 17], sizes = [16, 96], strides = [1, 1]} : vector<16x128xbf16> to vector<16x96xbf16>
    %62 = vector.extract_strided_slice %55 {offsets = [0, 23], sizes = [16, 96], strides = [1, 1]} : vector<16x128xbf16> to vector<16x96xbf16>
    %63 = vector.extract_strided_slice %55 {offsets = [0, 24], sizes = [16, 96], strides = [1, 1]} : vector<16x128xbf16> to vector<16x96xbf16>
    %64 = vector.extract_strided_slice %55 {offsets = [0, 25], sizes = [16, 96], strides = [1, 1]} : vector<16x128xbf16> to vector<16x96xbf16>
    %65 = tpu.concatenate %56, %57, %58, %59, %60, %61, %62, %63, %64 in 0 : vector<16x96xbf16>, vector<16x96xbf16>, vector<16x96xbf16>, vector<16x96xbf16>, vector<16x96xbf16>, vector<16x96xbf16>, vector<16x96xbf16>, vector<16x96xbf16>, vector<16x96xbf16> -> vector<144x96xbf16>
    %c0_24 = arith.constant 0 : index
    %c0_25 = arith.constant 0 : index
    %66 = vector.load %arg9[%c0_24, %c0_25] : memref<16x144xbf16, #tpu.memory_space<vmem>>, vector<16x144xbf16>
    %cst_26 = arith.constant dense<0.000000e+00> : vector<16x96xf32>
    %67 = tpu.matmul %66, %65, %cst_26 {dimension_numbers = #tpu.dot_dimension_numbers<[1], [0], [0], [1], [0, 0, 1, 1], [], []>} : vector<16x144xbf16>, vector<144x96xbf16>, vector<16x96xf32> -> vector<16x96xf32>
    %c0_27 = arith.constant 0 : index
    %c0_28 = arith.constant 0 : index
    %68 = vector.load %arg10[%c0_27, %c0_28] : memref<16x2xf32, #tpu.memory_space<vmem>>, vector<16x1xf32>
    %69 = vector.broadcast %68 : vector<16x1xf32> to vector<16x96xf32>
    %70 = arith.mulf %67, %69 : vector<16x96xf32>
    %c0_29 = arith.constant 0 : index
    %c1_30 = arith.constant 1 : index
    %71 = vector.load %arg10[%c0_29, %c1_30] : memref<16x2xf32, #tpu.memory_space<vmem>>, vector<16x1xf32>
    %72 = vector.broadcast %71 : vector<16x1xf32> to vector<16x96xf32>
    %73 = arith.addf %70, %72 : vector<16x96xf32>
    %74 = vector.extract_strided_slice %31 {offsets = [0, 16], sizes = [16, 96], strides = [1, 1]} : vector<16x128xf32> to vector<16x96xf32>
    %75 = arith.addf %73, %74 : vector<16x96xf32>
    %cst_31 = arith.constant 0.000000e+00 : f32
    %76 = vector.broadcast %cst_31 : f32 to vector<16x96xf32>
    %77 = arith.maximumf %75, %76 : vector<16x96xf32>
    %c0_32 = arith.constant 0 : index
    %c0_33 = arith.constant 0 : index
    %78 = vector.load %arg6[%c0_32, %c0_33] : memref<96x128xf32, #tpu.memory_space<vmem>>, vector<96x128xf32>
    %cst_34 = arith.constant dense<0.000000e+00> : vector<16x128xf32>
    %79 = tpu.matmul %77, %78, %cst_34 {dimension_numbers = #tpu.dot_dimension_numbers<[1], [0], [0], [1], [0, 0, 1, 1], [], []>} : vector<16x96xf32>, vector<96x128xf32>, vector<16x128xf32> -> vector<16x128xf32>
    %80 = arith.truncf %79 : vector<16x128xf32> to vector<16x128xbf16>
    %81 = vector.extract_strided_slice %80 {offsets = [0, 7], sizes = [16, 96], strides = [1, 1]} : vector<16x128xbf16> to vector<16x96xbf16>
    %82 = vector.extract_strided_slice %80 {offsets = [0, 8], sizes = [16, 96], strides = [1, 1]} : vector<16x128xbf16> to vector<16x96xbf16>
    %83 = vector.extract_strided_slice %80 {offsets = [0, 9], sizes = [16, 96], strides = [1, 1]} : vector<16x128xbf16> to vector<16x96xbf16>
    %84 = vector.extract_strided_slice %80 {offsets = [0, 15], sizes = [16, 96], strides = [1, 1]} : vector<16x128xbf16> to vector<16x96xbf16>
    %85 = vector.extract_strided_slice %80 {offsets = [0, 16], sizes = [16, 96], strides = [1, 1]} : vector<16x128xbf16> to vector<16x96xbf16>
    %86 = vector.extract_strided_slice %80 {offsets = [0, 17], sizes = [16, 96], strides = [1, 1]} : vector<16x128xbf16> to vector<16x96xbf16>
    %87 = vector.extract_strided_slice %80 {offsets = [0, 23], sizes = [16, 96], strides = [1, 1]} : vector<16x128xbf16> to vector<16x96xbf16>
    %88 = vector.extract_strided_slice %80 {offsets = [0, 24], sizes = [16, 96], strides = [1, 1]} : vector<16x128xbf16> to vector<16x96xbf16>
    %89 = vector.extract_strided_slice %80 {offsets = [0, 25], sizes = [16, 96], strides = [1, 1]} : vector<16x128xbf16> to vector<16x96xbf16>
    %90 = tpu.concatenate %81, %82, %83, %84, %85, %86, %87, %88, %89 in 0 : vector<16x96xbf16>, vector<16x96xbf16>, vector<16x96xbf16>, vector<16x96xbf16>, vector<16x96xbf16>, vector<16x96xbf16>, vector<16x96xbf16>, vector<16x96xbf16>, vector<16x96xbf16> -> vector<144x96xbf16>
    %c0_35 = arith.constant 0 : index
    %c0_36 = arith.constant 0 : index
    %91 = vector.load %arg11[%c0_35, %c0_36] : memref<16x144xbf16, #tpu.memory_space<vmem>>, vector<16x144xbf16>
    %cst_37 = arith.constant dense<0.000000e+00> : vector<16x96xf32>
    %92 = tpu.matmul %91, %90, %cst_37 {dimension_numbers = #tpu.dot_dimension_numbers<[1], [0], [0], [1], [0, 0, 1, 1], [], []>} : vector<16x144xbf16>, vector<144x96xbf16>, vector<16x96xf32> -> vector<16x96xf32>
    %c0_38 = arith.constant 0 : index
    %c0_39 = arith.constant 0 : index
    %93 = vector.load %arg12[%c0_38, %c0_39] : memref<16x2xf32, #tpu.memory_space<vmem>>, vector<16x1xf32>
    %94 = vector.broadcast %93 : vector<16x1xf32> to vector<16x96xf32>
    %95 = arith.mulf %92, %94 : vector<16x96xf32>
    %c0_40 = arith.constant 0 : index
    %c1_41 = arith.constant 1 : index
    %96 = vector.load %arg12[%c0_40, %c1_41] : memref<16x2xf32, #tpu.memory_space<vmem>>, vector<16x1xf32>
    %97 = vector.broadcast %96 : vector<16x1xf32> to vector<16x96xf32>
    %98 = arith.addf %95, %97 : vector<16x96xf32>
    %cst_42 = arith.constant 0.000000e+00 : f32
    %99 = vector.broadcast %cst_42 : f32 to vector<16x96xf32>
    %100 = arith.maximumf %98, %99 : vector<16x96xf32>
    %c0_43 = arith.constant 0 : index
    %c0_44 = arith.constant 0 : index
    %101 = vector.load %arg6[%c0_43, %c0_44] : memref<96x128xf32, #tpu.memory_space<vmem>>, vector<96x128xf32>
    %cst_45 = arith.constant dense<0.000000e+00> : vector<16x128xf32>
    %102 = tpu.matmul %100, %101, %cst_45 {dimension_numbers = #tpu.dot_dimension_numbers<[1], [0], [0], [1], [0, 0, 1, 1], [], []>} : vector<16x96xf32>, vector<96x128xf32>, vector<16x128xf32> -> vector<16x128xf32>
    %103 = arith.truncf %102 : vector<16x128xf32> to vector<16x128xbf16>
    %104 = vector.extract_strided_slice %103 {offsets = [0, 7], sizes = [16, 96], strides = [1, 1]} : vector<16x128xbf16> to vector<16x96xbf16>
    %105 = vector.extract_strided_slice %103 {offsets = [0, 8], sizes = [16, 96], strides = [1, 1]} : vector<16x128xbf16> to vector<16x96xbf16>
    %106 = vector.extract_strided_slice %103 {offsets = [0, 9], sizes = [16, 96], strides = [1, 1]} : vector<16x128xbf16> to vector<16x96xbf16>
    %107 = vector.extract_strided_slice %103 {offsets = [0, 15], sizes = [16, 96], strides = [1, 1]} : vector<16x128xbf16> to vector<16x96xbf16>
    %108 = vector.extract_strided_slice %103 {offsets = [0, 16], sizes = [16, 96], strides = [1, 1]} : vector<16x128xbf16> to vector<16x96xbf16>
    %109 = vector.extract_strided_slice %103 {offsets = [0, 17], sizes = [16, 96], strides = [1, 1]} : vector<16x128xbf16> to vector<16x96xbf16>
    %110 = vector.extract_strided_slice %103 {offsets = [0, 23], sizes = [16, 96], strides = [1, 1]} : vector<16x128xbf16> to vector<16x96xbf16>
    %111 = vector.extract_strided_slice %103 {offsets = [0, 24], sizes = [16, 96], strides = [1, 1]} : vector<16x128xbf16> to vector<16x96xbf16>
    %112 = vector.extract_strided_slice %103 {offsets = [0, 25], sizes = [16, 96], strides = [1, 1]} : vector<16x128xbf16> to vector<16x96xbf16>
    %113 = tpu.concatenate %104, %105, %106, %107, %108, %109, %110, %111, %112 in 0 : vector<16x96xbf16>, vector<16x96xbf16>, vector<16x96xbf16>, vector<16x96xbf16>, vector<16x96xbf16>, vector<16x96xbf16>, vector<16x96xbf16>, vector<16x96xbf16>, vector<16x96xbf16> -> vector<144x96xbf16>
    %c0_46 = arith.constant 0 : index
    %c0_47 = arith.constant 0 : index
    %114 = vector.load %arg13[%c0_46, %c0_47] : memref<16x144xbf16, #tpu.memory_space<vmem>>, vector<16x144xbf16>
    %cst_48 = arith.constant dense<0.000000e+00> : vector<16x96xf32>
    %115 = tpu.matmul %114, %113, %cst_48 {dimension_numbers = #tpu.dot_dimension_numbers<[1], [0], [0], [1], [0, 0, 1, 1], [], []>} : vector<16x144xbf16>, vector<144x96xbf16>, vector<16x96xf32> -> vector<16x96xf32>
    %c0_49 = arith.constant 0 : index
    %c0_50 = arith.constant 0 : index
    %116 = vector.load %arg14[%c0_49, %c0_50] : memref<16x2xf32, #tpu.memory_space<vmem>>, vector<16x1xf32>
    %117 = vector.broadcast %116 : vector<16x1xf32> to vector<16x96xf32>
    %118 = arith.mulf %115, %117 : vector<16x96xf32>
    %c0_51 = arith.constant 0 : index
    %c1_52 = arith.constant 1 : index
    %119 = vector.load %arg14[%c0_51, %c1_52] : memref<16x2xf32, #tpu.memory_space<vmem>>, vector<16x1xf32>
    %120 = vector.broadcast %119 : vector<16x1xf32> to vector<16x96xf32>
    %121 = arith.addf %118, %120 : vector<16x96xf32>
    %122 = vector.extract_strided_slice %79 {offsets = [0, 16], sizes = [16, 96], strides = [1, 1]} : vector<16x128xf32> to vector<16x96xf32>
    %123 = arith.addf %121, %122 : vector<16x96xf32>
    %cst_53 = arith.constant 0.000000e+00 : f32
    %124 = vector.broadcast %cst_53 : f32 to vector<16x96xf32>
    %125 = arith.maximumf %123, %124 : vector<16x96xf32>
    %c0_54 = arith.constant 0 : index
    %c0_55 = arith.constant 0 : index
    %126 = vector.load %arg6[%c0_54, %c0_55] : memref<96x128xf32, #tpu.memory_space<vmem>>, vector<96x128xf32>
    %cst_56 = arith.constant dense<0.000000e+00> : vector<16x128xf32>
    %127 = tpu.matmul %125, %126, %cst_56 {dimension_numbers = #tpu.dot_dimension_numbers<[1], [0], [0], [1], [0, 0, 1, 1], [], []>} : vector<16x96xf32>, vector<96x128xf32>, vector<16x128xf32> -> vector<16x128xf32>
    %128 = arith.truncf %127 : vector<16x128xf32> to vector<16x128xbf16>
    %129 = vector.extract_strided_slice %128 {offsets = [0, 7], sizes = [16, 96], strides = [1, 1]} : vector<16x128xbf16> to vector<16x96xbf16>
    %130 = vector.extract_strided_slice %128 {offsets = [0, 8], sizes = [16, 96], strides = [1, 1]} : vector<16x128xbf16> to vector<16x96xbf16>
    %131 = vector.extract_strided_slice %128 {offsets = [0, 9], sizes = [16, 96], strides = [1, 1]} : vector<16x128xbf16> to vector<16x96xbf16>
    %132 = vector.extract_strided_slice %128 {offsets = [0, 15], sizes = [16, 96], strides = [1, 1]} : vector<16x128xbf16> to vector<16x96xbf16>
    %133 = vector.extract_strided_slice %128 {offsets = [0, 16], sizes = [16, 96], strides = [1, 1]} : vector<16x128xbf16> to vector<16x96xbf16>
    %134 = vector.extract_strided_slice %128 {offsets = [0, 17], sizes = [16, 96], strides = [1, 1]} : vector<16x128xbf16> to vector<16x96xbf16>
    %135 = vector.extract_strided_slice %128 {offsets = [0, 23], sizes = [16, 96], strides = [1, 1]} : vector<16x128xbf16> to vector<16x96xbf16>
    %136 = vector.extract_strided_slice %128 {offsets = [0, 24], sizes = [16, 96], strides = [1, 1]} : vector<16x128xbf16> to vector<16x96xbf16>
    %137 = vector.extract_strided_slice %128 {offsets = [0, 25], sizes = [16, 96], strides = [1, 1]} : vector<16x128xbf16> to vector<16x96xbf16>
    %138 = tpu.concatenate %129, %130, %131, %132, %133, %134, %135, %136, %137 in 0 : vector<16x96xbf16>, vector<16x96xbf16>, vector<16x96xbf16>, vector<16x96xbf16>, vector<16x96xbf16>, vector<16x96xbf16>, vector<16x96xbf16>, vector<16x96xbf16>, vector<16x96xbf16> -> vector<144x96xbf16>
    %c0_57 = arith.constant 0 : index
    %c0_58 = arith.constant 0 : index
    %139 = vector.load %arg15[%c0_57, %c0_58] : memref<96x8xbf16, #tpu.memory_space<vmem>>, vector<96x8xbf16>
    %cst_59 = arith.constant dense<0.000000e+00> : vector<144x8xf32>
    %140 = tpu.matmul %138, %139, %cst_59 {dimension_numbers = #tpu.dot_dimension_numbers<[1], [0], [0], [1], [0, 0, 1, 1], [], []>} : vector<144x96xbf16>, vector<96x8xbf16>, vector<144x8xf32> -> vector<144x8xf32>
    %141 = arith.truncf %140 : vector<144x8xf32> to vector<144x8xbf16>
    %c0_60 = arith.constant 0 : index
    %c0_61 = arith.constant 0 : index
    %142 = vector.load %arg19[%c0_60, %c0_61] : memref<32x144xbf16, #tpu.memory_space<vmem>>, vector<32x144xbf16>
    %cst_62 = arith.constant dense<0.000000e+00> : vector<32x8xf32>
    %143 = tpu.matmul %142, %141, %cst_62 {dimension_numbers = #tpu.dot_dimension_numbers<[1], [0], [0], [1], [0, 0, 1, 1], [], []>} : vector<32x144xbf16>, vector<144x8xbf16>, vector<32x8xf32> -> vector<32x8xf32>
    %c0_63 = arith.constant 0 : index
    %c0_64 = arith.constant 0 : index
    %144 = vector.load %arg20[%c0_63, %c0_64] : memref<32x2xf32, #tpu.memory_space<vmem>>, vector<32x1xf32>
    %145 = vector.broadcast %144 : vector<32x1xf32> to vector<32x8xf32>
    %146 = arith.mulf %143, %145 : vector<32x8xf32>
    %c0_65 = arith.constant 0 : index
    %c1_66 = arith.constant 1 : index
    %147 = vector.load %arg20[%c0_65, %c1_66] : memref<32x2xf32, #tpu.memory_space<vmem>>, vector<32x1xf32>
    %148 = vector.broadcast %147 : vector<32x1xf32> to vector<32x8xf32>
    %149 = arith.addf %146, %148 : vector<32x8xf32>
    %cst_67 = arith.constant 0.000000e+00 : f32
    %150 = vector.broadcast %cst_67 : f32 to vector<32x8xf32>
    %151 = arith.maximumf %149, %150 : vector<32x8xf32>
    %152 = vector.extract_strided_slice %128 {offsets = [0, 16], sizes = [16, 96], strides = [1, 1]} : vector<16x128xbf16> to vector<16x96xbf16>
    %c0_68 = arith.constant 0 : index
    %c0_69 = arith.constant 0 : index
    %153 = vector.load %arg15[%c0_68, %c0_69] : memref<96x8xbf16, #tpu.memory_space<vmem>>, vector<96x8xbf16>
    %cst_70 = arith.constant dense<0.000000e+00> : vector<16x8xf32>
    %154 = tpu.matmul %152, %153, %cst_70 {dimension_numbers = #tpu.dot_dimension_numbers<[1], [0], [0], [1], [0, 0, 1, 1], [], []>} : vector<16x96xbf16>, vector<96x8xbf16>, vector<16x8xf32> -> vector<16x8xf32>
    %155 = arith.truncf %154 : vector<16x8xf32> to vector<16x8xbf16>
    %c0_71 = arith.constant 0 : index
    %c0_72 = arith.constant 0 : index
    %156 = vector.load %arg23[%c0_71, %c0_72] : memref<32x16xbf16, #tpu.memory_space<vmem>>, vector<32x16xbf16>
    %cst_73 = arith.constant dense<0.000000e+00> : vector<32x8xf32>
    %157 = tpu.matmul %156, %155, %cst_73 {dimension_numbers = #tpu.dot_dimension_numbers<[1], [0], [0], [1], [0, 0, 1, 1], [], []>} : vector<32x16xbf16>, vector<16x8xbf16>, vector<32x8xf32> -> vector<32x8xf32>
    %c0_74 = arith.constant 0 : index
    %c0_75 = arith.constant 0 : index
    %158 = vector.load %arg24[%c0_74, %c0_75] : memref<32x2xf32, #tpu.memory_space<vmem>>, vector<32x1xf32>
    %159 = vector.broadcast %158 : vector<32x1xf32> to vector<32x8xf32>
    %160 = arith.mulf %157, %159 : vector<32x8xf32>
    %c0_76 = arith.constant 0 : index
    %c1_77 = arith.constant 1 : index
    %161 = vector.load %arg24[%c0_76, %c1_77] : memref<32x2xf32, #tpu.memory_space<vmem>>, vector<32x1xf32>
    %162 = vector.broadcast %161 : vector<32x1xf32> to vector<32x8xf32>
    %163 = arith.addf %160, %162 : vector<32x8xf32>
    %c0_78 = arith.constant 0 : index
    %c0_79 = arith.constant 0 : index
    %164 = vector.load %arg16[%c0_78, %c0_79] : memref<8x96xf32, #tpu.memory_space<vmem>>, vector<8x96xf32>
    %cst_80 = arith.constant dense<0.000000e+00> : vector<32x96xf32>
    %165 = tpu.matmul %151, %164, %cst_80 {dimension_numbers = #tpu.dot_dimension_numbers<[1], [0], [0], [1], [0, 0, 1, 1], [], []>} : vector<32x8xf32>, vector<8x96xf32>, vector<32x96xf32> -> vector<32x96xf32>
    %166 = arith.truncf %165 : vector<32x96xf32> to vector<32x96xbf16>
    %167 = vector.extract_strided_slice %166 {offsets = [0, 7], sizes = [32, 64], strides = [1, 1]} : vector<32x96xbf16> to vector<32x64xbf16>
    %168 = vector.extract_strided_slice %166 {offsets = [0, 8], sizes = [32, 64], strides = [1, 1]} : vector<32x96xbf16> to vector<32x64xbf16>
    %169 = vector.extract_strided_slice %166 {offsets = [0, 9], sizes = [32, 64], strides = [1, 1]} : vector<32x96xbf16> to vector<32x64xbf16>
    %170 = vector.extract_strided_slice %166 {offsets = [0, 15], sizes = [32, 64], strides = [1, 1]} : vector<32x96xbf16> to vector<32x64xbf16>
    %171 = vector.extract_strided_slice %166 {offsets = [0, 16], sizes = [32, 64], strides = [1, 1]} : vector<32x96xbf16> to vector<32x64xbf16>
    %172 = vector.extract_strided_slice %166 {offsets = [0, 17], sizes = [32, 64], strides = [1, 1]} : vector<32x96xbf16> to vector<32x64xbf16>
    %173 = vector.extract_strided_slice %166 {offsets = [0, 23], sizes = [32, 64], strides = [1, 1]} : vector<32x96xbf16> to vector<32x64xbf16>
    %174 = vector.extract_strided_slice %166 {offsets = [0, 24], sizes = [32, 64], strides = [1, 1]} : vector<32x96xbf16> to vector<32x64xbf16>
    %175 = vector.extract_strided_slice %166 {offsets = [0, 25], sizes = [32, 64], strides = [1, 1]} : vector<32x96xbf16> to vector<32x64xbf16>
    %176 = tpu.concatenate %167, %168, %169, %170, %171, %172, %173, %174, %175 in 0 : vector<32x64xbf16>, vector<32x64xbf16>, vector<32x64xbf16>, vector<32x64xbf16>, vector<32x64xbf16>, vector<32x64xbf16>, vector<32x64xbf16>, vector<32x64xbf16>, vector<32x64xbf16> -> vector<288x64xbf16>
    %c0_81 = arith.constant 0 : index
    %c0_82 = arith.constant 0 : index
    %177 = vector.load %arg21[%c0_81, %c0_82] : memref<32x288xbf16, #tpu.memory_space<vmem>>, vector<32x288xbf16>
    %cst_83 = arith.constant dense<0.000000e+00> : vector<32x64xf32>
    %178 = tpu.matmul %177, %176, %cst_83 {dimension_numbers = #tpu.dot_dimension_numbers<[1], [0], [0], [1], [0, 0, 1, 1], [], []>} : vector<32x288xbf16>, vector<288x64xbf16>, vector<32x64xf32> -> vector<32x64xf32>
    %c0_84 = arith.constant 0 : index
    %c0_85 = arith.constant 0 : index
    %179 = vector.load %arg22[%c0_84, %c0_85] : memref<32x2xf32, #tpu.memory_space<vmem>>, vector<32x1xf32>
    %180 = vector.broadcast %179 : vector<32x1xf32> to vector<32x64xf32>
    %181 = arith.mulf %178, %180 : vector<32x64xf32>
    %c0_86 = arith.constant 0 : index
    %c1_87 = arith.constant 1 : index
    %182 = vector.load %arg22[%c0_86, %c1_87] : memref<32x2xf32, #tpu.memory_space<vmem>>, vector<32x1xf32>
    %183 = vector.broadcast %182 : vector<32x1xf32> to vector<32x64xf32>
    %184 = arith.addf %181, %183 : vector<32x64xf32>
    %c0_88 = arith.constant 0 : index
    %c0_89 = arith.constant 0 : index
    %185 = vector.load %arg16[%c0_88, %c0_89] : memref<8x96xf32, #tpu.memory_space<vmem>>, vector<8x96xf32>
    %cst_90 = arith.constant dense<0.000000e+00> : vector<32x96xf32>
    %186 = tpu.matmul %163, %185, %cst_90 {dimension_numbers = #tpu.dot_dimension_numbers<[1], [0], [0], [1], [0, 0, 1, 1], [], []>} : vector<32x8xf32>, vector<8x96xf32>, vector<32x96xf32> -> vector<32x96xf32>
    %187 = vector.extract_strided_slice %186 {offsets = [0, 16], sizes = [32, 64], strides = [1, 1]} : vector<32x96xf32> to vector<32x64xf32>
    %188 = arith.addf %184, %187 : vector<32x64xf32>
    %cst_91 = arith.constant 0.000000e+00 : f32
    %189 = vector.broadcast %cst_91 : f32 to vector<32x64xf32>
    %190 = arith.maximumf %188, %189 : vector<32x64xf32>
    %c0_92 = arith.constant 0 : index
    %c0_93 = arith.constant 0 : index
    %191 = vector.load %arg17[%c0_92, %c0_93] : memref<64x96xf32, #tpu.memory_space<vmem>>, vector<64x96xf32>
    %cst_94 = arith.constant dense<0.000000e+00> : vector<32x96xf32>
    %192 = tpu.matmul %190, %191, %cst_94 {dimension_numbers = #tpu.dot_dimension_numbers<[1], [0], [0], [1], [0, 0, 1, 1], [], []>} : vector<32x64xf32>, vector<64x96xf32>, vector<32x96xf32> -> vector<32x96xf32>
    %193 = arith.truncf %192 : vector<32x96xf32> to vector<32x96xbf16>
    %194 = vector.extract_strided_slice %193 {offsets = [0, 7], sizes = [32, 64], strides = [1, 1]} : vector<32x96xbf16> to vector<32x64xbf16>
    %195 = vector.extract_strided_slice %193 {offsets = [0, 8], sizes = [32, 64], strides = [1, 1]} : vector<32x96xbf16> to vector<32x64xbf16>
    %196 = vector.extract_strided_slice %193 {offsets = [0, 9], sizes = [32, 64], strides = [1, 1]} : vector<32x96xbf16> to vector<32x64xbf16>
    %197 = vector.extract_strided_slice %193 {offsets = [0, 15], sizes = [32, 64], strides = [1, 1]} : vector<32x96xbf16> to vector<32x64xbf16>
    %198 = vector.extract_strided_slice %193 {offsets = [0, 16], sizes = [32, 64], strides = [1, 1]} : vector<32x96xbf16> to vector<32x64xbf16>
    %199 = vector.extract_strided_slice %193 {offsets = [0, 17], sizes = [32, 64], strides = [1, 1]} : vector<32x96xbf16> to vector<32x64xbf16>
    %200 = vector.extract_strided_slice %193 {offsets = [0, 23], sizes = [32, 64], strides = [1, 1]} : vector<32x96xbf16> to vector<32x64xbf16>
    %201 = vector.extract_strided_slice %193 {offsets = [0, 24], sizes = [32, 64], strides = [1, 1]} : vector<32x96xbf16> to vector<32x64xbf16>
    %202 = vector.extract_strided_slice %193 {offsets = [0, 25], sizes = [32, 64], strides = [1, 1]} : vector<32x96xbf16> to vector<32x64xbf16>
    %203 = tpu.concatenate %194, %195, %196, %197, %198, %199, %200, %201, %202 in 0 : vector<32x64xbf16>, vector<32x64xbf16>, vector<32x64xbf16>, vector<32x64xbf16>, vector<32x64xbf16>, vector<32x64xbf16>, vector<32x64xbf16>, vector<32x64xbf16>, vector<32x64xbf16> -> vector<288x64xbf16>
    %c0_95 = arith.constant 0 : index
    %c0_96 = arith.constant 0 : index
    %204 = vector.load %arg25[%c0_95, %c0_96] : memref<32x288xbf16, #tpu.memory_space<vmem>>, vector<32x288xbf16>
    %cst_97 = arith.constant dense<0.000000e+00> : vector<32x64xf32>
    %205 = tpu.matmul %204, %203, %cst_97 {dimension_numbers = #tpu.dot_dimension_numbers<[1], [0], [0], [1], [0, 0, 1, 1], [], []>} : vector<32x288xbf16>, vector<288x64xbf16>, vector<32x64xf32> -> vector<32x64xf32>
    %c0_98 = arith.constant 0 : index
    %c0_99 = arith.constant 0 : index
    %206 = vector.load %arg26[%c0_98, %c0_99] : memref<32x2xf32, #tpu.memory_space<vmem>>, vector<32x1xf32>
    %207 = vector.broadcast %206 : vector<32x1xf32> to vector<32x64xf32>
    %208 = arith.mulf %205, %207 : vector<32x64xf32>
    %c0_100 = arith.constant 0 : index
    %c1_101 = arith.constant 1 : index
    %209 = vector.load %arg26[%c0_100, %c1_101] : memref<32x2xf32, #tpu.memory_space<vmem>>, vector<32x1xf32>
    %210 = vector.broadcast %209 : vector<32x1xf32> to vector<32x64xf32>
    %211 = arith.addf %208, %210 : vector<32x64xf32>
    %cst_102 = arith.constant 0.000000e+00 : f32
    %212 = vector.broadcast %cst_102 : f32 to vector<32x64xf32>
    %213 = arith.maximumf %211, %212 : vector<32x64xf32>
    %c0_103 = arith.constant 0 : index
    %c0_104 = arith.constant 0 : index
    %214 = vector.load %arg17[%c0_103, %c0_104] : memref<64x96xf32, #tpu.memory_space<vmem>>, vector<64x96xf32>
    %cst_105 = arith.constant dense<0.000000e+00> : vector<32x96xf32>
    %215 = tpu.matmul %213, %214, %cst_105 {dimension_numbers = #tpu.dot_dimension_numbers<[1], [0], [0], [1], [0, 0, 1, 1], [], []>} : vector<32x64xf32>, vector<64x96xf32>, vector<32x96xf32> -> vector<32x96xf32>
    %216 = arith.truncf %215 : vector<32x96xf32> to vector<32x96xbf16>
    %217 = vector.extract_strided_slice %216 {offsets = [0, 7], sizes = [32, 64], strides = [1, 1]} : vector<32x96xbf16> to vector<32x64xbf16>
    %218 = vector.extract_strided_slice %216 {offsets = [0, 8], sizes = [32, 64], strides = [1, 1]} : vector<32x96xbf16> to vector<32x64xbf16>
    %219 = vector.extract_strided_slice %216 {offsets = [0, 9], sizes = [32, 64], strides = [1, 1]} : vector<32x96xbf16> to vector<32x64xbf16>
    %220 = vector.extract_strided_slice %216 {offsets = [0, 15], sizes = [32, 64], strides = [1, 1]} : vector<32x96xbf16> to vector<32x64xbf16>
    %221 = vector.extract_strided_slice %216 {offsets = [0, 16], sizes = [32, 64], strides = [1, 1]} : vector<32x96xbf16> to vector<32x64xbf16>
    %222 = vector.extract_strided_slice %216 {offsets = [0, 17], sizes = [32, 64], strides = [1, 1]} : vector<32x96xbf16> to vector<32x64xbf16>
    %223 = vector.extract_strided_slice %216 {offsets = [0, 23], sizes = [32, 64], strides = [1, 1]} : vector<32x96xbf16> to vector<32x64xbf16>
    %224 = vector.extract_strided_slice %216 {offsets = [0, 24], sizes = [32, 64], strides = [1, 1]} : vector<32x96xbf16> to vector<32x64xbf16>
    %225 = vector.extract_strided_slice %216 {offsets = [0, 25], sizes = [32, 64], strides = [1, 1]} : vector<32x96xbf16> to vector<32x64xbf16>
    %226 = tpu.concatenate %217, %218, %219, %220, %221, %222, %223, %224, %225 in 0 : vector<32x64xbf16>, vector<32x64xbf16>, vector<32x64xbf16>, vector<32x64xbf16>, vector<32x64xbf16>, vector<32x64xbf16>, vector<32x64xbf16>, vector<32x64xbf16>, vector<32x64xbf16> -> vector<288x64xbf16>
    %c0_106 = arith.constant 0 : index
    %c0_107 = arith.constant 0 : index
    %227 = vector.load %arg27[%c0_106, %c0_107] : memref<32x288xbf16, #tpu.memory_space<vmem>>, vector<32x288xbf16>
    %cst_108 = arith.constant dense<0.000000e+00> : vector<32x64xf32>
    %228 = tpu.matmul %227, %226, %cst_108 {dimension_numbers = #tpu.dot_dimension_numbers<[1], [0], [0], [1], [0, 0, 1, 1], [], []>} : vector<32x288xbf16>, vector<288x64xbf16>, vector<32x64xf32> -> vector<32x64xf32>
    %c0_109 = arith.constant 0 : index
    %c0_110 = arith.constant 0 : index
    %229 = vector.load %arg28[%c0_109, %c0_110] : memref<32x2xf32, #tpu.memory_space<vmem>>, vector<32x1xf32>
    %230 = vector.broadcast %229 : vector<32x1xf32> to vector<32x64xf32>
    %231 = arith.mulf %228, %230 : vector<32x64xf32>
    %c0_111 = arith.constant 0 : index
    %c1_112 = arith.constant 1 : index
    %232 = vector.load %arg28[%c0_111, %c1_112] : memref<32x2xf32, #tpu.memory_space<vmem>>, vector<32x1xf32>
    %233 = vector.broadcast %232 : vector<32x1xf32> to vector<32x64xf32>
    %234 = arith.addf %231, %233 : vector<32x64xf32>
    %235 = vector.extract_strided_slice %192 {offsets = [0, 16], sizes = [32, 64], strides = [1, 1]} : vector<32x96xf32> to vector<32x64xf32>
    %236 = arith.addf %234, %235 : vector<32x64xf32>
    %cst_113 = arith.constant 0.000000e+00 : f32
    %237 = vector.broadcast %cst_113 : f32 to vector<32x64xf32>
    %238 = arith.maximumf %236, %237 : vector<32x64xf32>
    %c0_114 = arith.constant 0 : index
    %c0_115 = arith.constant 0 : index
    %239 = vector.load %arg17[%c0_114, %c0_115] : memref<64x96xf32, #tpu.memory_space<vmem>>, vector<64x96xf32>
    %cst_116 = arith.constant dense<0.000000e+00> : vector<32x96xf32>
    %240 = tpu.matmul %238, %239, %cst_116 {dimension_numbers = #tpu.dot_dimension_numbers<[1], [0], [0], [1], [0, 0, 1, 1], [], []>} : vector<32x64xf32>, vector<64x96xf32>, vector<32x96xf32> -> vector<32x96xf32>
    %c0_117 = arith.constant 0 : index
    %c0_118 = arith.constant 0 : index
    %241 = vector.load %arg18[%c0_117, %c0_118] : memref<96x8xf32, #tpu.memory_space<vmem>>, vector<96x8xf32>
    %cst_119 = arith.constant dense<0.000000e+00> : vector<32x8xf32>
    %242 = tpu.matmul %240, %241, %cst_119 {dimension_numbers = #tpu.dot_dimension_numbers<[1], [0], [0], [1], [0, 0, 1, 1], [], []>} : vector<32x96xf32>, vector<96x8xf32>, vector<32x8xf32> -> vector<32x8xf32>
    %c0_120 = arith.constant 0 : index
    %c0_121 = arith.constant 0 : index
    %243 = vector.load %arg29[%c0_120, %c0_121] : memref<32x8xf32, #tpu.memory_space<vmem>>, vector<32x8xf32>
    tpu.vector_store %arg29[%c0_120, %c0_121], %242 {strides = array<i32>} : memref<32x8xf32, #tpu.memory_space<vmem>>, vector<32x8xf32>,
    return
  }
  func.func @transform_0(%arg0: i32) -> (i32, i32) {
    %c0_i32 = arith.constant 0 : i32
    %c0_i32_0 = arith.constant 0 : i32
    %c0_i32_1 = arith.constant 0 : i32
    return %c0_i32, %c0_i32_0 : i32, i32
  }
  func.func @transform_1(%arg0: i32) -> (i32, i32) {
    %c0_i32 = arith.constant 0 : i32
    %c0_i32_0 = arith.constant 0 : i32
    %c0_i32_1 = arith.constant 0 : i32
    return %c0_i32, %c0_i32_0 : i32, i32
  }
  func.func @transform_2(%arg0: i32) -> (i32, i32) {
    %c0_i32 = arith.constant 0 : i32
    %c0_i32_0 = arith.constant 0 : i32
    %c0_i32_1 = arith.constant 0 : i32
    return %c0_i32, %c0_i32_0 : i32, i32
  }
  func.func @transform_3(%arg0: i32) -> (i32, i32) {
    %c0_i32 = arith.constant 0 : i32
    %c0_i32_0 = arith.constant 0 : i32
    %c0_i32_1 = arith.constant 0 : i32
    return %c0_i32, %c0_i32_0 : i32, i32
  }
  func.func @transform_4(%arg0: i32) -> (i32, i32) {
    %c0_i32 = arith.constant 0 : i32
    %c0_i32_0 = arith.constant 0 : i32
    %c0_i32_1 = arith.constant 0 : i32
    return %c0_i32, %c0_i32_0 : i32, i32
  }
  func.func @transform_5(%arg0: i32) -> (i32, i32) {
    %c0_i32 = arith.constant 0 : i32
    %c0_i32_0 = arith.constant 0 : i32
    %c0_i32_1 = arith.constant 0 : i32
    return %c0_i32, %c0_i32_0 : i32, i32
  }
  func.func @transform_6(%arg0: i32) -> (i32, i32) {
    %c0_i32 = arith.constant 0 : i32
    %c0_i32_0 = arith.constant 0 : i32
    %c0_i32_1 = arith.constant 0 : i32
    return %c0_i32, %c0_i32_0 : i32, i32
  }
  func.func @transform_7(%arg0: i32) -> (i32, i32) {
    %c0_i32 = arith.constant 0 : i32
    %c0_i32_0 = arith.constant 0 : i32
    %c0_i32_1 = arith.constant 0 : i32
    return %c0_i32, %c0_i32_0 : i32, i32
  }
  func.func @transform_8(%arg0: i32) -> (i32, i32) {
    %c0_i32 = arith.constant 0 : i32
    %c0_i32_0 = arith.constant 0 : i32
    %c0_i32_1 = arith.constant 0 : i32
    return %c0_i32, %c0_i32_0 : i32, i32
  }
  func.func @transform_9(%arg0: i32) -> (i32, i32) {
    %c0_i32 = arith.constant 0 : i32
    %c0_i32_0 = arith.constant 0 : i32
    %c0_i32_1 = arith.constant 0 : i32
    return %c0_i32, %c0_i32_0 : i32, i32
  }
  func.func @transform_10(%arg0: i32) -> (i32, i32) {
    %c0_i32 = arith.constant 0 : i32
    %c0_i32_0 = arith.constant 0 : i32
    %c0_i32_1 = arith.constant 0 : i32
    return %c0_i32, %c0_i32_0 : i32, i32
  }
  func.func @transform_11(%arg0: i32) -> (i32, i32) {
    %c0_i32 = arith.constant 0 : i32
    %c0_i32_0 = arith.constant 0 : i32
    %c0_i32_1 = arith.constant 0 : i32
    return %c0_i32, %c0_i32_0 : i32, i32
  }
  func.func @transform_12(%arg0: i32) -> (i32, i32) {
    %c0_i32 = arith.constant 0 : i32
    %c0_i32_0 = arith.constant 0 : i32
    %c0_i32_1 = arith.constant 0 : i32
    return %c0_i32, %c0_i32_0 : i32, i32
  }
  func.func @transform_13(%arg0: i32) -> (i32, i32) {
    %c0_i32 = arith.constant 0 : i32
    %c0_i32_0 = arith.constant 0 : i32
    %c0_i32_1 = arith.constant 0 : i32
    return %c0_i32, %c0_i32_0 : i32, i32
  }
  func.func @transform_14(%arg0: i32) -> (i32, i32) {
    %c0_i32 = arith.constant 0 : i32
    %c0_i32_0 = arith.constant 0 : i32
    %c0_i32_1 = arith.constant 0 : i32
    return %c0_i32, %c0_i32_0 : i32, i32
  }
  func.func @transform_15(%arg0: i32) -> (i32, i32) {
    %c0_i32 = arith.constant 0 : i32
    %c0_i32_0 = arith.constant 0 : i32
    %c0_i32_1 = arith.constant 0 : i32
    return %c0_i32, %c0_i32_0 : i32, i32
  }
  func.func @transform_16(%arg0: i32) -> (i32, i32) {
    %c0_i32 = arith.constant 0 : i32
    %c0_i32_0 = arith.constant 0 : i32
    %c0_i32_1 = arith.constant 0 : i32
    return %c0_i32, %c0_i32_0 : i32, i32
  }
  func.func @transform_17(%arg0: i32) -> (i32, i32) {
    %c0_i32 = arith.constant 0 : i32
    %c0_i32_0 = arith.constant 0 : i32
    %c0_i32_1 = arith.constant 0 : i32
    return %c0_i32, %c0_i32_0 : i32, i32
  }
  func.func @transform_18(%arg0: i32) -> (i32, i32) {
    %c0_i32 = arith.constant 0 : i32
    %c0_i32_0 = arith.constant 0 : i32
    %c0_i32_1 = arith.constant 0 : i32
    return %c0_i32, %c0_i32_0 : i32, i32
  }
  func.func @transform_19(%arg0: i32) -> (i32, i32) {
    %c0_i32 = arith.constant 0 : i32
    %c0_i32_0 = arith.constant 0 : i32
    %c0_i32_1 = arith.constant 0 : i32
    return %c0_i32, %c0_i32_0 : i32, i32
  }
  func.func @transform_20(%arg0: i32) -> (i32, i32) {
    %c0_i32 = arith.constant 0 : i32
    %c0_i32_0 = arith.constant 0 : i32
    %c0_i32_1 = arith.constant 0 : i32
    return %c0_i32, %c0_i32_0 : i32, i32
  }
  func.func @transform_21(%arg0: i32) -> (i32, i32) {
    %c0_i32 = arith.constant 0 : i32
    %c0_i32_0 = arith.constant 0 : i32
    %c0_i32_1 = arith.constant 0 : i32
    return %c0_i32, %c0_i32_0 : i32, i32
  }
  func.func @transform_22(%arg0: i32) -> (i32, i32) {
    %c0_i32 = arith.constant 0 : i32
    %c0_i32_0 = arith.constant 0 : i32
    %c0_i32_1 = arith.constant 0 : i32
    return %c0_i32, %c0_i32_0 : i32, i32
  }
  func.func @transform_23(%arg0: i32) -> (i32, i32) {
    %c0_i32 = arith.constant 0 : i32
    %c0_i32_0 = arith.constant 0 : i32
    %c0_i32_1 = arith.constant 0 : i32
    return %c0_i32, %c0_i32_0 : i32, i32
  }
  func.func @transform_24(%arg0: i32) -> (i32, i32) {
    %c0_i32 = arith.constant 0 : i32
    %c0_i32_0 = arith.constant 0 : i32
    %c0_i32_1 = arith.constant 0 : i32
    return %c0_i32, %c0_i32_0 : i32, i32
  }
  func.func @transform_25(%arg0: i32) -> (i32, i32) {
    %c0_i32 = arith.constant 0 : i32
    %c0_i32_0 = arith.constant 0 : i32
    %c0_i32_1 = arith.constant 0 : i32
    return %c0_i32, %c0_i32_0 : i32, i32
  }
  func.func @transform_26(%arg0: i32) -> (i32, i32) {
    %c0_i32 = arith.constant 0 : i32
    %c0_i32_0 = arith.constant 0 : i32
    %c0_i32_1 = arith.constant 0 : i32
    return %c0_i32, %c0_i32_0 : i32, i32
  }
  func.func @transform_27(%arg0: i32) -> (i32, i32) {
    %c0_i32 = arith.constant 0 : i32
    %c0_i32_0 = arith.constant 0 : i32
    %c0_i32_1 = arith.constant 0 : i32
    return %c0_i32, %c0_i32_0 : i32, i32
  }
  func.func @transform_28(%arg0: i32) -> (i32, i32) {
    %c0_i32 = arith.constant 0 : i32
    %c0_i32_0 = arith.constant 0 : i32
    %c0_i32_1 = arith.constant 0 : i32
    return %c0_i32, %c0_i32_0 : i32, i32
  }
}

</mosaic_0001>

<llo_original>
// kernel: backbone_forward_features.1
$region0: #{backbone_forward_features.1}
  #allocation0 [shape = 'u32[]', space=smem, size = 0x4, offset = 0x4, fixed_abs, tag = 'smem constant byte address 0x4 - core index']
  #allocation1 [shape = 'u32[144,128]{1,0:T(1,128)}', space=vmem, size = 0x12000, scoped, tag = 'internal scratch']
  %s0 = inlined_call_operand.vmem [shape: bf16[256,128], index: 0, kind: input, shape index: {}]
  %s1 = inlined_call_operand.vmem [shape: bf16[16,256], index: 1, kind: input, shape index: {}]
  %s2 = inlined_call_operand.vmem [shape: f32[16,2], index: 2, kind: input, shape index: {}]
  %s3 = inlined_call_operand.vmem [shape: f32[128,288], index: 3, kind: input, shape index: {}]
  %s4 = inlined_call_operand.vmem [shape: f32[32,128], index: 4, kind: input, shape index: {}]
  %s5 = inlined_call_operand.vmem [shape: f32[96,128], index: 5, kind: input, shape index: {}]
  %s6 = inlined_call_operand.vmem [shape: bf16[16,144], index: 6, kind: input, shape index: {}]
  %s7 = inlined_call_operand.vmem [shape: f32[16,2], index: 7, kind: input, shape index: {}]
  %s8 = inlined_call_operand.vmem [shape: bf16[16,144], index: 8, kind: input, shape index: {}]
  %s9 = inlined_call_operand.vmem [shape: f32[16,2], index: 9, kind: input, shape index: {}]
  %s10 = inlined_call_operand.vmem [shape: bf16[16,144], index: 10, kind: input, shape index: {}]
  %s11 = inlined_call_operand.vmem [shape: f32[16,2], index: 11, kind: input, shape index: {}]
  %s12 = inlined_call_operand.vmem [shape: bf16[16,144], index: 12, kind: input, shape index: {}]
  %s13 = inlined_call_operand.vmem [shape: f32[16,2], index: 13, kind: input, shape index: {}]
  %s14 = inlined_call_operand.vmem [shape: bf16[96,8], index: 14, kind: input, shape index: {}]
  %s15 = inlined_call_operand.vmem [shape: f32[8,96], index: 15, kind: input, shape index: {}]
  %s16 = inlined_call_operand.vmem [shape: f32[64,96], index: 16, kind: input, shape index: {}]
  %s17 = inlined_call_operand.vmem [shape: f32[96,8], index: 17, kind: input, shape index: {}]
  %s18 = inlined_call_operand.vmem [shape: bf16[32,144], index: 18, kind: input, shape index: {}]
  %s19 = inlined_call_operand.vmem [shape: f32[32,2], index: 19, kind: input, shape index: {}]
  %s20 = inlined_call_operand.vmem [shape: bf16[32,288], index: 20, kind: input, shape index: {}]
  %s21 = inlined_call_operand.vmem [shape: f32[32,2], index: 21, kind: input, shape index: {}]
  %s22 = inlined_call_operand.vmem [shape: bf16[32,16], index: 22, kind: input, shape index: {}]
  %s23 = inlined_call_operand.vmem [shape: f32[32,2], index: 23, kind: input, shape index: {}]
  %s24 = inlined_call_operand.vmem [shape: bf16[32,288], index: 24, kind: input, shape index: {}]
  %s25 = inlined_call_operand.vmem [shape: f32[32,2], index: 25, kind: input, shape index: {}]
  %s26 = inlined_call_operand.vmem [shape: bf16[32,288], index: 26, kind: input, shape index: {}]
  %s27 = inlined_call_operand.vmem [shape: f32[32,2], index: 27, kind: input, shape index: {}]
  %s28 = inlined_call_operand.vmem [shape: f32[32,8], index: 28, kind: output, shape index: {}]
  %s29 = sld [smem:[#allocation0]]
  $region122: #{backbone_forward_features.1} parent=0
    _
  %s31 = ssub.s32 1, %s29
  %s32 = scalar_select 0, %s31, %s29
  // Predicated region
  $region2: #{backbone_forward_features.1} parent=0 // pred_check
    _
  $region3: #{backbone_forward_features.1} parent=0 // pred_check_branch
    %34 = sbr.rel (0) target = $region5
  $region4: #{backbone_forward_features.1} parent=0 // pred_region
    _
  $region5: #{backbone_forward_features.1} parent=0 // pred_fallthru
    _
  // Predicated region
  $region6: #{backbone_forward_features.1} parent=0 // pred_check
    _
  $region7: #{backbone_forward_features.1} parent=0 // pred_check_branch
    %36 = sbr.rel (0) target = $region9
  $region8: #{backbone_forward_features.1} parent=0 // pred_region
    _
  $region9: #{backbone_forward_features.1} parent=0 // pred_fallthru
    _
  // Predicated region
  $region10: #{backbone_forward_features.1} parent=0 // pred_check
    _
  $region11: #{backbone_forward_features.1} parent=0 // pred_check_branch
    %38 = sbr.rel (0) target = $region13
  $region12: #{backbone_forward_features.1} parent=0 // pred_region
    _
  $region13: #{backbone_forward_features.1} parent=0 // pred_fallthru
    _
  // Predicated region
  $region14: #{backbone_forward_features.1} parent=0 // pred_check
    _
  $region15: #{backbone_forward_features.1} parent=0 // pred_check_branch
    %40 = sbr.rel (0) target = $region17
  $region16: #{backbone_forward_features.1} parent=0 // pred_region
    _
  $region17: #{backbone_forward_features.1} parent=0 // pred_fallthru
    _
  // Predicated region
  $region18: #{backbone_forward_features.1} parent=0 // pred_check
    _
  $region19: #{backbone_forward_features.1} parent=0 // pred_check_branch
    %42 = sbr.rel (0) target = $region21
  $region20: #{backbone_forward_features.1} parent=0 // pred_region
    _
  $region21: #{backbone_forward_features.1} parent=0 // pred_fallthru
    _
  // Predicated region
  $region22: #{backbone_forward_features.1} parent=0 // pred_check
    _
  $region23: #{backbone_forward_features.1} parent=0 // pred_check_branch
    %44 = sbr.rel (0) target = $region25
  $region24: #{backbone_forward_features.1} parent=0 // pred_region
    _
  $region25: #{backbone_forward_features.1} parent=0 // pred_fallthru
    _
  // Predicated region
  $region26: #{backbone_forward_features.1} parent=0 // pred_check
    _
  $region27: #{backbone_forward_features.1} parent=0 // pred_check_branch
    %46 = sbr.rel (0) target = $region29
  $region28: #{backbone_forward_features.1} parent=0 // pred_region
    _
  $region29: #{backbone_forward_features.1} parent=0 // pred_fallthru
    _
  // Predicated region
  $region30: #{backbone_forward_features.1} parent=0 // pred_check
    _
  $region31: #{backbone_forward_features.1} parent=0 // pred_check_branch
    %48 = sbr.rel (0) target = $region33
  $region32: #{backbone_forward_features.1} parent=0 // pred_region
    _
  $region33: #{backbone_forward_features.1} parent=0 // pred_fallthru
    _
  // Predicated region
  $region34: #{backbone_forward_features.1} parent=0 // pred_check
    _
  $region35: #{backbone_forward_features.1} parent=0 // pred_check_branch
    %50 = sbr.rel (0) target = $region37
  $region36: #{backbone_forward_features.1} parent=0 // pred_region
    _
  $region37: #{backbone_forward_features.1} parent=0 // pred_fallthru
    _
  // Predicated region
  $region38: #{backbone_forward_features.1} parent=0 // pred_check
    _
  $region39: #{backbone_forward_features.1} parent=0 // pred_check_branch
    %52 = sbr.rel (0) target = $region41
  $region40: #{backbone_forward_features.1} parent=0 // pred_region
    _
  $region41: #{backbone_forward_features.1} parent=0 // pred_fallthru
    _
  // Predicated region
  $region42: #{backbone_forward_features.1} parent=0 // pred_check
    _
  $region43: #{backbone_forward_features.1} parent=0 // pred_check_branch
    %54 = sbr.rel (0) target = $region45
  $region44: #{backbone_forward_features.1} parent=0 // pred_region
    _
  $region45: #{backbone_forward_features.1} parent=0 // pred_fallthru
    _
  // Predicated region
  $region46: #{backbone_forward_features.1} parent=0 // pred_check
    _
  $region47: #{backbone_forward_features.1} parent=0 // pred_check_branch
    %56 = sbr.rel (0) target = $region49
  $region48: #{backbone_forward_features.1} parent=0 // pred_region
    _
  $region49: #{backbone_forward_features.1} parent=0 // pred_fallthru
    _
  // Predicated region
  $region50: #{backbone_forward_features.1} parent=0 // pred_check
    _
  $region51: #{backbone_forward_features.1} parent=0 // pred_check_branch
    %58 = sbr.rel (0) target = $region53
  $region52: #{backbone_forward_features.1} parent=0 // pred_region
    _
  $region53: #{backbone_forward_features.1} parent=0 // pred_fallthru
    _
  // Predicated region
  $region54: #{backbone_forward_features.1} parent=0 // pred_check
    _
  $region55: #{backbone_forward_features.1} parent=0 // pred_check_branch
    %60 = sbr.rel (0) target = $region57
  $region56: #{backbone_forward_features.1} parent=0 // pred_region
    _
  $region57: #{backbone_forward_features.1} parent=0 // pred_fallthru
    _
  // Predicated region
  $region58: #{backbone_forward_features.1} parent=0 // pred_check
    _
  $region59: #{backbone_forward_features.1} parent=0 // pred_check_branch
    %62 = sbr.rel (0) target = $region61
  $region60: #{backbone_forward_features.1} parent=0 // pred_region
    _
  $region61: #{backbone_forward_features.1} parent=0 // pred_fallthru
    _
  // Predicated region
  $region62: #{backbone_forward_features.1} parent=0 // pred_check
    _
  $region63: #{backbone_forward_features.1} parent=0 // pred_check_branch
    %64 = sbr.rel (0) target = $region65
  $region64: #{backbone_forward_features.1} parent=0 // pred_region
    _
  $region65: #{backbone_forward_features.1} parent=0 // pred_fallthru
    _
  // Predicated region
  $region66: #{backbone_forward_features.1} parent=0 // pred_check
    _
  $region67: #{backbone_forward_features.1} parent=0 // pred_check_branch
    %66 = sbr.rel (0) target = $region69
  $region68: #{backbone_forward_features.1} parent=0 // pred_region
    _
  $region69: #{backbone_forward_features.1} parent=0 // pred_fallthru
    _
  // Predicated region
  $region70: #{backbone_forward_features.1} parent=0 // pred_check
    _
  $region71: #{backbone_forward_features.1} parent=0 // pred_check_branch
    %68 = sbr.rel (0) target = $region73
  $region72: #{backbone_forward_features.1} parent=0 // pred_region
    _
  $region73: #{backbone_forward_features.1} parent=0 // pred_fallthru
    _
  // Predicated region
  $region74: #{backbone_forward_features.1} parent=0 // pred_check
    _
  $region75: #{backbone_forward_features.1} parent=0 // pred_check_branch
    %70 = sbr.rel (0) target = $region77
  $region76: #{backbone_forward_features.1} parent=0 // pred_region
    _
  $region77: #{backbone_forward_features.1} parent=0 // pred_fallthru
    _
  // Predicated region
  $region78: #{backbone_forward_features.1} parent=0 // pred_check
    _
  $region79: #{backbone_forward_features.1} parent=0 // pred_check_branch
    %72 = sbr.rel (0) target = $region81
  $region80: #{backbone_forward_features.1} parent=0 // pred_region
    _
  $region81: #{backbone_forward_features.1} parent=0 // pred_fallthru
    _
  // Predicated region
  $region82: #{backbone_forward_features.1} parent=0 // pred_check
    _
  $region83: #{backbone_forward_features.1} parent=0 // pred_check_branch
    %74 = sbr.rel (0) target = $region85
  $region84: #{backbone_forward_features.1} parent=0 // pred_region
    _
  $region85: #{backbone_forward_features.1} parent=0 // pred_fallthru
    _
  // Predicated region
  $region86: #{backbone_forward_features.1} parent=0 // pred_check
    _
  $region87: #{backbone_forward_features.1} parent=0 // pred_check_branch
    %76 = sbr.rel (0) target = $region89
  $region88: #{backbone_forward_features.1} parent=0 // pred_region
    _
  $region89: #{backbone_forward_features.1} parent=0 // pred_fallthru
    _
  // Predicated region
  $region90: #{backbone_forward_features.1} parent=0 // pred_check
    _
  $region91: #{backbone_forward_features.1} parent=0 // pred_check_branch
    %78 = sbr.rel (0) target = $region93
  $region92: #{backbone_forward_features.1} parent=0 // pred_region
    _
  $region93: #{backbone_forward_features.1} parent=0 // pred_fallthru
    _
  // Predicated region
  $region94: #{backbone_forward_features.1} parent=0 // pred_check
    _
  $region95: #{backbone_forward_features.1} parent=0 // pred_check_branch
    %80 = sbr.rel (0) target = $region97
  $region96: #{backbone_forward_features.1} parent=0 // pred_region
    _
  $region97: #{backbone_forward_features.1} parent=0 // pred_fallthru
    _
  // Predicated region
  $region98: #{backbone_forward_features.1} parent=0 // pred_check
    _
  $region99: #{backbone_forward_features.1} parent=0 // pred_check_branch
    %82 = sbr.rel (0) target = $region101
  $region100: #{backbone_forward_features.1} parent=0 // pred_region
    _
  $region101: #{backbone_forward_features.1} parent=0 // pred_fallthru
    _
  // Predicated region
  $region102: #{backbone_forward_features.1} parent=0 // pred_check
    _
  $region103: #{backbone_forward_features.1} parent=0 // pred_check_branch
    %84 = sbr.rel (0) target = $region105
  $region104: #{backbone_forward_features.1} parent=0 // pred_region
    _
  $region105: #{backbone_forward_features.1} parent=0 // pred_fallthru
    _
  // Predicated region
  $region106: #{backbone_forward_features.1} parent=0 // pred_check
    _
  $region107: #{backbone_forward_features.1} parent=0 // pred_check_branch
    %86 = sbr.rel (0) target = $region109
  $region108: #{backbone_forward_features.1} parent=0 // pred_region
    _
  $region109: #{backbone_forward_features.1} parent=0 // pred_fallthru
    _
  // Predicated region
  $region110: #{backbone_forward_features.1} parent=0 // pred_check
    _
  $region111: #{backbone_forward_features.1} parent=0 // pred_check_branch
    %88 = sbr.rel (0) target = $region113
  $region112: #{backbone_forward_features.1} parent=0 // pred_region
    _
  $region113: #{backbone_forward_features.1} parent=0 // pred_fallthru
    _
  %v90 = vld [vmem:[%s0] sm:$0xf]
  %v91 = vld [vmem:[%s0 + $0x4] sm:$0xf]
  %v92 = vld [vmem:[%s0 + $0x8] sm:$0xf]
  %v93 = vld [vmem:[%s0 + $0xc] sm:$0xf]
  %v94 = vld [vmem:[%s0 + $0x10] sm:$0xf]
  %v95 = vld [vmem:[%s0 + $0x14] sm:$0xf]
  %v96 = vld [vmem:[%s0 + $0x18] sm:$0xf]
  %v97 = vld [vmem:[%s0 + $0x1c] sm:$0xf]
  %v98 = vld [vmem:[%s0 + $0x20] sm:$0xf]
  %v99 = vld [vmem:[%s0 + $0x24] sm:$0xf]
  %v100 = vld [vmem:[%s0 + $0x28] sm:$0xf]
  %v101 = vld [vmem:[%s0 + $0x2c] sm:$0xf]
  %v102 = vld [vmem:[%s0 + $0x30] sm:$0xf]
  %v103 = vld [vmem:[%s0 + $0x34] sm:$0xf]
  %v104 = vld [vmem:[%s0 + $0x38] sm:$0xf]
  %v105 = vld [vmem:[%s0 + $0x3c] sm:$0xf]
  %v106 = vld [vmem:[%s0 + $0x40] sm:$0xf]
  %v107 = vld [vmem:[%s0 + $0x44] sm:$0xf]
  %v108 = vld [vmem:[%s0 + $0x48] sm:$0xf]
  %v109 = vld [vmem:[%s0 + $0x4c] sm:$0xf]
  %v110 = vld [vmem:[%s0 + $0x50] sm:$0xf]
  %v111 = vld [vmem:[%s0 + $0x54] sm:$0xf]
  %v112 = vld [vmem:[%s0 + $0x58] sm:$0xf]
  %v113 = vld [vmem:[%s0 + $0x5c] sm:$0xf]
  %v114 = vld [vmem:[%s0 + $0x60] sm:$0xf]
  %v115 = vld [vmem:[%s0 + $0x64] sm:$0xf]
  %v116 = vld [vmem:[%s0 + $0x68] sm:$0xf]
  %v117 = vld [vmem:[%s0 + $0x6c] sm:$0xf]
  %v118 = vld [vmem:[%s0 + $0x70] sm:$0xf]
  %v119 = vld [vmem:[%s0 + $0x74] sm:$0xf]
  %v120 = vld [vmem:[%s0 + $0x78] sm:$0xf]
  %v121 = vld [vmem:[%s0 + $0x7c] sm:$0xf]
  %v122 = vld [vmem:[%s1] sm:$0xff]
  %v123 = vld [vmem:[%s1 + $0x8] sm:$0xff]
  %v126 = vunpack.c.l.b16 %v122
  %v127 = vunpack.c.h.b16 %v122
  %v128 = vunpack.c.l.b16 %v123
  %v129 = vunpack.c.h.b16 %v123
  %v130 = vpack.c.b16 %v128, %v126
  %v131 = vpack.c.b16 %v129, %v127
  %v166 = vunpack.c.l.b16 %v90
  %v167 = vunpack.c.l.b16 %v91
  %v168 = vunpack.c.l.b16 %v92
  %v169 = vunpack.c.l.b16 %v93
  %v170 = vunpack.c.l.b16 %v94
  %v171 = vunpack.c.l.b16 %v95
  %v172 = vunpack.c.l.b16 %v96
  %v173 = vunpack.c.l.b16 %v97
  %v174 = vunpack.c.l.b16 %v98
  %v175 = vunpack.c.l.b16 %v99
  %v176 = vunpack.c.l.b16 %v100
  %v177 = vunpack.c.l.b16 %v101
  %v178 = vunpack.c.l.b16 %v102
  %v179 = vunpack.c.l.b16 %v103
  %v180 = vunpack.c.l.b16 %v104
  %v181 = vunpack.c.l.b16 %v105
  %v182 = vunpack.c.l.b16 %v106
  %v183 = vunpack.c.l.b16 %v107
  %v184 = vunpack.c.l.b16 %v108
  %v185 = vunpack.c.l.b16 %v109
  %v186 = vunpack.c.l.b16 %v110
  %v187 = vunpack.c.l.b16 %v111
  %v188 = vunpack.c.l.b16 %v112
  %v189 = vunpack.c.l.b16 %v113
  %v190 = vunpack.c.l.b16 %v114
  %v191 = vunpack.c.l.b16 %v115
  %v192 = vunpack.c.l.b16 %v116
  %v193 = vunpack.c.l.b16 %v117
  %v194 = vunpack.c.l.b16 %v118
  %v195 = vunpack.c.l.b16 %v119
  %v196 = vunpack.c.l.b16 %v120
  %v197 = vunpack.c.l.b16 %v121
  %v198 = vpack.c.b16 %v167, %v166
  %v199 = vpack.c.b16 %v169, %v168
  %v200 = vpack.c.b16 %v171, %v170
  %v201 = vpack.c.b16 %v173, %v172
  %v202 = vpack.c.b16 %v175, %v174
  %v203 = vpack.c.b16 %v177, %v176
  %v204 = vpack.c.b16 %v179, %v178
  %v205 = vpack.c.b16 %v181, %v180
  %v206 = vpack.c.b16 %v183, %v182
  %v207 = vpack.c.b16 %v185, %v184
  %v208 = vpack.c.b16 %v187, %v186
  %v209 = vpack.c.b16 %v189, %v188
  %v210 = vpack.c.b16 %v191, %v190
  %v211 = vpack.c.b16 %v193, %v192
  %v212 = vpack.c.b16 %v195, %v194
  %v213 = vpack.c.b16 %v197, %v196
  %230 = vmatprep.subr.bf16.mxu0 0
  %231 = vmatpush1.bf16.msra.mxu0 %v205
  %232 = vmatprep.subr.bf16.mxu0 0
  %233 = vmatpush1.bf16.msra.mxu0 %v204
  %234 = vmatprep.subr.bf16.mxu0 0
  %235 = vmatpush1.bf16.msra.mxu0 %v203
  %236 = vmatprep.subr.bf16.mxu0 0
  %237 = vmatpush1.bf16.msra.mxu0 %v202
  %238 = vmatprep.subr.bf16.mxu0 0
  %239 = vmatpush1.bf16.msra.mxu0 %v201
  %240 = vmatprep.subr.bf16.mxu0 0
  %241 = vmatpush1.bf16.msra.mxu0 %v200
  %242 = vmatprep.subr.bf16.mxu0 0
  %243 = vmatpush1.bf16.msra.mxu0 %v199
  %244 = vmatprep.subr.bf16.mxu0 0
  %245 = vmatpush1.bf16.msra.mxu0 %v198
  %246 = vmatprep.subr.bf16.mxu0 0
  %247 = vmatpush2.bf16.msra.mxu0 %v213
  %248 = vmatprep.subr.bf16.mxu0 0
  %249 = vmatpush2.bf16.msra.mxu0 %v212
  %250 = vmatprep.subr.bf16.mxu0 0
  %251 = vmatpush2.bf16.msra.mxu0 %v211
  %252 = vmatprep.subr.bf16.mxu0 0
  %253 = vmatpush2.bf16.msra.mxu0 %v210
  %254 = vmatprep.subr.bf16.mxu0 0
  %255 = vmatpush2.bf16.msra.mxu0 %v209
  %256 = vmatprep.subr.bf16.mxu0 0
  %257 = vmatpush2.bf16.msra.mxu0 %v208
  %258 = vmatprep.subr.bf16.mxu0 0
  %259 = vmatpush2.bf16.msra.mxu0 %v207
  %260 = vmatprep.subr.bf16.mxu0 0
  %261 = vmatpush2.bf16.msra.mxu0 %v206
  %262 = vmatprep.mubr.bf16.mxu0 %v131
  %263 = vmatmul.mubr.bf16.gmra.mxu0 %v130
  %v264 = vpop.f32.mrf.mxu0
  %v265 = vadd.f32 0.0, %v264
  %v266 = vpop.f32.mrf.mxu0
  %v267 = vpop.f32.mrf.mxu0
  %v268 = vadd.f32 0.0, %v267
  %v269 = vpop.f32.mrf.mxu0
  %270 = vdwg.mxu0
  %v271 = vld [vmem:[%s2] sm:$0xff]
  %v272 = vld [vmem:[%s2 + $0x8] sm:$0xff]
  %274 = vset.pattern.permute.xlu0 0
  %275 = vperm.xlu0 %274, %v271
  %v276 = vpop.permute.xlu0 %275
  %279 = vset.pattern.permute.xlu0 0
  %280 = vperm.xlu0 %279, %v272
  %v281 = vpop.permute.xlu0 %280
  %v283 = vmul.f32 %v265, %v276
  %v284 = vmul.f32 %v268, %v281
  %285 = vset.pattern.permute.xlu0 1
  %286 = vperm.xlu0 %285, %v271
  %v287 = vpop.permute.xlu0 %286
  %289 = vset.pattern.permute.xlu0 1
  %290 = vperm.xlu0 %289, %v272
  %v291 = vpop.permute.xlu0 %290
  %v293 = vadd.f32 %v283, %v287
  %v294 = vadd.f32 %v284, %v291
  %v295 = vmax.f32 %v293, 0.0
  %v296 = vmax.f32 %v294, 0.0
  %v297 = vld [vmem:[%s3] sm:$0xff]
  %v298 = vld [vmem:[%s3 + $0x8] sm:$0xff]
  %v299 = vld [vmem:[%s3 + $0x10] sm:$0xff]
  %v300 = vld [vmem:[%s3 + $0x18] sm:$0xff]
  %v301 = vld [vmem:[%s3 + $0x20] sm:$0xff]
  %v302 = vld [vmem:[%s3 + $0x28] sm:$0xff]
  %v303 = vld [vmem:[%s3 + $0x30] sm:$0xff]
  %v304 = vld [vmem:[%s3 + $0x38] sm:$0xff]
  %v305 = vld [vmem:[%s3 + $0x40] sm:$0xff]
  %v306 = vld [vmem:[%s3 + $0x48] sm:$0xff]
  %v307 = vld [vmem:[%s3 + $0x50] sm:$0xff]
  %v308 = vld [vmem:[%s3 + $0x58] sm:$0xff]
  %v309 = vld [vmem:[%s3 + $0x60] sm:$0xff]
  %v310 = vld [vmem:[%s3 + $0x68] sm:$0xff]
  %v311 = vld [vmem:[%s3 + $0x70] sm:$0xff]
  %v312 = vld [vmem:[%s3 + $0x78] sm:$0xff]
  %v313 = vld [vmem:[%s3 + $0x80] sm:$0xff]
  %v314 = vld [vmem:[%s3 + $0x88] sm:$0xff]
  %v315 = vld [vmem:[%s3 + $0x90] sm:$0xff]
  %v316 = vld [vmem:[%s3 + $0x98] sm:$0xff]
  %v317 = vld [vmem:[%s3 + $0xa0] sm:$0xff]
  %v318 = vld [vmem:[%s3 + $0xa8] sm:$0xff]
  %v319 = vld [vmem:[%s3 + $0xb0] sm:$0xff]
  %v320 = vld [vmem:[%s3 + $0xb8] sm:$0xff]
  %v321 = vld [vmem:[%s3 + $0xc0] sm:$0xff]
  %v322 = vld [vmem:[%s3 + $0xc8] sm:$0xff]
  %v323 = vld [vmem:[%s3 + $0xd0] sm:$0xff]
  %v324 = vld [vmem:[%s3 + $0xd8] sm:$0xff]
  %v325 = vld [vmem:[%s3 + $0xe0] sm:$0xff]
  %v326 = vld [vmem:[%s3 + $0xe8] sm:$0xff]
  %v327 = vld [vmem:[%s3 + $0xf0] sm:$0xff]
  %v328 = vld [vmem:[%s3 + $0xf8] sm:$0xff]
  %v329 = vld [vmem:[%s3 + $0x100] sm:$0xff]
  %v330 = vld [vmem:[%s3 + $0x108] sm:$0xff]
  %v331 = vld [vmem:[%s3 + $0x110] sm:$0xff]
  %v332 = vld [vmem:[%s3 + $0x118] sm:$0xff]
  %v333 = vld [vmem:[%s3 + $0x120] sm:$0xff]
  %v334 = vld [vmem:[%s3 + $0x128] sm:$0xff]
  %v335 = vld [vmem:[%s3 + $0x130] sm:$0xff]
  %v336 = vld [vmem:[%s3 + $0x138] sm:$0xff]
  %v337 = vld [vmem:[%s3 + $0x140] sm:$0xff]
  %v338 = vld [vmem:[%s3 + $0x148] sm:$0xff]
  %v339 = vld [vmem:[%s3 + $0x150] sm:$0xff]
  %v340 = vld [vmem:[%s3 + $0x158] sm:$0xff]
  %v341 = vld [vmem:[%s3 + $0x160] sm:$0xff]
  %v342 = vld [vmem:[%s3 + $0x168] sm:$0xff]
  %v343 = vld [vmem:[%s3 + $0x170] sm:$0xff]
  %v344 = vld [vmem:[%s3 + $0x178] sm:$0xff]
  %345 = vmatprep.subr.mxu0 %v343
  %346 = vmatpush1.msra.mxu0 %v342
  %347 = vmatprep.subr.mxu0 %v340
  %348 = vmatpush1.msra.mxu0 %v339
  %349 = vmatprep.subr.mxu0 %v337
  %350 = vmatpush1.msra.mxu0 %v336
  %351 = vmatprep.subr.mxu0 %v334
  %352 = vmatpush1.msra.mxu0 %v333
  %353 = vmatprep.subr.mxu0 %v331
  %354 = vmatpush1.msra.mxu0 %v330
  %355 = vmatprep.subr.mxu0 %v328
  %356 = vmatpush1.msra.mxu0 %v327
  %357 = vmatprep.subr.mxu0 %v325
  %358 = vmatpush1.msra.mxu0 %v324
  %359 = vmatprep.subr.mxu0 %v322
  %360 = vmatpush1.msra.mxu0 %v321
  %361 = vmatprep.subr.mxu0 %v319
  %362 = vmatpush1.msra.mxu0 %v318
  %363 = vmatprep.subr.mxu0 %v316
  %364 = vmatpush1.msra.mxu0 %v315
  %365 = vmatprep.subr.mxu0 %v313
  %366 = vmatpush1.msra.mxu0 %v312
  %367 = vmatprep.subr.mxu0 %v310
  %368 = vmatpush1.msra.mxu0 %v309
  %369 = vmatprep.subr.mxu0 %v307
  %370 = vmatpush1.msra.mxu0 %v306
  %371 = vmatprep.subr.mxu0 %v304
  %372 = vmatpush1.msra.mxu0 %v303
  %373 = vmatprep.subr.mxu0 %v301
  %374 = vmatpush1.msra.mxu0 %v300
  %375 = vmatprep.subr.mxu0 %v298
  %376 = vmatpush1.msra.mxu0 %v297
  %377 = vmatprep.subr.mxu0 0.0
  %378 = vmatpush2.msra.mxu0 0.0
  %379 = vmatprep.subr.mxu0 0.0
  %380 = vmatpush2.msra.mxu0 0.0
  %381 = vmatprep.subr.mxu0 0.0
  %382 = vmatpush2.msra.mxu0 0.0
  %383 = vmatprep.subr.mxu0 0.0
  %384 = vmatpush2.msra.mxu0 0.0
  %385 = vmatprep.subr.mxu0 0.0
  %386 = vmatpush2.msra.mxu0 0.0
  %387 = vmatprep.subr.mxu0 0.0
  %388 = vmatpush2.msra.mxu0 0.0
  %389 = vmatprep.subr.mxu0 0.0
  %390 = vmatpush2.msra.mxu0 0.0
  %391 = vmatprep.subr.mxu0 0.0
  %392 = vmatpush2.msra.mxu0 0.0
  %393 = vmatprep.subr.mxu0 0.0
  %394 = vmatpush2.msra.mxu0 0.0
  %395 = vmatprep.subr.mxu0 0.0
  %396 = vmatpush2.msra.mxu0 0.0
  %397 = vmatprep.subr.mxu0 0.0
  %398 = vmatpush2.msra.mxu0 0.0
  %399 = vmatprep.subr.mxu0 0.0
  %400 = vmatpush2.msra.mxu0 0.0
  %401 = vmatprep.subr.mxu0 0.0
  %402 = vmatpush2.msra.mxu0 0.0
  %403 = vmatprep.subr.mxu0 0.0
  %404 = vmatpush2.msra.mxu0 0.0
  %405 = vmatprep.subr.mxu0 0.0
  %406 = vmatpush2.msra.mxu0 0.0
  %407 = vmatprep.subr.mxu0 0.0
  %408 = vmatpush2.msra.mxu0 0.0
  %409 = vmatprep.mubr.f32.mxu0 0.0
  %410 = vmatmul.mubr.f32.gmra.mxu0 %v295
  %v411 = vpop.f32.mrf.mxu0
  %v412 = vadd.f32 0.0, %v411
  %v413 = vpop.f32.mrf.mxu0
  %v414 = vadd.f32 0.0, %v413
  %415 = vmatprep.mubr.f32.mxu0 0.0
  %416 = vmatmul.mubr.f32.gmra.mxu0 %v296
  %v417 = vpop.f32.mrf.mxu0
  %v418 = vadd.f32 0.0, %v417
  %v419 = vpop.f32.mrf.mxu0
  %v420 = vadd.f32 0.0, %v419
  %421 = vdwg.mxu0
  %422 = vmatprep.subr.mxu0 0.0
  %423 = vmatpush1.msra.mxu0 %v344
  %424 = vmatprep.subr.mxu0 0.0
  %425 = vmatpush1.msra.mxu0 %v341
  %426 = vmatprep.subr.mxu0 0.0
  %427 = vmatpush1.msra.mxu0 %v338
  %428 = vmatprep.subr.mxu0 0.0
  %429 = vmatpush1.msra.mxu0 %v335
  %430 = vmatprep.subr.mxu0 0.0
  %431 = vmatpush1.msra.mxu0 %v332
  %432 = vmatprep.subr.mxu0 0.0
  %433 = vmatpush1.msra.mxu0 %v329
  %434 = vmatprep.subr.mxu0 0.0
  %435 = vmatpush1.msra.mxu0 %v326
  %436 = vmatprep.subr.mxu0 0.0
  %437 = vmatpush1.msra.mxu0 %v323
  %438 = vmatprep.subr.mxu0 0.0
  %439 = vmatpush1.msra.mxu0 %v320
  %440 = vmatprep.subr.mxu0 0.0
  %441 = vmatpush1.msra.mxu0 %v317
  %442 = vmatprep.subr.mxu0 0.0
  %443 = vmatpush1.msra.mxu0 %v314
  %444 = vmatprep.subr.mxu0 0.0
  %445 = vmatpush1.msra.mxu0 %v311
  %446 = vmatprep.subr.mxu0 0.0
  %447 = vmatpush1.msra.mxu0 %v308
  %448 = vmatprep.subr.mxu0 0.0
  %449 = vmatpush1.msra.mxu0 %v305
  %450 = vmatprep.subr.mxu0 0.0
  %451 = vmatpush1.msra.mxu0 %v302
  %452 = vmatprep.subr.mxu0 0.0
  %453 = vmatpush1.msra.mxu0 %v299
  %454 = vmatprep.subr.mxu0 0.0
  %455 = vmatpush2.msra.mxu0 0.0
  %456 = vmatprep.subr.mxu0 0.0
  %457 = vmatpush2.msra.mxu0 0.0
  %458 = vmatprep.subr.mxu0 0.0
  %459 = vmatpush2.msra.mxu0 0.0
  %460 = vmatprep.subr.mxu0 0.0
  %461 = vmatpush2.msra.mxu0 0.0
  %462 = vmatprep.subr.mxu0 0.0
  %463 = vmatpush2.msra.mxu0 0.0
  %464 = vmatprep.subr.mxu0 0.0
  %465 = vmatpush2.msra.mxu0 0.0
  %466 = vmatprep.subr.mxu0 0.0
  %467 = vmatpush2.msra.mxu0 0.0
  %468 = vmatprep.subr.mxu0 0.0
  %469 = vmatpush2.msra.mxu0 0.0
  %470 = vmatprep.subr.mxu0 0.0
  %471 = vmatpush2.msra.mxu0 0.0
  %472 = vmatprep.subr.mxu0 0.0
  %473 = vmatpush2.msra.mxu0 0.0
  %474 = vmatprep.subr.mxu0 0.0
  %475 = vmatpush2.msra.mxu0 0.0
  %476 = vmatprep.subr.mxu0 0.0
  %477 = vmatpush2.msra.mxu0 0.0
  %478 = vmatprep.subr.mxu0 0.0
  %479 = vmatpush2.msra.mxu0 0.0
  %480 = vmatprep.subr.mxu0 0.0
  %481 = vmatpush2.msra.mxu0 0.0
  %482 = vmatprep.subr.mxu0 0.0
  %483 = vmatpush2.msra.mxu0 0.0
  %484 = vmatprep.subr.mxu0 0.0
  %485 = vmatpush2.msra.mxu0 0.0
  %486 = vmatprep.mubr.f32.mxu0 0.0
  %487 = vmatmul.mubr.f32.gmra.mxu0 %v295
  %v488 = vpop.f32.mrf.mxu0
  %v489 = vadd.f32 0.0, %v488
  %v490 = vpop.f32.mrf.mxu0
  %491 = vmatprep.mubr.f32.mxu0 0.0
  %492 = vmatmul.mubr.f32.gmra.mxu0 %v296
  %v493 = vpop.f32.mrf.mxu0
  %v494 = vadd.f32 0.0, %v493
  %v495 = vpop.f32.mrf.mxu0
  %496 = vdwg.mxu0
  %499 = vrot.lane.b32.xlu0 %v412, 96
  %v500 = vpop.permute.xlu0 %499
  %501 = vrot.lane.b32.xlu0 %v418, 96
  %v502 = vpop.permute.xlu0 %501
  %v505 = vmax.f32 %v412, %v500
  %v506 = vmax.f32 %v418, %v502
  %507 = vrot.lane.b32.xlu0 %v412, 64
  %v508 = vpop.permute.xlu0 %507
  %509 = vrot.lane.b32.xlu0 %v418, 64
  %v510 = vpop.permute.xlu0 %509
  %v513 = vmax.f32 %v505, %v508
  %v514 = vmax.f32 %v506, %v510
  %515 = vrot.lane.b32.xlu0 %v412, 32
  %v516 = vpop.permute.xlu0 %515
  %517 = vrot.lane.b32.xlu0 %v418, 32
  %v518 = vpop.permute.xlu0 %517
  %v521 = vmax.f32 %v513, %v516
  %v522 = vmax.f32 %v514, %v518
  %v523 = vmax.f32 %v521, %v414
  %v524 = vmax.f32 %v522, %v420
  %527 = vrot.lane.b32.xlu0 %v414, 96
  %v528 = vpop.permute.xlu0 %527
  %529 = vrot.lane.b32.xlu0 %v420, 96
  %v530 = vpop.permute.xlu0 %529
  %v533 = vmax.f32 %v523, %v528
  %v534 = vmax.f32 %v524, %v530
  %535 = vrot.lane.b32.xlu0 %v414, 64
  %v536 = vpop.permute.xlu0 %535
  %537 = vrot.lane.b32.xlu0 %v420, 64
  %v538 = vpop.permute.xlu0 %537
  %v541 = vmax.f32 %v533, %v536
  %v542 = vmax.f32 %v534, %v538
  %543 = vrot.lane.b32.xlu0 %v414, 32
  %v544 = vpop.permute.xlu0 %543
  %545 = vrot.lane.b32.xlu0 %v420, 32
  %v546 = vpop.permute.xlu0 %545
  %v549 = vmax.f32 %v541, %v544
  %v550 = vmax.f32 %v542, %v546
  %v551 = vmax.f32 %v549, %v489
  %v552 = vmax.f32 %v550, %v494
  %v553 = vld [vmem:[%s4] sm:$0xff]
  %v554 = vld [vmem:[%s4 + $0x8] sm:$0xff]
  %v555 = vld [vmem:[%s4 + $0x10] sm:$0xff]
  %v556 = vld [vmem:[%s4 + $0x18] sm:$0xff]
  %vm557 = vcmask 261120
  %v559 = vsel %vm557, %v551, 0
  %v562 = vsel %vm557, %v552, 0
  %564 = vmatprep.subr.mxu0 0.0
  %565 = vmatpush1.msra.mxu0 0.0
  %566 = vmatprep.subr.mxu0 0.0
  %567 = vmatpush1.msra.mxu0 0.0
  %568 = vmatprep.subr.mxu0 0.0
  %569 = vmatpush1.msra.mxu0 0.0
  %570 = vmatprep.subr.mxu0 0.0
  %571 = vmatpush1.msra.mxu0 0.0
  %572 = vmatprep.subr.mxu0 0.0
  %573 = vmatpush1.msra.mxu0 0.0
  %574 = vmatprep.subr.mxu0 0.0
  %575 = vmatpush1.msra.mxu0 0.0
  %576 = vmatprep.subr.mxu0 0.0
  %577 = vmatpush1.msra.mxu0 0.0
  %578 = vmatprep.subr.mxu0 0.0
  %579 = vmatpush1.msra.mxu0 0.0
  %580 = vmatprep.subr.mxu0 0.0
  %581 = vmatpush1.msra.mxu0 0.0
  %582 = vmatprep.subr.mxu0 0.0
  %583 = vmatpush1.msra.mxu0 0.0
  %584 = vmatprep.subr.mxu0 0.0
  %585 = vmatpush1.msra.mxu0 0.0
  %586 = vmatprep.subr.mxu0 0.0
  %587 = vmatpush1.msra.mxu0 0.0
  %588 = vmatprep.subr.mxu0 0.0
  %589 = vmatpush1.msra.mxu0 %v556
  %590 = vmatprep.subr.mxu0 0.0
  %591 = vmatpush1.msra.mxu0 %v555
  %592 = vmatprep.subr.mxu0 0.0
  %593 = vmatpush1.msra.mxu0 %v554
  %594 = vmatprep.subr.mxu0 0.0
  %595 = vmatpush1.msra.mxu0 %v553
  %596 = vmatprep.subr.mxu0 0.0
  %597 = vmatpush2.msra.mxu0 0.0
  %598 = vmatprep.subr.mxu0 0.0
  %599 = vmatpush2.msra.mxu0 0.0
  %600 = vmatprep.subr.mxu0 0.0
  %601 = vmatpush2.msra.mxu0 0.0
  %602 = vmatprep.subr.mxu0 0.0
  %603 = vmatpush2.msra.mxu0 0.0
  %604 = vmatprep.subr.mxu0 0.0
  %605 = vmatpush2.msra.mxu0 0.0
  %606 = vmatprep.subr.mxu0 0.0
  %607 = vmatpush2.msra.mxu0 0.0
  %608 = vmatprep.subr.mxu0 0.0
  %609 = vmatpush2.msra.mxu0 0.0
  %610 = vmatprep.subr.mxu0 0.0
  %611 = vmatpush2.msra.mxu0 0.0
  %612 = vmatprep.subr.mxu0 0.0
  %613 = vmatpush2.msra.mxu0 0.0
  %614 = vmatprep.subr.mxu0 0.0
  %615 = vmatpush2.msra.mxu0 0.0
  %616 = vmatprep.subr.mxu0 0.0
  %617 = vmatpush2.msra.mxu0 0.0
  %618 = vmatprep.subr.mxu0 0.0
  %619 = vmatpush2.msra.mxu0 0.0
  %620 = vmatprep.subr.mxu0 0.0
  %621 = vmatpush2.msra.mxu0 0.0
  %622 = vmatprep.subr.mxu0 0.0
  %623 = vmatpush2.msra.mxu0 0.0
  %624 = vmatprep.subr.mxu0 0.0
  %625 = vmatpush2.msra.mxu0 0.0
  %626 = vmatprep.subr.mxu0 0.0
  %627 = vmatpush2.msra.mxu0 0.0
  %628 = vmatprep.mubr.f32.mxu0 0.0
  %629 = vmatmul.mubr.f32.gmra.mxu0 %v559
  %v630 = vpop.f32.mrf.mxu0
  %v631 = vadd.f32 0.0, %v630
  %v632 = vpop.f32.mrf.mxu0
  %633 = vmatprep.mubr.f32.mxu0 0.0
  %634 = vmatmul.mubr.f32.gmra.mxu0 %v562
  %v635 = vpop.f32.mrf.mxu0
  %v636 = vadd.f32 0.0, %v635
  %v637 = vpop.f32.mrf.mxu0
  %638 = vdwg.mxu0
  %v639 = vpack.c.bf16 %v636, %v631
  %641 = vrot.lane.b32.xlu0 %v639, 127
  %v642 = vpop.permute.xlu0 %641
  %643 = vrot.lane.b32.xlu0 %v639, 126
  %v644 = vpop.permute.xlu0 %643
  %645 = vrot.lane.b32.xlu0 %v639, 120
  %v646 = vpop.permute.xlu0 %645
  %647 = vrot.lane.b32.xlu0 %v639, 119
  %v648 = vpop.permute.xlu0 %647
  %649 = vrot.lane.b32.xlu0 %v639, 118
  %v650 = vpop.permute.xlu0 %649
  %651 = vrot.lane.b32.xlu0 %v639, 112
  %v652 = vpop.permute.xlu0 %651
  %653 = vrot.lane.b32.xlu0 %v639, 111
  %v654 = vpop.permute.xlu0 %653
  %655 = vrot.lane.b32.xlu0 %v639, 110
  %v656 = vpop.permute.xlu0 %655
  %v657 = vld [vmem:[%s6] sm:$0xff]
  %v658 = vld [vmem:[%s6 + $0x8] sm:$0xff]
  %v661 = vunpack.c.l.b16 %v657
  %v662 = vunpack.c.h.b16 %v657
  %v663 = vunpack.c.l.b16 %v658
  %v664 = vunpack.c.h.b16 %v658
  %v665 = vpack.c.b16 %v663, %v661
  %v666 = vpack.c.b16 %v664, %v662
  %668 = vrot.lane.b32.xlu0 %v639, 121
  %v669 = vpop.permute.xlu0 %668
  %670 = vrot.lane.b32.xlu0 %v642, 121
  %v671 = vpop.permute.xlu0 %670
  %672 = vrot.lane.b32.xlu0 %v644, 121
  %v673 = vpop.permute.xlu0 %672
  %674 = vrot.lane.b32.xlu0 %v646, 121
  %v675 = vpop.permute.xlu0 %674
  %676 = vrot.lane.b32.xlu0 %v648, 121
  %v677 = vpop.permute.xlu0 %676
  %678 = vrot.lane.b32.xlu0 %v650, 121
  %v679 = vpop.permute.xlu0 %678
  %680 = vrot.lane.b32.xlu0 %v652, 121
  %v681 = vpop.permute.xlu0 %680
  %682 = vrot.lane.b32.xlu0 %v654, 121
  %v683 = vpop.permute.xlu0 %682
  %684 = vrot.lane.b32.xlu0 %v656, 121
  %v685 = vpop.permute.xlu0 %684
  %vm695 = vcmask 130048
  %v697 = vsel %vm695, %v666, 0
  %699 = vmatprep.subr.bf16.mxu0 0
  %700 = vmatpush1.bf16.msra.mxu0 %v683
  %701 = vmatprep.subr.bf16.mxu0 0
  %702 = vmatpush1.bf16.msra.mxu0 %v681
  %703 = vmatprep.subr.bf16.mxu0 0
  %704 = vmatpush1.bf16.msra.mxu0 %v679
  %705 = vmatprep.subr.bf16.mxu0 0
  %706 = vmatpush1.bf16.msra.mxu0 %v677
  %707 = vmatprep.subr.bf16.mxu0 0
  %708 = vmatpush1.bf16.msra.mxu0 %v675
  %709 = vmatprep.subr.bf16.mxu0 0
  %710 = vmatpush1.bf16.msra.mxu0 %v673
  %711 = vmatprep.subr.bf16.mxu0 0
  %712 = vmatpush1.bf16.msra.mxu0 %v671
  %713 = vmatprep.subr.bf16.mxu0 0
  %714 = vmatpush1.bf16.msra.mxu0 %v669
  %715 = vmatprep.subr.bf16.mxu0 0
  %716 = vmatpush2.bf16.msra.mxu0 0
  %717 = vmatprep.subr.bf16.mxu0 0
  %718 = vmatpush2.bf16.msra.mxu0 0
  %719 = vmatprep.subr.bf16.mxu0 0
  %720 = vmatpush2.bf16.msra.mxu0 0
  %721 = vmatprep.subr.bf16.mxu0 0
  %722 = vmatpush2.bf16.msra.mxu0 0
  %723 = vmatprep.subr.bf16.mxu0 0
  %724 = vmatpush2.bf16.msra.mxu0 0
  %725 = vmatprep.subr.bf16.mxu0 0
  %726 = vmatpush2.bf16.msra.mxu0 0
  %727 = vmatprep.subr.bf16.mxu0 0
  %728 = vmatpush2.bf16.msra.mxu0 0
  %729 = vmatprep.subr.bf16.mxu0 0
  %730 = vmatpush2.bf16.msra.mxu0 %v685
  %731 = vmatprep.mubr.bf16.mxu0 %v697
  %732 = vmatmul.mubr.bf16.gmra.mxu0 %v665
  %v733 = vpop.f32.mrf.mxu0
  %v734 = vadd.f32 0.0, %v733
  %v735 = vpop.f32.mrf.mxu0
  %v736 = vpop.f32.mrf.mxu0
  %v737 = vadd.f32 0.0, %v736
  %v738 = vpop.f32.mrf.mxu0
  %739 = vdwg.mxu0
  %v740 = vld [vmem:[%s7] sm:$0xff]
  %v741 = vld [vmem:[%s7 + $0x8] sm:$0xff]
  %743 = vset.pattern.permute.xlu0 0
  %744 = vperm.xlu0 %743, %v740
  %v745 = vpop.permute.xlu0 %744
  %748 = vset.pattern.permute.xlu0 0
  %749 = vperm.xlu0 %748, %v741
  %v750 = vpop.permute.xlu0 %749
  %v752 = vmul.f32 %v734, %v745
  %v753 = vmul.f32 %v737, %v750
  %754 = vset.pattern.permute.xlu0 1
  %755 = vperm.xlu0 %754, %v740
  %v756 = vpop.permute.xlu0 %755
  %758 = vset.pattern.permute.xlu0 1
  %759 = vperm.xlu0 %758, %v741
  %v760 = vpop.permute.xlu0 %759
  %v762 = vadd.f32 %v752, %v756
  %v763 = vadd.f32 %v753, %v760
  %v764 = vmax.f32 %v762, 0.0
  %v765 = vmax.f32 %v763, 0.0
  %v766 = vld [vmem:[%s5] sm:$0xff]
  %v767 = vld [vmem:[%s5 + $0x8] sm:$0xff]
  %v768 = vld [vmem:[%s5 + $0x10] sm:$0xff]
  %v769 = vld [vmem:[%s5 + $0x18] sm:$0xff]
  %v770 = vld [vmem:[%s5 + $0x20] sm:$0xff]
  %v771 = vld [vmem:[%s5 + $0x28] sm:$0xff]
  %v772 = vld [vmem:[%s5 + $0x30] sm:$0xff]
  %v773 = vld [vmem:[%s5 + $0x38] sm:$0xff]
  %v774 = vld [vmem:[%s5 + $0x40] sm:$0xff]
  %v775 = vld [vmem:[%s5 + $0x48] sm:$0xff]
  %v776 = vld [vmem:[%s5 + $0x50] sm:$0xff]
  %v777 = vld [vmem:[%s5 + $0x58] sm:$0xff]
  %vm778 = vcmask 785408
  %v780 = vsel %vm778, %v764, 0
  %v783 = vsel %vm778, %v765, 0
  %785 = vmatprep.subr.mxu0 0.0
  %786 = vmatpush1.msra.mxu0 0.0
  %787 = vmatprep.subr.mxu0 0.0
  %788 = vmatpush1.msra.mxu0 0.0
  %789 = vmatprep.subr.mxu0 0.0
  %790 = vmatpush1.msra.mxu0 0.0
  %791 = vmatprep.subr.mxu0 0.0
  %792 = vmatpush1.msra.mxu0 0.0
  %793 = vmatprep.subr.mxu0 0.0
  %794 = vmatpush1.msra.mxu0 %v777
  %795 = vmatprep.subr.mxu0 0.0
  %796 = vmatpush1.msra.mxu0 %v776
  %797 = vmatprep.subr.mxu0 0.0
  %798 = vmatpush1.msra.mxu0 %v775
  %799 = vmatprep.subr.mxu0 0.0
  %800 = vmatpush1.msra.mxu0 %v774
  %801 = vmatprep.subr.mxu0 0.0
  %802 = vmatpush1.msra.mxu0 %v773
  %803 = vmatprep.subr.mxu0 0.0
  %804 = vmatpush1.msra.mxu0 %v772
  %805 = vmatprep.subr.mxu0 0.0
  %806 = vmatpush1.msra.mxu0 %v771
  %807 = vmatprep.subr.mxu0 0.0
  %808 = vmatpush1.msra.mxu0 %v770
  %809 = vmatprep.subr.mxu0 0.0
  %810 = vmatpush1.msra.mxu0 %v769
  %811 = vmatprep.subr.mxu0 0.0
  %812 = vmatpush1.msra.mxu0 %v768
  %813 = vmatprep.subr.mxu0 0.0
  %814 = vmatpush1.msra.mxu0 %v767
  %815 = vmatprep.subr.mxu0 0.0
  %816 = vmatpush1.msra.mxu0 %v766
  %817 = vmatprep.subr.mxu0 0.0
  %818 = vmatpush2.msra.mxu0 0.0
  %819 = vmatprep.subr.mxu0 0.0
  %820 = vmatpush2.msra.mxu0 0.0
  %821 = vmatprep.subr.mxu0 0.0
  %822 = vmatpush2.msra.mxu0 0.0
  %823 = vmatprep.subr.mxu0 0.0
  %824 = vmatpush2.msra.mxu0 0.0
  %825 = vmatprep.subr.mxu0 0.0
  %826 = vmatpush2.msra.mxu0 0.0
  %827 = vmatprep.subr.mxu0 0.0
  %828 = vmatpush2.msra.mxu0 0.0
  %829 = vmatprep.subr.mxu0 0.0
  %830 = vmatpush2.msra.mxu0 0.0
  %831 = vmatprep.subr.mxu0 0.0
  %832 = vmatpush2.msra.mxu0 0.0
  %833 = vmatprep.subr.mxu0 0.0
  %834 = vmatpush2.msra.mxu0 0.0
  %835 = vmatprep.subr.mxu0 0.0
  %836 = vmatpush2.msra.mxu0 0.0
  %837 = vmatprep.subr.mxu0 0.0
  %838 = vmatpush2.msra.mxu0 0.0
  %839 = vmatprep.subr.mxu0 0.0
  %840 = vmatpush2.msra.mxu0 0.0
  %841 = vmatprep.subr.mxu0 0.0
  %842 = vmatpush2.msra.mxu0 0.0
  %843 = vmatprep.subr.mxu0 0.0
  %844 = vmatpush2.msra.mxu0 0.0
  %845 = vmatprep.subr.mxu0 0.0
  %846 = vmatpush2.msra.mxu0 0.0
  %847 = vmatprep.subr.mxu0 0.0
  %848 = vmatpush2.msra.mxu0 0.0
  %849 = vmatprep.mubr.f32.mxu0 0.0
  %850 = vmatmul.mubr.f32.gmra.mxu0 %v780
  %v851 = vpop.f32.mrf.mxu0
  %v852 = vadd.f32 0.0, %v851
  %v853 = vpop.f32.mrf.mxu0
  %854 = vmatprep.mubr.f32.mxu0 0.0
  %855 = vmatmul.mubr.f32.gmra.mxu0 %v783
  %v856 = vpop.f32.mrf.mxu0
  %v857 = vadd.f32 0.0, %v856
  %v858 = vpop.f32.mrf.mxu0
  %859 = vdwg.mxu0
  %v860 = vpack.c.bf16 %v857, %v852
  %862 = vrot.lane.b32.xlu0 %v860, 127
  %v863 = vpop.permute.xlu0 %862
  %864 = vrot.lane.b32.xlu0 %v860, 126
  %v865 = vpop.permute.xlu0 %864
  %866 = vrot.lane.b32.xlu0 %v860, 120
  %v867 = vpop.permute.xlu0 %866
  %868 = vrot.lane.b32.xlu0 %v860, 119
  %v869 = vpop.permute.xlu0 %868
  %870 = vrot.lane.b32.xlu0 %v860, 118
  %v871 = vpop.permute.xlu0 %870
  %872 = vrot.lane.b32.xlu0 %v860, 112
  %v873 = vpop.permute.xlu0 %872
  %874 = vrot.lane.b32.xlu0 %v860, 111
  %v875 = vpop.permute.xlu0 %874
  %876 = vrot.lane.b32.xlu0 %v860, 110
  %v877 = vpop.permute.xlu0 %876
  %v878 = vld [vmem:[%s8] sm:$0xff]
  %v879 = vld [vmem:[%s8 + $0x8] sm:$0xff]
  %v882 = vunpack.c.l.b16 %v878
  %v883 = vunpack.c.h.b16 %v878
  %v884 = vunpack.c.l.b16 %v879
  %v885 = vunpack.c.h.b16 %v879
  %v886 = vpack.c.b16 %v884, %v882
  %v887 = vpack.c.b16 %v885, %v883
  %889 = vrot.lane.b32.xlu0 %v860, 121
  %v890 = vpop.permute.xlu0 %889
  %891 = vrot.lane.b32.xlu0 %v863, 121
  %v892 = vpop.permute.xlu0 %891
  %893 = vrot.lane.b32.xlu0 %v865, 121
  %v894 = vpop.permute.xlu0 %893
  %895 = vrot.lane.b32.xlu0 %v867, 121
  %v896 = vpop.permute.xlu0 %895
  %897 = vrot.lane.b32.xlu0 %v869, 121
  %v898 = vpop.permute.xlu0 %897
  %899 = vrot.lane.b32.xlu0 %v871, 121
  %v900 = vpop.permute.xlu0 %899
  %901 = vrot.lane.b32.xlu0 %v873, 121
  %v902 = vpop.permute.xlu0 %901
  %903 = vrot.lane.b32.xlu0 %v875, 121
  %v904 = vpop.permute.xlu0 %903
  %905 = vrot.lane.b32.xlu0 %v877, 121
  %v906 = vpop.permute.xlu0 %905
  %v917 = vsel %vm695, %v887, 0
  %919 = vmatprep.subr.bf16.mxu0 0
  %920 = vmatpush1.bf16.msra.mxu0 %v904
  %921 = vmatprep.subr.bf16.mxu0 0
  %922 = vmatpush1.bf16.msra.mxu0 %v902
  %923 = vmatprep.subr.bf16.mxu0 0
  %924 = vmatpush1.bf16.msra.mxu0 %v900
  %925 = vmatprep.subr.bf16.mxu0 0
  %926 = vmatpush1.bf16.msra.mxu0 %v898
  %927 = vmatprep.subr.bf16.mxu0 0
  %928 = vmatpush1.bf16.msra.mxu0 %v896
  %929 = vmatprep.subr.bf16.mxu0 0
  %930 = vmatpush1.bf16.msra.mxu0 %v894
  %931 = vmatprep.subr.bf16.mxu0 0
  %932 = vmatpush1.bf16.msra.mxu0 %v892
  %933 = vmatprep.subr.bf16.mxu0 0
  %934 = vmatpush1.bf16.msra.mxu0 %v890
  %935 = vmatprep.subr.bf16.mxu0 0
  %936 = vmatpush2.bf16.msra.mxu0 0
  %937 = vmatprep.subr.bf16.mxu0 0
  %938 = vmatpush2.bf16.msra.mxu0 0
  %939 = vmatprep.subr.bf16.mxu0 0
  %940 = vmatpush2.bf16.msra.mxu0 0
  %941 = vmatprep.subr.bf16.mxu0 0
  %942 = vmatpush2.bf16.msra.mxu0 0
  %943 = vmatprep.subr.bf16.mxu0 0
  %944 = vmatpush2.bf16.msra.mxu0 0
  %945 = vmatprep.subr.bf16.mxu0 0
  %946 = vmatpush2.bf16.msra.mxu0 0
  %947 = vmatprep.subr.bf16.mxu0 0
  %948 = vmatpush2.bf16.msra.mxu0 0
  %949 = vmatprep.subr.bf16.mxu0 0
  %950 = vmatpush2.bf16.msra.mxu0 %v906
  %951 = vmatprep.mubr.bf16.mxu0 %v917
  %952 = vmatmul.mubr.bf16.gmra.mxu0 %v886
  %v953 = vpop.f32.mrf.mxu0
  %v954 = vadd.f32 0.0, %v953
  %v955 = vpop.f32.mrf.mxu0
  %v956 = vpop.f32.mrf.mxu0
  %v957 = vadd.f32 0.0, %v956
  %v958 = vpop.f32.mrf.mxu0
  %959 = vdwg.mxu0
  %v960 = vld [vmem:[%s9] sm:$0xff]
  %v961 = vld [vmem:[%s9 + $0x8] sm:$0xff]
  %963 = vset.pattern.permute.xlu0 0
  %964 = vperm.xlu0 %963, %v960
  %v965 = vpop.permute.xlu0 %964
  %968 = vset.pattern.permute.xlu0 0
  %969 = vperm.xlu0 %968, %v961
  %v970 = vpop.permute.xlu0 %969
  %v972 = vmul.f32 %v954, %v965
  %v973 = vmul.f32 %v957, %v970
  %974 = vset.pattern.permute.xlu0 1
  %975 = vperm.xlu0 %974, %v960
  %v976 = vpop.permute.xlu0 %975
  %978 = vset.pattern.permute.xlu0 1
  %979 = vperm.xlu0 %978, %v961
  %v980 = vpop.permute.xlu0 %979
  %v982 = vadd.f32 %v972, %v976
  %v983 = vadd.f32 %v973, %v980
  %986 = vrot.lane.b32.xlu0 %v631, 112
  %v987 = vpop.permute.xlu0 %986
  %988 = vrot.lane.b32.xlu0 %v636, 112
  %v989 = vpop.permute.xlu0 %988
  %v992 = vadd.f32 %v982, %v987
  %v993 = vadd.f32 %v983, %v989
  %v994 = vmax.f32 %v992, 0.0
  %v995 = vmax.f32 %v993, 0.0
  %v997 = vsel %vm778, %v994, 0
  %v1000 = vsel %vm778, %v995, 0
  %1002 = vmatprep.subr.mxu0 0.0
  %1003 = vmatpush1.msra.mxu0 0.0
  %1004 = vmatprep.subr.mxu0 0.0
  %1005 = vmatpush1.msra.mxu0 0.0
  %1006 = vmatprep.subr.mxu0 0.0
  %1007 = vmatpush1.msra.mxu0 0.0
  %1008 = vmatprep.subr.mxu0 0.0
  %1009 = vmatpush1.msra.mxu0 0.0
  %1010 = vmatprep.subr.mxu0 0.0
  %1011 = vmatpush1.msra.mxu0 %v777
  %1012 = vmatprep.subr.mxu0 0.0
  %1013 = vmatpush1.msra.mxu0 %v776
  %1014 = vmatprep.subr.mxu0 0.0
  %1015 = vmatpush1.msra.mxu0 %v775
  %1016 = vmatprep.subr.mxu0 0.0
  %1017 = vmatpush1.msra.mxu0 %v774
  %1018 = vmatprep.subr.mxu0 0.0
  %1019 = vmatpush1.msra.mxu0 %v773
  %1020 = vmatprep.subr.mxu0 0.0
  %1021 = vmatpush1.msra.mxu0 %v772
  %1022 = vmatprep.subr.mxu0 0.0
  %1023 = vmatpush1.msra.mxu0 %v771
  %1024 = vmatprep.subr.mxu0 0.0
  %1025 = vmatpush1.msra.mxu0 %v770
  %1026 = vmatprep.subr.mxu0 0.0
  %1027 = vmatpush1.msra.mxu0 %v769
  %1028 = vmatprep.subr.mxu0 0.0
  %1029 = vmatpush1.msra.mxu0 %v768
  %1030 = vmatprep.subr.mxu0 0.0
  %1031 = vmatpush1.msra.mxu0 %v767
  %1032 = vmatprep.subr.mxu0 0.0
  %1033 = vmatpush1.msra.mxu0 %v766
  %1034 = vmatprep.subr.mxu0 0.0
  %1035 = vmatpush2.msra.mxu0 0.0
  %1036 = vmatprep.subr.mxu0 0.0
  %1037 = vmatpush2.msra.mxu0 0.0
  %1038 = vmatprep.subr.mxu0 0.0
  %1039 = vmatpush2.msra.mxu0 0.0
  %1040 = vmatprep.subr.mxu0 0.0
  %1041 = vmatpush2.msra.mxu0 0.0
  %1042 = vmatprep.subr.mxu0 0.0
  %1043 = vmatpush2.msra.mxu0 0.0
  %1044 = vmatprep.subr.mxu0 0.0
  %1045 = vmatpush2.msra.mxu0 0.0
  %1046 = vmatprep.subr.mxu0 0.0
  %1047 = vmatpush2.msra.mxu0 0.0
  %1048 = vmatprep.subr.mxu0 0.0
  %1049 = vmatpush2.msra.mxu0 0.0
  %1050 = vmatprep.subr.mxu0 0.0
  %1051 = vmatpush2.msra.mxu0 0.0
  %1052 = vmatprep.subr.mxu0 0.0
  %1053 = vmatpush2.msra.mxu0 0.0
  %1054 = vmatprep.subr.mxu0 0.0
  %1055 = vmatpush2.msra.mxu0 0.0
  %1056 = vmatprep.subr.mxu0 0.0
  %1057 = vmatpush2.msra.mxu0 0.0
  %1058 = vmatprep.subr.mxu0 0.0
  %1059 = vmatpush2.msra.mxu0 0.0
  %1060 = vmatprep.subr.mxu0 0.0
  %1061 = vmatpush2.msra.mxu0 0.0
  %1062 = vmatprep.subr.mxu0 0.0
  %1063 = vmatpush2.msra.mxu0 0.0
  %1064 = vmatprep.subr.mxu0 0.0
  %1065 = vmatpush2.msra.mxu0 0.0
  %1066 = vmatprep.mubr.f32.mxu0 0.0
  %1067 = vmatmul.mubr.f32.gmra.mxu0 %v997
  %v1068 = vpop.f32.mrf.mxu0
  %v1069 = vadd.f32 0.0, %v1068
  %v1070 = vpop.f32.mrf.mxu0
  %1071 = vmatprep.mubr.f32.mxu0 0.0
  %1072 = vmatmul.mubr.f32.gmra.mxu0 %v1000
  %v1073 = vpop.f32.mrf.mxu0
  %v1074 = vadd.f32 0.0, %v1073
  %v1075 = vpop.f32.mrf.mxu0
  %1076 = vdwg.mxu0
  %v1077 = vpack.c.bf16 %v1074, %v1069
  %1079 = vrot.lane.b32.xlu0 %v1077, 127
  %v1080 = vpop.permute.xlu0 %1079
  %1081 = vrot.lane.b32.xlu0 %v1077, 126
  %v1082 = vpop.permute.xlu0 %1081
  %1083 = vrot.lane.b32.xlu0 %v1077, 120
  %v1084 = vpop.permute.xlu0 %1083
  %1085 = vrot.lane.b32.xlu0 %v1077, 119
  %v1086 = vpop.permute.xlu0 %1085
  %1087 = vrot.lane.b32.xlu0 %v1077, 118
  %v1088 = vpop.permute.xlu0 %1087
  %1089 = vrot.lane.b32.xlu0 %v1077, 112
  %v1090 = vpop.permute.xlu0 %1089
  %1091 = vrot.lane.b32.xlu0 %v1077, 111
  %v1092 = vpop.permute.xlu0 %1091
  %1093 = vrot.lane.b32.xlu0 %v1077, 110
  %v1094 = vpop.permute.xlu0 %1093
  %v1095 = vld [vmem:[%s10] sm:$0xff]
  %v1096 = vld [vmem:[%s10 + $0x8] sm:$0xff]
  %v1099 = vunpack.c.l.b16 %v1095
  %v1100 = vunpack.c.h.b16 %v1095
  %v1101 = vunpack.c.l.b16 %v1096
  %v1102 = vunpack.c.h.b16 %v1096
  %v1103 = vpack.c.b16 %v1101, %v1099
  %v1104 = vpack.c.b16 %v1102, %v1100
  %1106 = vrot.lane.b32.xlu0 %v1077, 121
  %v1107 = vpop.permute.xlu0 %1106
  %1108 = vrot.lane.b32.xlu0 %v1080, 121
  %v1109 = vpop.permute.xlu0 %1108
  %1110 = vrot.lane.b32.xlu0 %v1082, 121
  %v1111 = vpop.permute.xlu0 %1110
  %1112 = vrot.lane.b32.xlu0 %v1084, 121
  %v1113 = vpop.permute.xlu0 %1112
  %1114 = vrot.lane.b32.xlu0 %v1086, 121
  %v1115 = vpop.permute.xlu0 %1114
  %1116 = vrot.lane.b32.xlu0 %v1088, 121
  %v1117 = vpop.permute.xlu0 %1116
  %1118 = vrot.lane.b32.xlu0 %v1090, 121
  %v1119 = vpop.permute.xlu0 %1118
  %1120 = vrot.lane.b32.xlu0 %v1092, 121
  %v1121 = vpop.permute.xlu0 %1120
  %1122 = vrot.lane.b32.xlu0 %v1094, 121
  %v1123 = vpop.permute.xlu0 %1122
  %v1134 = vsel %vm695, %v1104, 0
  %1136 = vmatprep.subr.bf16.mxu0 0
  %1137 = vmatpush1.bf16.msra.mxu0 %v1121
  %1138 = vmatprep.subr.bf16.mxu0 0
  %1139 = vmatpush1.bf16.msra.mxu0 %v1119
  %1140 = vmatprep.subr.bf16.mxu0 0
  %1141 = vmatpush1.bf16.msra.mxu0 %v1117
  %1142 = vmatprep.subr.bf16.mxu0 0
  %1143 = vmatpush1.bf16.msra.mxu0 %v1115
  %1144 = vmatprep.subr.bf16.mxu0 0
  %1145 = vmatpush1.bf16.msra.mxu0 %v1113
  %1146 = vmatprep.subr.bf16.mxu0 0
  %1147 = vmatpush1.bf16.msra.mxu0 %v1111
  %1148 = vmatprep.subr.bf16.mxu0 0
  %1149 = vmatpush1.bf16.msra.mxu0 %v1109
  %1150 = vmatprep.subr.bf16.mxu0 0
  %1151 = vmatpush1.bf16.msra.mxu0 %v1107
  %1152 = vmatprep.subr.bf16.mxu0 0
  %1153 = vmatpush2.bf16.msra.mxu0 0
  %1154 = vmatprep.subr.bf16.mxu0 0
  %1155 = vmatpush2.bf16.msra.mxu0 0
  %1156 = vmatprep.subr.bf16.mxu0 0
  %1157 = vmatpush2.bf16.msra.mxu0 0
  %1158 = vmatprep.subr.bf16.mxu0 0
  %1159 = vmatpush2.bf16.msra.mxu0 0
  %1160 = vmatprep.subr.bf16.mxu0 0
  %1161 = vmatpush2.bf16.msra.mxu0 0
  %1162 = vmatprep.subr.bf16.mxu0 0
  %1163 = vmatpush2.bf16.msra.mxu0 0
  %1164 = vmatprep.subr.bf16.mxu0 0
  %1165 = vmatpush2.bf16.msra.mxu0 0
  %1166 = vmatprep.subr.bf16.mxu0 0
  %1167 = vmatpush2.bf16.msra.mxu0 %v1123
  %1168 = vmatprep.mubr.bf16.mxu0 %v1134
  %1169 = vmatmul.mubr.bf16.gmra.mxu0 %v1103
  %v1170 = vpop.f32.mrf.mxu0
  %v1171 = vadd.f32 0.0, %v1170
  %v1172 = vpop.f32.mrf.mxu0
  %v1173 = vpop.f32.mrf.mxu0
  %v1174 = vadd.f32 0.0, %v1173
  %v1175 = vpop.f32.mrf.mxu0
  %1176 = vdwg.mxu0
  %v1177 = vld [vmem:[%s11] sm:$0xff]
  %v1178 = vld [vmem:[%s11 + $0x8] sm:$0xff]
  %1180 = vset.pattern.permute.xlu0 0
  %1181 = vperm.xlu0 %1180, %v1177
  %v1182 = vpop.permute.xlu0 %1181
  %1185 = vset.pattern.permute.xlu0 0
  %1186 = vperm.xlu0 %1185, %v1178
  %v1187 = vpop.permute.xlu0 %1186
  %v1189 = vmul.f32 %v1171, %v1182
  %v1190 = vmul.f32 %v1174, %v1187
  %1191 = vset.pattern.permute.xlu0 1
  %1192 = vperm.xlu0 %1191, %v1177
  %v1193 = vpop.permute.xlu0 %1192
  %1195 = vset.pattern.permute.xlu0 1
  %1196 = vperm.xlu0 %1195, %v1178
  %v1197 = vpop.permute.xlu0 %1196
  %v1199 = vadd.f32 %v1189, %v1193
  %v1200 = vadd.f32 %v1190, %v1197
  %v1201 = vmax.f32 %v1199, 0.0
  %v1202 = vmax.f32 %v1200, 0.0
  %v1204 = vsel %vm778, %v1201, 0
  %v1207 = vsel %vm778, %v1202, 0
  %1209 = vmatprep.subr.mxu0 0.0
  %1210 = vmatpush1.msra.mxu0 0.0
  %1211 = vmatprep.subr.mxu0 0.0
  %1212 = vmatpush1.msra.mxu0 0.0
  %1213 = vmatprep.subr.mxu0 0.0
  %1214 = vmatpush1.msra.mxu0 0.0
  %1215 = vmatprep.subr.mxu0 0.0
  %1216 = vmatpush1.msra.mxu0 0.0
  %1217 = vmatprep.subr.mxu0 0.0
  %1218 = vmatpush1.msra.mxu0 %v777
  %1219 = vmatprep.subr.mxu0 0.0
  %1220 = vmatpush1.msra.mxu0 %v776
  %1221 = vmatprep.subr.mxu0 0.0
  %1222 = vmatpush1.msra.mxu0 %v775
  %1223 = vmatprep.subr.mxu0 0.0
  %1224 = vmatpush1.msra.mxu0 %v774
  %1225 = vmatprep.subr.mxu0 0.0
  %1226 = vmatpush1.msra.mxu0 %v773
  %1227 = vmatprep.subr.mxu0 0.0
  %1228 = vmatpush1.msra.mxu0 %v772
  %1229 = vmatprep.subr.mxu0 0.0
  %1230 = vmatpush1.msra.mxu0 %v771
  %1231 = vmatprep.subr.mxu0 0.0
  %1232 = vmatpush1.msra.mxu0 %v770
  %1233 = vmatprep.subr.mxu0 0.0
  %1234 = vmatpush1.msra.mxu0 %v769
  %1235 = vmatprep.subr.mxu0 0.0
  %1236 = vmatpush1.msra.mxu0 %v768
  %1237 = vmatprep.subr.mxu0 0.0
  %1238 = vmatpush1.msra.mxu0 %v767
  %1239 = vmatprep.subr.mxu0 0.0
  %1240 = vmatpush1.msra.mxu0 %v766
  %1241 = vmatprep.subr.mxu0 0.0
  %1242 = vmatpush2.msra.mxu0 0.0
  %1243 = vmatprep.subr.mxu0 0.0
  %1244 = vmatpush2.msra.mxu0 0.0
  %1245 = vmatprep.subr.mxu0 0.0
  %1246 = vmatpush2.msra.mxu0 0.0
  %1247 = vmatprep.subr.mxu0 0.0
  %1248 = vmatpush2.msra.mxu0 0.0
  %1249 = vmatprep.subr.mxu0 0.0
  %1250 = vmatpush2.msra.mxu0 0.0
  %1251 = vmatprep.subr.mxu0 0.0
  %1252 = vmatpush2.msra.mxu0 0.0
  %1253 = vmatprep.subr.mxu0 0.0
  %1254 = vmatpush2.msra.mxu0 0.0
  %1255 = vmatprep.subr.mxu0 0.0
  %1256 = vmatpush2.msra.mxu0 0.0
  %1257 = vmatprep.subr.mxu0 0.0
  %1258 = vmatpush2.msra.mxu0 0.0
  %1259 = vmatprep.subr.mxu0 0.0
  %1260 = vmatpush2.msra.mxu0 0.0
  %1261 = vmatprep.subr.mxu0 0.0
  %1262 = vmatpush2.msra.mxu0 0.0
  %1263 = vmatprep.subr.mxu0 0.0
  %1264 = vmatpush2.msra.mxu0 0.0
  %1265 = vmatprep.subr.mxu0 0.0
  %1266 = vmatpush2.msra.mxu0 0.0
  %1267 = vmatprep.subr.mxu0 0.0
  %1268 = vmatpush2.msra.mxu0 0.0
  %1269 = vmatprep.subr.mxu0 0.0
  %1270 = vmatpush2.msra.mxu0 0.0
  %1271 = vmatprep.subr.mxu0 0.0
  %1272 = vmatpush2.msra.mxu0 0.0
  %1273 = vmatprep.mubr.f32.mxu0 0.0
  %1274 = vmatmul.mubr.f32.gmra.mxu0 %v1204
  %v1275 = vpop.f32.mrf.mxu0
  %v1276 = vadd.f32 0.0, %v1275
  %v1277 = vpop.f32.mrf.mxu0
  %1278 = vmatprep.mubr.f32.mxu0 0.0
  %1279 = vmatmul.mubr.f32.gmra.mxu0 %v1207
  %v1280 = vpop.f32.mrf.mxu0
  %v1281 = vadd.f32 0.0, %v1280
  %v1282 = vpop.f32.mrf.mxu0
  %1283 = vdwg.mxu0
  %v1284 = vpack.c.bf16 %v1281, %v1276
  %1286 = vrot.lane.b32.xlu0 %v1284, 127
  %v1287 = vpop.permute.xlu0 %1286
  %1288 = vrot.lane.b32.xlu0 %v1284, 126
  %v1289 = vpop.permute.xlu0 %1288
  %1290 = vrot.lane.b32.xlu0 %v1284, 120
  %v1291 = vpop.permute.xlu0 %1290
  %1292 = vrot.lane.b32.xlu0 %v1284, 119
  %v1293 = vpop.permute.xlu0 %1292
  %1294 = vrot.lane.b32.xlu0 %v1284, 118
  %v1295 = vpop.permute.xlu0 %1294
  %1296 = vrot.lane.b32.xlu0 %v1284, 112
  %v1297 = vpop.permute.xlu0 %1296
  %1298 = vrot.lane.b32.xlu0 %v1284, 111
  %v1299 = vpop.permute.xlu0 %1298
  %1300 = vrot.lane.b32.xlu0 %v1284, 110
  %v1301 = vpop.permute.xlu0 %1300
  %v1302 = vld [vmem:[%s12] sm:$0xff]
  %v1303 = vld [vmem:[%s12 + $0x8] sm:$0xff]
  %v1306 = vunpack.c.l.b16 %v1302
  %v1307 = vunpack.c.h.b16 %v1302
  %v1308 = vunpack.c.l.b16 %v1303
  %v1309 = vunpack.c.h.b16 %v1303
  %v1310 = vpack.c.b16 %v1308, %v1306
  %v1311 = vpack.c.b16 %v1309, %v1307
  %1313 = vrot.lane.b32.xlu0 %v1284, 121
  %v1314 = vpop.permute.xlu0 %1313
  %1315 = vrot.lane.b32.xlu0 %v1287, 121
  %v1316 = vpop.permute.xlu0 %1315
  %1317 = vrot.lane.b32.xlu0 %v1289, 121
  %v1318 = vpop.permute.xlu0 %1317
  %1319 = vrot.lane.b32.xlu0 %v1291, 121
  %v1320 = vpop.permute.xlu0 %1319
  %1321 = vrot.lane.b32.xlu0 %v1293, 121
  %v1322 = vpop.permute.xlu0 %1321
  %1323 = vrot.lane.b32.xlu0 %v1295, 121
  %v1324 = vpop.permute.xlu0 %1323
  %1325 = vrot.lane.b32.xlu0 %v1297, 121
  %v1326 = vpop.permute.xlu0 %1325
  %1327 = vrot.lane.b32.xlu0 %v1299, 121
  %v1328 = vpop.permute.xlu0 %1327
  %1329 = vrot.lane.b32.xlu0 %v1301, 121
  %v1330 = vpop.permute.xlu0 %1329
  %v1341 = vsel %vm695, %v1311, 0
  %1343 = vmatprep.subr.bf16.mxu0 0
  %1344 = vmatpush1.bf16.msra.mxu0 %v1328
  %1345 = vmatprep.subr.bf16.mxu0 0
  %1346 = vmatpush1.bf16.msra.mxu0 %v1326
  %1347 = vmatprep.subr.bf16.mxu0 0
  %1348 = vmatpush1.bf16.msra.mxu0 %v1324
  %1349 = vmatprep.subr.bf16.mxu0 0
  %1350 = vmatpush1.bf16.msra.mxu0 %v1322
  %1351 = vmatprep.subr.bf16.mxu0 0
  %1352 = vmatpush1.bf16.msra.mxu0 %v1320
  %1353 = vmatprep.subr.bf16.mxu0 0
  %1354 = vmatpush1.bf16.msra.mxu0 %v1318
  %1355 = vmatprep.subr.bf16.mxu0 0
  %1356 = vmatpush1.bf16.msra.mxu0 %v1316
  %1357 = vmatprep.subr.bf16.mxu0 0
  %1358 = vmatpush1.bf16.msra.mxu0 %v1314
  %1359 = vmatprep.subr.bf16.mxu0 0
  %1360 = vmatpush2.bf16.msra.mxu0 0
  %1361 = vmatprep.subr.bf16.mxu0 0
  %1362 = vmatpush2.bf16.msra.mxu0 0
  %1363 = vmatprep.subr.bf16.mxu0 0
  %1364 = vmatpush2.bf16.msra.mxu0 0
  %1365 = vmatprep.subr.bf16.mxu0 0
  %1366 = vmatpush2.bf16.msra.mxu0 0
  %1367 = vmatprep.subr.bf16.mxu0 0
  %1368 = vmatpush2.bf16.msra.mxu0 0
  %1369 = vmatprep.subr.bf16.mxu0 0
  %1370 = vmatpush2.bf16.msra.mxu0 0
  %1371 = vmatprep.subr.bf16.mxu0 0
  %1372 = vmatpush2.bf16.msra.mxu0 0
  %1373 = vmatprep.subr.bf16.mxu0 0
  %1374 = vmatpush2.bf16.msra.mxu0 %v1330
  %1375 = vmatprep.mubr.bf16.mxu0 %v1341
  %1376 = vmatmul.mubr.bf16.gmra.mxu0 %v1310
  %v1377 = vpop.f32.mrf.mxu0
  %v1378 = vadd.f32 0.0, %v1377
  %v1379 = vpop.f32.mrf.mxu0
  %v1380 = vpop.f32.mrf.mxu0
  %v1381 = vadd.f32 0.0, %v1380
  %v1382 = vpop.f32.mrf.mxu0
  %1383 = vdwg.mxu0
  %v1384 = vld [vmem:[%s13] sm:$0xff]
  %v1385 = vld [vmem:[%s13 + $0x8] sm:$0xff]
  %1387 = vset.pattern.permute.xlu0 0
  %1388 = vperm.xlu0 %1387, %v1384
  %v1389 = vpop.permute.xlu0 %1388
  %1392 = vset.pattern.permute.xlu0 0
  %1393 = vperm.xlu0 %1392, %v1385
  %v1394 = vpop.permute.xlu0 %1393
  %v1396 = vmul.f32 %v1378, %v1389
  %v1397 = vmul.f32 %v1381, %v1394
  %1398 = vset.pattern.permute.xlu0 1
  %1399 = vperm.xlu0 %1398, %v1384
  %v1400 = vpop.permute.xlu0 %1399
  %1402 = vset.pattern.permute.xlu0 1
  %1403 = vperm.xlu0 %1402, %v1385
  %v1404 = vpop.permute.xlu0 %1403
  %v1406 = vadd.f32 %v1396, %v1400
  %v1407 = vadd.f32 %v1397, %v1404
  %1410 = vrot.lane.b32.xlu0 %v1069, 112
  %v1411 = vpop.permute.xlu0 %1410
  %1412 = vrot.lane.b32.xlu0 %v1074, 112
  %v1413 = vpop.permute.xlu0 %1412
  %v1416 = vadd.f32 %v1406, %v1411
  %v1417 = vadd.f32 %v1407, %v1413
  %v1418 = vmax.f32 %v1416, 0.0
  %v1419 = vmax.f32 %v1417, 0.0
  %v1421 = vsel %vm778, %v1418, 0
  %v1424 = vsel %vm778, %v1419, 0
  %1426 = vmatprep.subr.mxu0 0.0
  %1427 = vmatpush1.msra.mxu0 0.0
  %1428 = vmatprep.subr.mxu0 0.0
  %1429 = vmatpush1.msra.mxu0 0.0
  %1430 = vmatprep.subr.mxu0 0.0
  %1431 = vmatpush1.msra.mxu0 0.0
  %1432 = vmatprep.subr.mxu0 0.0
  %1433 = vmatpush1.msra.mxu0 0.0
  %1434 = vmatprep.subr.mxu0 0.0
  %1435 = vmatpush1.msra.mxu0 %v777
  %1436 = vmatprep.subr.mxu0 0.0
  %1437 = vmatpush1.msra.mxu0 %v776
  %1438 = vmatprep.subr.mxu0 0.0
  %1439 = vmatpush1.msra.mxu0 %v775
  %1440 = vmatprep.subr.mxu0 0.0
  %1441 = vmatpush1.msra.mxu0 %v774
  %1442 = vmatprep.subr.mxu0 0.0
  %1443 = vmatpush1.msra.mxu0 %v773
  %1444 = vmatprep.subr.mxu0 0.0
  %1445 = vmatpush1.msra.mxu0 %v772
  %1446 = vmatprep.subr.mxu0 0.0
  %1447 = vmatpush1.msra.mxu0 %v771
  %1448 = vmatprep.subr.mxu0 0.0
  %1449 = vmatpush1.msra.mxu0 %v770
  %1450 = vmatprep.subr.mxu0 0.0
  %1451 = vmatpush1.msra.mxu0 %v769
  %1452 = vmatprep.subr.mxu0 0.0
  %1453 = vmatpush1.msra.mxu0 %v768
  %1454 = vmatprep.subr.mxu0 0.0
  %1455 = vmatpush1.msra.mxu0 %v767
  %1456 = vmatprep.subr.mxu0 0.0
  %1457 = vmatpush1.msra.mxu0 %v766
  %1458 = vmatprep.subr.mxu0 0.0
  %1459 = vmatpush2.msra.mxu0 0.0
  %1460 = vmatprep.subr.mxu0 0.0
  %1461 = vmatpush2.msra.mxu0 0.0
  %1462 = vmatprep.subr.mxu0 0.0
  %1463 = vmatpush2.msra.mxu0 0.0
  %1464 = vmatprep.subr.mxu0 0.0
  %1465 = vmatpush2.msra.mxu0 0.0
  %1466 = vmatprep.subr.mxu0 0.0
  %1467 = vmatpush2.msra.mxu0 0.0
  %1468 = vmatprep.subr.mxu0 0.0
  %1469 = vmatpush2.msra.mxu0 0.0
  %1470 = vmatprep.subr.mxu0 0.0
  %1471 = vmatpush2.msra.mxu0 0.0
  %1472 = vmatprep.subr.mxu0 0.0
  %1473 = vmatpush2.msra.mxu0 0.0
  %1474 = vmatprep.subr.mxu0 0.0
  %1475 = vmatpush2.msra.mxu0 0.0
  %1476 = vmatprep.subr.mxu0 0.0
  %1477 = vmatpush2.msra.mxu0 0.0
  %1478 = vmatprep.subr.mxu0 0.0
  %1479 = vmatpush2.msra.mxu0 0.0
  %1480 = vmatprep.subr.mxu0 0.0
  %1481 = vmatpush2.msra.mxu0 0.0
  %1482 = vmatprep.subr.mxu0 0.0
  %1483 = vmatpush2.msra.mxu0 0.0
  %1484 = vmatprep.subr.mxu0 0.0
  %1485 = vmatpush2.msra.mxu0 0.0
  %1486 = vmatprep.subr.mxu0 0.0
  %1487 = vmatpush2.msra.mxu0 0.0
  %1488 = vmatprep.subr.mxu0 0.0
  %1489 = vmatpush2.msra.mxu0 0.0
  %1490 = vmatprep.mubr.f32.mxu0 0.0
  %1491 = vmatmul.mubr.f32.gmra.mxu0 %v1421
  %v1492 = vpop.f32.mrf.mxu0
  %v1493 = vadd.f32 0.0, %v1492
  %v1494 = vpop.f32.mrf.mxu0
  %1495 = vmatprep.mubr.f32.mxu0 0.0
  %1496 = vmatmul.mubr.f32.gmra.mxu0 %v1424
  %v1497 = vpop.f32.mrf.mxu0
  %v1498 = vadd.f32 0.0, %v1497
  %v1499 = vpop.f32.mrf.mxu0
  %1500 = vdwg.mxu0
  %v1501 = vpack.c.bf16 %v1498, %v1493
  %1503 = vrot.lane.b32.xlu0 %v1501, 127
  %v1504 = vpop.permute.xlu0 %1503
  %1505 = vrot.lane.b32.xlu0 %v1501, 126
  %v1506 = vpop.permute.xlu0 %1505
  %1507 = vrot.lane.b32.xlu0 %v1501, 120
  %v1508 = vpop.permute.xlu0 %1507
  %1509 = vrot.lane.b32.xlu0 %v1501, 119
  %v1510 = vpop.permute.xlu0 %1509
  %1511 = vrot.lane.b32.xlu0 %v1501, 118
  %v1512 = vpop.permute.xlu0 %1511
  %1513 = vrot.lane.b32.xlu0 %v1501, 112
  %v1514 = vpop.permute.xlu0 %1513
  %1515 = vrot.lane.b32.xlu0 %v1501, 111
  %v1516 = vpop.permute.xlu0 %1515
  %1517 = vrot.lane.b32.xlu0 %v1501, 110
  %v1518 = vpop.permute.xlu0 %1517
  %v1519 = vld [vmem:[%s14] sm:$0xf]
  %v1520 = vld [vmem:[%s14 + $0x4] sm:$0xf]
  %v1521 = vld [vmem:[%s14 + $0x8] sm:$0xf]
  %v1522 = vld [vmem:[%s14 + $0xc] sm:$0xf]
  %v1523 = vld [vmem:[%s14 + $0x10] sm:$0xf]
  %v1524 = vld [vmem:[%s14 + $0x14] sm:$0xf]
  %v1525 = vld [vmem:[%s14 + $0x18] sm:$0xf]
  %v1526 = vld [vmem:[%s14 + $0x1c] sm:$0xf]
  %v1527 = vld [vmem:[%s14 + $0x20] sm:$0xf]
  %v1528 = vld [vmem:[%s14 + $0x24] sm:$0xf]
  %v1529 = vld [vmem:[%s14 + $0x28] sm:$0xf]
  %v1530 = vld [vmem:[%s14 + $0x2c] sm:$0xf]
  %1531 = vrot.lane.b32.xlu0 %v1501, 121
  %v1532 = vpop.permute.xlu0 %1531
  %1533 = vrot.lane.b32.xlu0 %v1504, 121
  %v1534 = vpop.permute.xlu0 %1533
  %1535 = vrot.lane.b32.xlu0 %v1506, 121
  %v1536 = vpop.permute.xlu0 %1535
  %1537 = vrot.lane.b32.xlu0 %v1508, 121
  %v1538 = vpop.permute.xlu0 %1537
  %1539 = vrot.lane.b32.xlu0 %v1510, 121
  %v1540 = vpop.permute.xlu0 %1539
  %1541 = vrot.lane.b32.xlu0 %v1512, 121
  %v1542 = vpop.permute.xlu0 %1541
  %1543 = vrot.lane.b32.xlu0 %v1514, 121
  %v1544 = vpop.permute.xlu0 %1543
  %1545 = vrot.lane.b32.xlu0 %v1516, 121
  %v1546 = vpop.permute.xlu0 %1545
  %1547 = vrot.lane.b32.xlu0 %v1518, 121
  %v1548 = vpop.permute.xlu0 %1547
  %v1561 = vunpack.c.l.b16 %v1519
  %v1562 = vunpack.c.l.b16 %v1520
  %v1563 = vunpack.c.l.b16 %v1521
  %v1564 = vunpack.c.l.b16 %v1522
  %v1565 = vunpack.c.l.b16 %v1523
  %v1566 = vunpack.c.l.b16 %v1524
  %v1567 = vunpack.c.l.b16 %v1525
  %v1568 = vunpack.c.l.b16 %v1526
  %v1569 = vunpack.c.l.b16 %v1527
  %v1570 = vunpack.c.l.b16 %v1528
  %v1571 = vunpack.c.l.b16 %v1529
  %v1572 = vunpack.c.l.b16 %v1530
  %v1573 = vpack.c.b16 %v1562, %v1561
  %v1574 = vpack.c.b16 %v1564, %v1563
  %v1575 = vpack.c.b16 %v1566, %v1565
  %v1576 = vpack.c.b16 %v1568, %v1567
  %v1577 = vpack.c.b16 %v1570, %v1569
  %v1578 = vpack.c.b16 %v1572, %v1571
  %v1586 = vsel %vm778, %v1532, 0
  %v1589 = vsel %vm778, %v1534, 0
  %v1592 = vsel %vm778, %v1536, 0
  %v1595 = vsel %vm778, %v1538, 0
  %v1598 = vsel %vm778, %v1540, 0
  %v1601 = vsel %vm778, %v1542, 0
  %v1604 = vsel %vm778, %v1544, 0
  %v1607 = vsel %vm778, %v1546, 0
  %v1610 = vsel %vm778, %v1548, 0
  %1612 = vmatprep.subr.bf16.mxu0 0
  %1613 = vmatpush1.bf16.msra.mxu0 0
  %1614 = vmatprep.subr.bf16.mxu0 0
  %1615 = vmatpush1.bf16.msra.mxu0 0
  %1616 = vmatprep.subr.bf16.mxu0 0
  %1617 = vmatpush1.bf16.msra.mxu0 %v1578
  %1618 = vmatprep.subr.bf16.mxu0 0
  %1619 = vmatpush1.bf16.msra.mxu0 %v1577
  %1620 = vmatprep.subr.bf16.mxu0 0
  %1621 = vmatpush1.bf16.msra.mxu0 %v1576
  %1622 = vmatprep.subr.bf16.mxu0 0
  %1623 = vmatpush1.bf16.msra.mxu0 %v1575
  %1624 = vmatprep.subr.bf16.mxu0 0
  %1625 = vmatpush1.bf16.msra.mxu0 %v1574
  %1626 = vmatprep.subr.bf16.mxu0 0
  %1627 = vmatpush1.bf16.msra.mxu0 %v1573
  %1628 = vmatprep.subr.bf16.mxu0 0
  %1629 = vmatpush2.bf16.msra.mxu0 0
  %1630 = vmatprep.subr.bf16.mxu0 0
  %1631 = vmatpush2.bf16.msra.mxu0 0
  %1632 = vmatprep.subr.bf16.mxu0 0
  %1633 = vmatpush2.bf16.msra.mxu0 0
  %1634 = vmatprep.subr.bf16.mxu0 0
  %1635 = vmatpush2.bf16.msra.mxu0 0
  %1636 = vmatprep.subr.bf16.mxu0 0
  %1637 = vmatpush2.bf16.msra.mxu0 0
  %1638 = vmatprep.subr.bf16.mxu0 0
  %1639 = vmatpush2.bf16.msra.mxu0 0
  %1640 = vmatprep.subr.bf16.mxu0 0
  %1641 = vmatpush2.bf16.msra.mxu0 0
  %1642 = vmatprep.subr.bf16.mxu0 0
  %1643 = vmatpush2.bf16.msra.mxu0 0
  %1644 = vmatprep.mubr.bf16.mxu0 0
  %1645 = vmatmul.mubr.bf16.gmra.mxu0 %v1586
  %v1646 = vpop.f32.mrf.mxu0
  %v1647 = vadd.f32 0.0, %v1646
  %v1648 = vpop.f32.mrf.mxu0
  %v1649 = vpop.f32.mrf.mxu0
  %v1650 = vadd.f32 0.0, %v1649
  %v1651 = vpop.f32.mrf.mxu0
  %1652 = vmatprep.mubr.bf16.mxu0 0
  %1653 = vmatmul.mubr.bf16.gmra.mxu0 %v1589
  %v1654 = vpop.f32.mrf.mxu0
  %v1655 = vadd.f32 0.0, %v1654
  %v1656 = vpop.f32.mrf.mxu0
  %v1657 = vpop.f32.mrf.mxu0
  %v1658 = vadd.f32 0.0, %v1657
  %v1659 = vpop.f32.mrf.mxu0
  %1660 = vmatprep.mubr.bf16.mxu0 0
  %1661 = vmatmul.mubr.bf16.gmra.mxu0 %v1592
  %v1662 = vpop.f32.mrf.mxu0
  %v1663 = vadd.f32 0.0, %v1662
  %v1664 = vpop.f32.mrf.mxu0
  %v1665 = vpop.f32.mrf.mxu0
  %v1666 = vadd.f32 0.0, %v1665
  %v1667 = vpop.f32.mrf.mxu0
  %1668 = vmatprep.mubr.bf16.mxu0 0
  %1669 = vmatmul.mubr.bf16.gmra.mxu0 %v1595
  %v1670 = vpop.f32.mrf.mxu0
  %v1671 = vadd.f32 0.0, %v1670
  %v1672 = vpop.f32.mrf.mxu0
  %v1673 = vpop.f32.mrf.mxu0
  %v1674 = vadd.f32 0.0, %v1673
  %v1675 = vpop.f32.mrf.mxu0
  %1676 = vmatprep.mubr.bf16.mxu0 0
  %1677 = vmatmul.mubr.bf16.gmra.mxu0 %v1598
  %v1678 = vpop.f32.mrf.mxu0
  %v1679 = vadd.f32 0.0, %v1678
  %v1680 = vpop.f32.mrf.mxu0
  %v1681 = vpop.f32.mrf.mxu0
  %v1682 = vadd.f32 0.0, %v1681
  %v1683 = vpop.f32.mrf.mxu0
  %1684 = vmatprep.mubr.bf16.mxu0 0
  %1685 = vmatmul.mubr.bf16.gmra.mxu0 %v1601
  %v1686 = vpop.f32.mrf.mxu0
  %v1687 = vadd.f32 0.0, %v1686
  %v1688 = vpop.f32.mrf.mxu0
  %v1689 = vpop.f32.mrf.mxu0
  %v1690 = vadd.f32 0.0, %v1689
  %v1691 = vpop.f32.mrf.mxu0
  %1692 = vmatprep.mubr.bf16.mxu0 0
  %1693 = vmatmul.mubr.bf16.gmra.mxu0 %v1604
  %v1694 = vpop.f32.mrf.mxu0
  %v1695 = vadd.f32 0.0, %v1694
  %v1696 = vpop.f32.mrf.mxu0
  %v1697 = vpop.f32.mrf.mxu0
  %v1698 = vadd.f32 0.0, %v1697
  %v1699 = vpop.f32.mrf.mxu0
  %1700 = vmatprep.mubr.bf16.mxu0 0
  %1701 = vmatmul.mubr.bf16.gmra.mxu0 %v1607
  %v1702 = vpop.f32.mrf.mxu0
  %v1703 = vadd.f32 0.0, %v1702
  %v1704 = vpop.f32.mrf.mxu0
  %v1705 = vpop.f32.mrf.mxu0
  %v1706 = vadd.f32 0.0, %v1705
  %v1707 = vpop.f32.mrf.mxu0
  %1708 = vmatprep.mubr.bf16.mxu0 0
  %1709 = vmatmul.mubr.bf16.gmra.mxu0 %v1610
  %v1710 = vpop.f32.mrf.mxu0
  %v1711 = vadd.f32 0.0, %v1710
  %v1712 = vpop.f32.mrf.mxu0
  %v1713 = vpop.f32.mrf.mxu0
  %v1714 = vadd.f32 0.0, %v1713
  %v1715 = vpop.f32.mrf.mxu0
  %1716 = vdwg.mxu0
  %v1717 = vpack.c.bf16 %v1650, %v1647
  %v1718 = vpack.c.bf16 %v1658, %v1655
  %v1719 = vpack.c.bf16 %v1666, %v1663
  %v1720 = vpack.c.bf16 %v1674, %v1671
  %v1721 = vpack.c.bf16 %v1682, %v1679
  %v1722 = vpack.c.bf16 %v1690, %v1687
  %v1723 = vpack.c.bf16 %v1698, %v1695
  %v1724 = vpack.c.bf16 %v1706, %v1703
  %v1725 = vpack.c.bf16 %v1714, %v1711
  %v1726 = vld [vmem:[%s18] sm:$0xff]
  %v1727 = vld [vmem:[%s18 + $0x8] sm:$0xff]
  %v1728 = vld [vmem:[%s18 + $0x10] sm:$0xff]
  %v1729 = vld [vmem:[%s18 + $0x18] sm:$0xff]
  %v1734 = vunpack.c.l.b16 %v1726
  %v1735 = vunpack.c.h.b16 %v1726
  %v1736 = vunpack.c.l.b16 %v1727
  %v1737 = vunpack.c.h.b16 %v1727
  %v1738 = vunpack.c.l.b16 %v1728
  %v1739 = vunpack.c.h.b16 %v1728
  %v1740 = vunpack.c.l.b16 %v1729
  %v1741 = vunpack.c.h.b16 %v1729
  %v1742 = vpack.c.b16 %v1736, %v1734
  %v1743 = vpack.c.b16 %v1737, %v1735
  %v1744 = vpack.c.b16 %v1740, %v1738
  %v1745 = vpack.c.b16 %v1741, %v1739
  %v1749 = vsel %vm695, %v1743, 0
  %v1752 = vsel %vm695, %v1745, 0
  %1754 = vmatprep.subr.bf16.mxu0 0
  %1755 = vmatpush1.bf16.msra.mxu0 %v1724
  %1756 = vmatprep.subr.bf16.mxu0 0
  %1757 = vmatpush1.bf16.msra.mxu0 %v1723
  %1758 = vmatprep.subr.bf16.mxu0 0
  %1759 = vmatpush1.bf16.msra.mxu0 %v1722
  %1760 = vmatprep.subr.bf16.mxu0 0
  %1761 = vmatpush1.bf16.msra.mxu0 %v1721
  %1762 = vmatprep.subr.bf16.mxu0 0
  %1763 = vmatpush1.bf16.msra.mxu0 %v1720
  %1764 = vmatprep.subr.bf16.mxu0 0
  %1765 = vmatpush1.bf16.msra.mxu0 %v1719
  %1766 = vmatprep.subr.bf16.mxu0 0
  %1767 = vmatpush1.bf16.msra.mxu0 %v1718
  %1768 = vmatprep.subr.bf16.mxu0 0
  %1769 = vmatpush1.bf16.msra.mxu0 %v1717
  %1770 = vmatprep.subr.bf16.mxu0 0
  %1771 = vmatpush2.bf16.msra.mxu0 0
  %1772 = vmatprep.subr.bf16.mxu0 0
  %1773 = vmatpush2.bf16.msra.mxu0 0
  %1774 = vmatprep.subr.bf16.mxu0 0
  %1775 = vmatpush2.bf16.msra.mxu0 0
  %1776 = vmatprep.subr.bf16.mxu0 0
  %1777 = vmatpush2.bf16.msra.mxu0 0
  %1778 = vmatprep.subr.bf16.mxu0 0
  %1779 = vmatpush2.bf16.msra.mxu0 0
  %1780 = vmatprep.subr.bf16.mxu0 0
  %1781 = vmatpush2.bf16.msra.mxu0 0
  %1782 = vmatprep.subr.bf16.mxu0 0
  %1783 = vmatpush2.bf16.msra.mxu0 0
  %1784 = vmatprep.subr.bf16.mxu0 0
  %1785 = vmatpush2.bf16.msra.mxu0 %v1725
  %1786 = vmatprep.mubr.bf16.mxu0 %v1749
  %1787 = vmatmul.mubr.bf16.gmra.mxu0 %v1742
  %v1788 = vpop.f32.mrf.mxu0
  %v1789 = vadd.f32 0.0, %v1788
  %v1790 = vpop.f32.mrf.mxu0
  %v1791 = vpop.f32.mrf.mxu0
  %v1792 = vadd.f32 0.0, %v1791
  %v1793 = vpop.f32.mrf.mxu0
  %1794 = vmatprep.mubr.bf16.mxu0 %v1752
  %1795 = vmatmul.mubr.bf16.gmra.mxu0 %v1744
  %v1796 = vpop.f32.mrf.mxu0
  %v1797 = vadd.f32 0.0, %v1796
  %v1798 = vpop.f32.mrf.mxu0
  %v1799 = vpop.f32.mrf.mxu0
  %v1800 = vadd.f32 0.0, %v1799
  %v1801 = vpop.f32.mrf.mxu0
  %1802 = vdwg.mxu0
  %v1803 = vld [vmem:[%s19] sm:$0xff]
  %v1804 = vld [vmem:[%s19 + $0x8] sm:$0xff]
  %v1805 = vld [vmem:[%s19 + $0x10] sm:$0xff]
  %v1806 = vld [vmem:[%s19 + $0x18] sm:$0xff]
  %1808 = vset.pattern.permute.xlu0 0
  %1809 = vperm.xlu0 %1808, %v1803
  %v1810 = vpop.permute.xlu0 %1809
  %1813 = vset.pattern.permute.xlu0 0
  %1814 = vperm.xlu0 %1813, %v1804
  %v1815 = vpop.permute.xlu0 %1814
  %1818 = vset.pattern.permute.xlu0 0
  %1819 = vperm.xlu0 %1818, %v1805
  %v1820 = vpop.permute.xlu0 %1819
  %1823 = vset.pattern.permute.xlu0 0
  %1824 = vperm.xlu0 %1823, %v1806
  %v1825 = vpop.permute.xlu0 %1824
  %v1827 = vmul.f32 %v1789, %v1810
  %v1828 = vmul.f32 %v1792, %v1815
  %v1829 = vmul.f32 %v1797, %v1820
  %v1830 = vmul.f32 %v1800, %v1825
  %1831 = vset.pattern.permute.xlu0 1
  %1832 = vperm.xlu0 %1831, %v1803
  %v1833 = vpop.permute.xlu0 %1832
  %1835 = vset.pattern.permute.xlu0 1
  %1836 = vperm.xlu0 %1835, %v1804
  %v1837 = vpop.permute.xlu0 %1836
  %1839 = vset.pattern.permute.xlu0 1
  %1840 = vperm.xlu0 %1839, %v1805
  %v1841 = vpop.permute.xlu0 %1840
  %1843 = vset.pattern.permute.xlu0 1
  %1844 = vperm.xlu0 %1843, %v1806
  %v1845 = vpop.permute.xlu0 %1844
  %v1847 = vadd.f32 %v1827, %v1833
  %v1848 = vadd.f32 %v1828, %v1837
  %v1849 = vadd.f32 %v1829, %v1841
  %v1850 = vadd.f32 %v1830, %v1845
  %v1851 = vmax.f32 %v1847, 0.0
  %v1852 = vmax.f32 %v1848, 0.0
  %v1853 = vmax.f32 %v1849, 0.0
  %v1854 = vmax.f32 %v1850, 0.0
  %v1856 = vsel %vm778, %v1514, 0
  %1858 = vmatprep.subr.bf16.mxu0 0
  %1859 = vmatpush1.bf16.msra.mxu0 0
  %1860 = vmatprep.subr.bf16.mxu0 0
  %1861 = vmatpush1.bf16.msra.mxu0 0
  %1862 = vmatprep.subr.bf16.mxu0 0
  %1863 = vmatpush1.bf16.msra.mxu0 %v1578
  %1864 = vmatprep.subr.bf16.mxu0 0
  %1865 = vmatpush1.bf16.msra.mxu0 %v1577
  %1866 = vmatprep.subr.bf16.mxu0 0
  %1867 = vmatpush1.bf16.msra.mxu0 %v1576
  %1868 = vmatprep.subr.bf16.mxu0 0
  %1869 = vmatpush1.bf16.msra.mxu0 %v1575
  %1870 = vmatprep.subr.bf16.mxu0 0
  %1871 = vmatpush1.bf16.msra.mxu0 %v1574
  %1872 = vmatprep.subr.bf16.mxu0 0
  %1873 = vmatpush1.bf16.msra.mxu0 %v1573
  %1874 = vmatprep.subr.bf16.mxu0 0
  %1875 = vmatpush2.bf16.msra.mxu0 0
  %1876 = vmatprep.subr.bf16.mxu0 0
  %1877 = vmatpush2.bf16.msra.mxu0 0
  %1878 = vmatprep.subr.bf16.mxu0 0
  %1879 = vmatpush2.bf16.msra.mxu0 0
  %1880 = vmatprep.subr.bf16.mxu0 0
  %1881 = vmatpush2.bf16.msra.mxu0 0
  %1882 = vmatprep.subr.bf16.mxu0 0
  %1883 = vmatpush2.bf16.msra.mxu0 0
  %1884 = vmatprep.subr.bf16.mxu0 0
  %1885 = vmatpush2.bf16.msra.mxu0 0
  %1886 = vmatprep.subr.bf16.mxu0 0
  %1887 = vmatpush2.bf16.msra.mxu0 0
  %1888 = vmatprep.subr.bf16.mxu0 0
  %1889 = vmatpush2.bf16.msra.mxu0 0
  %1890 = vmatprep.mubr.bf16.mxu0 0
  %1891 = vmatmul.mubr.bf16.gmra.mxu0 %v1856
  %v1892 = vpop.f32.mrf.mxu0
  %v1893 = vadd.f32 0.0, %v1892
  %v1894 = vpop.f32.mrf.mxu0
  %v1895 = vpop.f32.mrf.mxu0
  %v1896 = vadd.f32 0.0, %v1895
  %v1897 = vpop.f32.mrf.mxu0
  %1898 = vdwg.mxu0
  %v1899 = vpack.c.bf16 %v1896, %v1893
  %v1900 = vld [vmem:[%s22] sm:$0xf]
  %v1901 = vld [vmem:[%s22 + $0x4] sm:$0xf]
  %v1902 = vld [vmem:[%s22 + $0x8] sm:$0xf]
  %v1903 = vld [vmem:[%s22 + $0xc] sm:$0xf]
  %v1908 = vunpack.c.l.b16 %v1900
  %v1909 = vunpack.c.l.b16 %v1901
  %v1910 = vunpack.c.l.b16 %v1902
  %v1911 = vunpack.c.l.b16 %v1903
  %v1912 = vpack.c.b16 %v1909, %v1908
  %v1913 = vpack.c.b16 %v1911, %v1910
  %v1915 = vsel %vm695, %v1912, 0
  %v1918 = vsel %vm695, %v1913, 0
  %1920 = vmatprep.subr.bf16.mxu0 0
  %1921 = vmatpush1.bf16.msra.mxu0 0
  %1922 = vmatprep.subr.bf16.mxu0 0
  %1923 = vmatpush1.bf16.msra.mxu0 0
  %1924 = vmatprep.subr.bf16.mxu0 0
  %1925 = vmatpush1.bf16.msra.mxu0 0
  %1926 = vmatprep.subr.bf16.mxu0 0
  %1927 = vmatpush1.bf16.msra.mxu0 0
  %1928 = vmatprep.subr.bf16.mxu0 0
  %1929 = vmatpush1.bf16.msra.mxu0 0
  %1930 = vmatprep.subr.bf16.mxu0 0
  %1931 = vmatpush1.bf16.msra.mxu0 0
  %1932 = vmatprep.subr.bf16.mxu0 0
  %1933 = vmatpush1.bf16.msra.mxu0 0
  %1934 = vmatprep.subr.bf16.mxu0 0
  %1935 = vmatpush1.bf16.msra.mxu0 %v1899
  %1936 = vmatprep.subr.bf16.mxu0 0
  %1937 = vmatpush2.bf16.msra.mxu0 0
  %1938 = vmatprep.subr.bf16.mxu0 0
  %1939 = vmatpush2.bf16.msra.mxu0 0
  %1940 = vmatprep.subr.bf16.mxu0 0
  %1941 = vmatpush2.bf16.msra.mxu0 0
  %1942 = vmatprep.subr.bf16.mxu0 0
  %1943 = vmatpush2.bf16.msra.mxu0 0
  %1944 = vmatprep.subr.bf16.mxu0 0
  %1945 = vmatpush2.bf16.msra.mxu0 0
  %1946 = vmatprep.subr.bf16.mxu0 0
  %1947 = vmatpush2.bf16.msra.mxu0 0
  %1948 = vmatprep.subr.bf16.mxu0 0
  %1949 = vmatpush2.bf16.msra.mxu0 0
  %1950 = vmatprep.subr.bf16.mxu0 0
  %1951 = vmatpush2.bf16.msra.mxu0 0
  %1952 = vmatprep.mubr.bf16.mxu0 0
  %1953 = vmatmul.mubr.bf16.gmra.mxu0 %v1915
  %v1954 = vpop.f32.mrf.mxu0
  %v1955 = vadd.f32 0.0, %v1954
  %v1956 = vpop.f32.mrf.mxu0
  %v1957 = vpop.f32.mrf.mxu0
  %v1958 = vadd.f32 0.0, %v1957
  %v1959 = vpop.f32.mrf.mxu0
  %1960 = vmatprep.mubr.bf16.mxu0 0
  %1961 = vmatmul.mubr.bf16.gmra.mxu0 %v1918
  %v1962 = vpop.f32.mrf.mxu0
  %v1963 = vadd.f32 0.0, %v1962
  %v1964 = vpop.f32.mrf.mxu0
  %v1965 = vpop.f32.mrf.mxu0
  %v1966 = vadd.f32 0.0, %v1965
  %v1967 = vpop.f32.mrf.mxu0
  %1968 = vdwg.mxu0
  %v1969 = vld [vmem:[%s23] sm:$0xff]
  %v1970 = vld [vmem:[%s23 + $0x8] sm:$0xff]
  %v1971 = vld [vmem:[%s23 + $0x10] sm:$0xff]
  %v1972 = vld [vmem:[%s23 + $0x18] sm:$0xff]
  %1974 = vset.pattern.permute.xlu0 0
  %1975 = vperm.xlu0 %1974, %v1969
  %v1976 = vpop.permute.xlu0 %1975
  %1979 = vset.pattern.permute.xlu0 0
  %1980 = vperm.xlu0 %1979, %v1970
  %v1981 = vpop.permute.xlu0 %1980
  %1984 = vset.pattern.permute.xlu0 0
  %1985 = vperm.xlu0 %1984, %v1971
  %v1986 = vpop.permute.xlu0 %1985
  %1989 = vset.pattern.permute.xlu0 0
  %1990 = vperm.xlu0 %1989, %v1972
  %v1991 = vpop.permute.xlu0 %1990
  %v1993 = vmul.f32 %v1955, %v1976
  %v1994 = vmul.f32 %v1958, %v1981
  %v1995 = vmul.f32 %v1963, %v1986
  %v1996 = vmul.f32 %v1966, %v1991
  %1997 = vset.pattern.permute.xlu0 1
  %1998 = vperm.xlu0 %1997, %v1969
  %v1999 = vpop.permute.xlu0 %1998
  %2001 = vset.pattern.permute.xlu0 1
  %2002 = vperm.xlu0 %2001, %v1970
  %v2003 = vpop.permute.xlu0 %2002
  %2005 = vset.pattern.permute.xlu0 1
  %2006 = vperm.xlu0 %2005, %v1971
  %v2007 = vpop.permute.xlu0 %2006
  %2009 = vset.pattern.permute.xlu0 1
  %2010 = vperm.xlu0 %2009, %v1972
  %v2011 = vpop.permute.xlu0 %2010
  %v2013 = vadd.f32 %v1993, %v1999
  %v2014 = vadd.f32 %v1994, %v2003
  %v2015 = vadd.f32 %v1995, %v2007
  %v2016 = vadd.f32 %v1996, %v2011
  %v2017 = vld [vmem:[%s15] sm:$0xff]
  %vm2018 = vcmask 64512
  %v2020 = vsel %vm2018, %v1851, 0
  %v2023 = vsel %vm2018, %v1852, 0
  %v2026 = vsel %vm2018, %v1853, 0
  %v2029 = vsel %vm2018, %v1854, 0
  %2031 = vmatprep.subr.mxu0 0.0
  %2032 = vmatpush1.msra.mxu0 0.0
  %2033 = vmatprep.subr.mxu0 0.0
  %2034 = vmatpush1.msra.mxu0 0.0
  %2035 = vmatprep.subr.mxu0 0.0
  %2036 = vmatpush1.msra.mxu0 0.0
  %2037 = vmatprep.subr.mxu0 0.0
  %2038 = vmatpush1.msra.mxu0 0.0
  %2039 = vmatprep.subr.mxu0 0.0
  %2040 = vmatpush1.msra.mxu0 0.0
  %2041 = vmatprep.subr.mxu0 0.0
  %2042 = vmatpush1.msra.mxu0 0.0
  %2043 = vmatprep.subr.mxu0 0.0
  %2044 = vmatpush1.msra.mxu0 0.0
  %2045 = vmatprep.subr.mxu0 0.0
  %2046 = vmatpush1.msra.mxu0 0.0
  %2047 = vmatprep.subr.mxu0 0.0
  %2048 = vmatpush1.msra.mxu0 0.0
  %2049 = vmatprep.subr.mxu0 0.0
  %2050 = vmatpush1.msra.mxu0 0.0
  %2051 = vmatprep.subr.mxu0 0.0
  %2052 = vmatpush1.msra.mxu0 0.0
  %2053 = vmatprep.subr.mxu0 0.0
  %2054 = vmatpush1.msra.mxu0 0.0
  %2055 = vmatprep.subr.mxu0 0.0
  %2056 = vmatpush1.msra.mxu0 0.0
  %2057 = vmatprep.subr.mxu0 0.0
  %2058 = vmatpush1.msra.mxu0 0.0
  %2059 = vmatprep.subr.mxu0 0.0
  %2060 = vmatpush1.msra.mxu0 0.0
  %2061 = vmatprep.subr.mxu0 0.0
  %2062 = vmatpush1.msra.mxu0 %v2017
  %2063 = vmatprep.subr.mxu0 0.0
  %2064 = vmatpush2.msra.mxu0 0.0
  %2065 = vmatprep.subr.mxu0 0.0
  %2066 = vmatpush2.msra.mxu0 0.0
  %2067 = vmatprep.subr.mxu0 0.0
  %2068 = vmatpush2.msra.mxu0 0.0
  %2069 = vmatprep.subr.mxu0 0.0
  %2070 = vmatpush2.msra.mxu0 0.0
  %2071 = vmatprep.subr.mxu0 0.0
  %2072 = vmatpush2.msra.mxu0 0.0
  %2073 = vmatprep.subr.mxu0 0.0
  %2074 = vmatpush2.msra.mxu0 0.0
  %2075 = vmatprep.subr.mxu0 0.0
  %2076 = vmatpush2.msra.mxu0 0.0
  %2077 = vmatprep.subr.mxu0 0.0
  %2078 = vmatpush2.msra.mxu0 0.0
  %2079 = vmatprep.subr.mxu0 0.0
  %2080 = vmatpush2.msra.mxu0 0.0
  %2081 = vmatprep.subr.mxu0 0.0
  %2082 = vmatpush2.msra.mxu0 0.0
  %2083 = vmatprep.subr.mxu0 0.0
  %2084 = vmatpush2.msra.mxu0 0.0
  %2085 = vmatprep.subr.mxu0 0.0
  %2086 = vmatpush2.msra.mxu0 0.0
  %2087 = vmatprep.subr.mxu0 0.0
  %2088 = vmatpush2.msra.mxu0 0.0
  %2089 = vmatprep.subr.mxu0 0.0
  %2090 = vmatpush2.msra.mxu0 0.0
  %2091 = vmatprep.subr.mxu0 0.0
  %2092 = vmatpush2.msra.mxu0 0.0
  %2093 = vmatprep.subr.mxu0 0.0
  %2094 = vmatpush2.msra.mxu0 0.0
  %2095 = vmatprep.mubr.f32.mxu0 0.0
  %2096 = vmatmul.mubr.f32.gmra.mxu0 %v2020
  %v2097 = vpop.f32.mrf.mxu0
  %v2098 = vadd.f32 0.0, %v2097
  %v2099 = vpop.f32.mrf.mxu0
  %2100 = vmatprep.mubr.f32.mxu0 0.0
  %2101 = vmatmul.mubr.f32.gmra.mxu0 %v2023
  %v2102 = vpop.f32.mrf.mxu0
  %v2103 = vadd.f32 0.0, %v2102
  %v2104 = vpop.f32.mrf.mxu0
  %2105 = vmatprep.mubr.f32.mxu0 0.0
  %2106 = vmatmul.mubr.f32.gmra.mxu0 %v2026
  %v2107 = vpop.f32.mrf.mxu0
  %v2108 = vadd.f32 0.0, %v2107
  %v2109 = vpop.f32.mrf.mxu0
  %2110 = vmatprep.mubr.f32.mxu0 0.0
  %2111 = vmatmul.mubr.f32.gmra.mxu0 %v2029
  %v2112 = vpop.f32.mrf.mxu0
  %v2113 = vadd.f32 0.0, %v2112
  %v2114 = vpop.f32.mrf.mxu0
  %2115 = vdwg.mxu0
  %v2116 = vpack.c.bf16 %v2103, %v2098
  %v2117 = vpack.c.bf16 %v2113, %v2108
  %2120 = vrot.lane.b32.xlu0 %v2116, 127
  %v2121 = vpop.permute.xlu0 %2120
  %2122 = vrot.lane.b32.xlu0 %v2117, 127
  %v2123 = vpop.permute.xlu0 %2122
  %2124 = vrot.lane.b32.xlu0 %v2116, 126
  %v2125 = vpop.permute.xlu0 %2124
  %2126 = vrot.lane.b32.xlu0 %v2117, 126
  %v2127 = vpop.permute.xlu0 %2126
  %2128 = vrot.lane.b32.xlu0 %v2116, 120
  %v2129 = vpop.permute.xlu0 %2128
  %2130 = vrot.lane.b32.xlu0 %v2117, 120
  %v2131 = vpop.permute.xlu0 %2130
  %2132 = vrot.lane.b32.xlu0 %v2116, 119
  %v2133 = vpop.permute.xlu0 %2132
  %2134 = vrot.lane.b32.xlu0 %v2117, 119
  %v2135 = vpop.permute.xlu0 %2134
  %2136 = vrot.lane.b32.xlu0 %v2116, 118
  %v2137 = vpop.permute.xlu0 %2136
  %2138 = vrot.lane.b32.xlu0 %v2117, 118
  %v2139 = vpop.permute.xlu0 %2138
  %2140 = vrot.lane.b32.xlu0 %v2116, 112
  %v2141 = vpop.permute.xlu0 %2140
  %2142 = vrot.lane.b32.xlu0 %v2117, 112
  %v2143 = vpop.permute.xlu0 %2142
  %2144 = vrot.lane.b32.xlu0 %v2116, 111
  %v2145 = vpop.permute.xlu0 %2144
  %2146 = vrot.lane.b32.xlu0 %v2117, 111
  %v2147 = vpop.permute.xlu0 %2146
  %2148 = vrot.lane.b32.xlu0 %v2116, 110
  %v2149 = vpop.permute.xlu0 %2148
  %2150 = vrot.lane.b32.xlu0 %v2117, 110
  %v2151 = vpop.permute.xlu0 %2150
  %v2152 = vld [vmem:[%s20] sm:$0xff]
  %v2153 = vld [vmem:[%s20 + $0x8] sm:$0xf]
  %v2154 = vld [vmem:[%s20 + $0xc] sm:$0xff]
  %v2155 = vld [vmem:[%s20 + $0x14] sm:$0xf]
  %v2156 = vld [vmem:[%s20 + $0x18] sm:$0xff]
  %v2157 = vld [vmem:[%s20 + $0x20] sm:$0xf]
  %v2158 = vld [vmem:[%s20 + $0x24] sm:$0xff]
  %v2159 = vld [vmem:[%s20 + $0x2c] sm:$0xf]
  %v2168 = vunpack.c.l.b16 %v2152
  %v2169 = vunpack.c.h.b16 %v2152
  %v2170 = vunpack.c.l.b16 %v2153
  %v2171 = vunpack.c.l.b16 %v2154
  %v2172 = vunpack.c.h.b16 %v2154
  %v2173 = vunpack.c.l.b16 %v2155
  %v2174 = vunpack.c.l.b16 %v2156
  %v2175 = vunpack.c.h.b16 %v2156
  %v2176 = vunpack.c.l.b16 %v2157
  %v2177 = vunpack.c.l.b16 %v2158
  %v2178 = vunpack.c.h.b16 %v2158
  %v2179 = vunpack.c.l.b16 %v2159
  %v2180 = vpack.c.b16 %v2171, %v2168
  %v2181 = vpack.c.b16 %v2172, %v2169
  %v2182 = vpack.c.b16 %v2173, %v2170
  %v2183 = vpack.c.b16 %v2177, %v2174
  %v2184 = vpack.c.b16 %v2178, %v2175
  %v2185 = vpack.c.b16 %v2179, %v2176
  %2190 = vrot.lane.b32.xlu0 %v2116, 121
  %v2191 = vpop.permute.xlu0 %2190
  %2192 = vrot.lane.b32.xlu0 %v2117, 121
  %v2193 = vpop.permute.xlu0 %2192
  %2194 = vrot.lane.b32.xlu0 %v2121, 121
  %v2195 = vpop.permute.xlu0 %2194
  %2196 = vrot.lane.b32.xlu0 %v2123, 121
  %v2197 = vpop.permute.xlu0 %2196
  %2198 = vrot.lane.b32.xlu0 %v2125, 121
  %v2199 = vpop.permute.xlu0 %2198
  %2200 = vrot.lane.b32.xlu0 %v2127, 121
  %v2201 = vpop.permute.xlu0 %2200
  %2202 = vrot.lane.b32.xlu0 %v2129, 121
  %v2203 = vpop.permute.xlu0 %2202
  %2204 = vrot.lane.b32.xlu0 %v2131, 121
  %v2205 = vpop.permute.xlu0 %2204
  %2206 = vrot.lane.b32.xlu0 %v2133, 121
  %v2207 = vpop.permute.xlu0 %2206
  %2208 = vrot.lane.b32.xlu0 %v2135, 121
  %v2209 = vpop.permute.xlu0 %2208
  %2210 = vrot.lane.b32.xlu0 %v2137, 121
  %v2211 = vpop.permute.xlu0 %2210
  %2212 = vrot.lane.b32.xlu0 %v2139, 121
  %v2213 = vpop.permute.xlu0 %2212
  %2214 = vrot.lane.b32.xlu0 %v2141, 121
  %v2215 = vpop.permute.xlu0 %2214
  %2216 = vrot.lane.b32.xlu0 %v2143, 121
  %v2217 = vpop.permute.xlu0 %2216
  %2218 = vrot.lane.b32.xlu0 %v2145, 121
  %v2219 = vpop.permute.xlu0 %2218
  %2220 = vrot.lane.b32.xlu0 %v2147, 121
  %v2221 = vpop.permute.xlu0 %2220
  %2222 = vrot.lane.b32.xlu0 %v2149, 121
  %v2223 = vpop.permute.xlu0 %2222
  %2224 = vrot.lane.b32.xlu0 %v2151, 121
  %v2225 = vpop.permute.xlu0 %2224
  %v2245 = vsel %vm557, %v2182, 0
  %v2248 = vsel %vm557, %v2185, 0
  %2250 = vmatprep.subr.bf16.mxu0 0
  %2251 = vmatpush1.bf16.msra.mxu0 %v2205
  %2252 = vmatprep.subr.bf16.mxu0 0
  %2253 = vmatpush1.bf16.msra.mxu0 %v2203
  %2254 = vmatprep.subr.bf16.mxu0 0
  %2255 = vmatpush1.bf16.msra.mxu0 %v2201
  %2256 = vmatprep.subr.bf16.mxu0 0
  %2257 = vmatpush1.bf16.msra.mxu0 %v2199
  %2258 = vmatprep.subr.bf16.mxu0 0
  %2259 = vmatpush1.bf16.msra.mxu0 %v2197
  %2260 = vmatprep.subr.bf16.mxu0 0
  %2261 = vmatpush1.bf16.msra.mxu0 %v2195
  %2262 = vmatprep.subr.bf16.mxu0 0
  %2263 = vmatpush1.bf16.msra.mxu0 %v2193
  %2264 = vmatprep.subr.bf16.mxu0 0
  %2265 = vmatpush1.bf16.msra.mxu0 %v2191
  %2266 = vmatprep.subr.bf16.mxu0 0
  %2267 = vmatpush2.bf16.msra.mxu0 %v2221
  %2268 = vmatprep.subr.bf16.mxu0 0
  %2269 = vmatpush2.bf16.msra.mxu0 %v2219
  %2270 = vmatprep.subr.bf16.mxu0 0
  %2271 = vmatpush2.bf16.msra.mxu0 %v2217
  %2272 = vmatprep.subr.bf16.mxu0 0
  %2273 = vmatpush2.bf16.msra.mxu0 %v2215
  %2274 = vmatprep.subr.bf16.mxu0 0
  %2275 = vmatpush2.bf16.msra.mxu0 %v2213
  %2276 = vmatprep.subr.bf16.mxu0 0
  %2277 = vmatpush2.bf16.msra.mxu0 %v2211
  %2278 = vmatprep.subr.bf16.mxu0 0
  %2279 = vmatpush2.bf16.msra.mxu0 %v2209
  %2280 = vmatprep.subr.bf16.mxu0 0
  %2281 = vmatpush2.bf16.msra.mxu0 %v2207
  %2282 = vmatprep.mubr.bf16.mxu0 %v2181
  %2283 = vmatmul.mubr.bf16.gmra.mxu0 %v2180
  %v2284 = vpop.f32.mrf.mxu0
  %v2285 = vadd.f32 0.0, %v2284
  %v2286 = vpop.f32.mrf.mxu0
  %v2287 = vpop.f32.mrf.mxu0
  %v2288 = vadd.f32 0.0, %v2287
  %v2289 = vpop.f32.mrf.mxu0
  %2290 = vmatprep.mubr.bf16.mxu0 %v2184
  %2291 = vmatmul.mubr.bf16.gmra.mxu0 %v2183
  %v2292 = vpop.f32.mrf.mxu0
  %v2293 = vadd.f32 0.0, %v2292
  %v2294 = vpop.f32.mrf.mxu0
  %v2295 = vpop.f32.mrf.mxu0
  %v2296 = vadd.f32 0.0, %v2295
  %v2297 = vpop.f32.mrf.mxu0
  %2298 = vdwg.mxu0
  %2299 = vmatprep.subr.bf16.mxu0 0
  %2300 = vmatpush1.bf16.msra.mxu0 0
  %2301 = vmatprep.subr.bf16.mxu0 0
  %2302 = vmatpush1.bf16.msra.mxu0 0
  %2303 = vmatprep.subr.bf16.mxu0 0
  %2304 = vmatpush1.bf16.msra.mxu0 0
  %2305 = vmatprep.subr.bf16.mxu0 0
  %2306 = vmatpush1.bf16.msra.mxu0 0
  %2307 = vmatprep.subr.bf16.mxu0 0
  %2308 = vmatpush1.bf16.msra.mxu0 0
  %2309 = vmatprep.subr.bf16.mxu0 0
  %2310 = vmatpush1.bf16.msra.mxu0 0
  %2311 = vmatprep.subr.bf16.mxu0 0
  %2312 = vmatpush1.bf16.msra.mxu0 %v2225
  %2313 = vmatprep.subr.bf16.mxu0 0
  %2314 = vmatpush1.bf16.msra.mxu0 %v2223
  %2315 = vmatprep.subr.bf16.mxu0 0
  %2316 = vmatpush2.bf16.msra.mxu0 0
  %2317 = vmatprep.subr.bf16.mxu0 0
  %2318 = vmatpush2.bf16.msra.mxu0 0
  %2319 = vmatprep.subr.bf16.mxu0 0
  %2320 = vmatpush2.bf16.msra.mxu0 0
  %2321 = vmatprep.subr.bf16.mxu0 0
  %2322 = vmatpush2.bf16.msra.mxu0 0
  %2323 = vmatprep.subr.bf16.mxu0 0
  %2324 = vmatpush2.bf16.msra.mxu0 0
  %2325 = vmatprep.subr.bf16.mxu0 0
  %2326 = vmatpush2.bf16.msra.mxu0 0
  %2327 = vmatprep.subr.bf16.mxu0 0
  %2328 = vmatpush2.bf16.msra.mxu0 0
  %2329 = vmatprep.subr.bf16.mxu0 0
  %2330 = vmatpush2.bf16.msra.mxu0 0
  %2331 = vmatprep.mubr.bf16.mxu0 0
  %2332 = vmatmul.mubr.bf16.gmra.mxu0 %v2245
  %v2333 = vpop.f32.mrf.mxu0
  %v2334 = vadd.f32 %v2285, %v2333
  %v2335 = vpop.f32.mrf.mxu0
  %v2336 = vpop.f32.mrf.mxu0
  %v2337 = vadd.f32 %v2288, %v2336
  %v2338 = vpop.f32.mrf.mxu0
  %2339 = vmatprep.mubr.bf16.mxu0 0
  %2340 = vmatmul.mubr.bf16.gmra.mxu0 %v2248
  %v2341 = vpop.f32.mrf.mxu0
  %v2342 = vadd.f32 %v2293, %v2341
  %v2343 = vpop.f32.mrf.mxu0
  %v2344 = vpop.f32.mrf.mxu0
  %v2345 = vadd.f32 %v2296, %v2344
  %v2346 = vpop.f32.mrf.mxu0
  %2347 = vdwg.mxu0
  %v2348 = vld [vmem:[%s21] sm:$0xff]
  %v2349 = vld [vmem:[%s21 + $0x8] sm:$0xff]
  %v2350 = vld [vmem:[%s21 + $0x10] sm:$0xff]
  %v2351 = vld [vmem:[%s21 + $0x18] sm:$0xff]
  %2353 = vset.pattern.permute.xlu0 0
  %2354 = vperm.xlu0 %2353, %v2348
  %v2355 = vpop.permute.xlu0 %2354
  %2358 = vset.pattern.permute.xlu0 0
  %2359 = vperm.xlu0 %2358, %v2349
  %v2360 = vpop.permute.xlu0 %2359
  %2363 = vset.pattern.permute.xlu0 0
  %2364 = vperm.xlu0 %2363, %v2350
  %v2365 = vpop.permute.xlu0 %2364
  %2368 = vset.pattern.permute.xlu0 0
  %2369 = vperm.xlu0 %2368, %v2351
  %v2370 = vpop.permute.xlu0 %2369
  %v2372 = vmul.f32 %v2334, %v2355
  %v2373 = vmul.f32 %v2337, %v2360
  %v2374 = vmul.f32 %v2342, %v2365
  %v2375 = vmul.f32 %v2345, %v2370
  %2376 = vset.pattern.permute.xlu0 1
  %2377 = vperm.xlu0 %2376, %v2348
  %v2378 = vpop.permute.xlu0 %2377
  %2380 = vset.pattern.permute.xlu0 1
  %2381 = vperm.xlu0 %2380, %v2349
  %v2382 = vpop.permute.xlu0 %2381
  %2384 = vset.pattern.permute.xlu0 1
  %2385 = vperm.xlu0 %2384, %v2350
  %v2386 = vpop.permute.xlu0 %2385
  %2388 = vset.pattern.permute.xlu0 1
  %2389 = vperm.xlu0 %2388, %v2351
  %v2390 = vpop.permute.xlu0 %2389
  %v2392 = vadd.f32 %v2372, %v2378
  %v2393 = vadd.f32 %v2373, %v2382
  %v2394 = vadd.f32 %v2374, %v2386
  %v2395 = vadd.f32 %v2375, %v2390
  %v2397 = vsel %vm2018, %v2013, 0
  %v2400 = vsel %vm2018, %v2014, 0
  %v2403 = vsel %vm2018, %v2015, 0
  %v2406 = vsel %vm2018, %v2016, 0
  %2408 = vmatprep.subr.mxu0 0.0
  %2409 = vmatpush1.msra.mxu0 0.0
  %2410 = vmatprep.subr.mxu0 0.0
  %2411 = vmatpush1.msra.mxu0 0.0
  %2412 = vmatprep.subr.mxu0 0.0
  %2413 = vmatpush1.msra.mxu0 0.0
  %2414 = vmatprep.subr.mxu0 0.0
  %2415 = vmatpush1.msra.mxu0 0.0
  %2416 = vmatprep.subr.mxu0 0.0
  %2417 = vmatpush1.msra.mxu0 0.0
  %2418 = vmatprep.subr.mxu0 0.0
  %2419 = vmatpush1.msra.mxu0 0.0
  %2420 = vmatprep.subr.mxu0 0.0
  %2421 = vmatpush1.msra.mxu0 0.0
  %2422 = vmatprep.subr.mxu0 0.0
  %2423 = vmatpush1.msra.mxu0 0.0
  %2424 = vmatprep.subr.mxu0 0.0
  %2425 = vmatpush1.msra.mxu0 0.0
  %2426 = vmatprep.subr.mxu0 0.0
  %2427 = vmatpush1.msra.mxu0 0.0
  %2428 = vmatprep.subr.mxu0 0.0
  %2429 = vmatpush1.msra.mxu0 0.0
  %2430 = vmatprep.subr.mxu0 0.0
  %2431 = vmatpush1.msra.mxu0 0.0
  %2432 = vmatprep.subr.mxu0 0.0
  %2433 = vmatpush1.msra.mxu0 0.0
  %2434 = vmatprep.subr.mxu0 0.0
  %2435 = vmatpush1.msra.mxu0 0.0
  %2436 = vmatprep.subr.mxu0 0.0
  %2437 = vmatpush1.msra.mxu0 0.0
  %2438 = vmatprep.subr.mxu0 0.0
  %2439 = vmatpush1.msra.mxu0 %v2017
  %2440 = vmatprep.subr.mxu0 0.0
  %2441 = vmatpush2.msra.mxu0 0.0
  %2442 = vmatprep.subr.mxu0 0.0
  %2443 = vmatpush2.msra.mxu0 0.0
  %2444 = vmatprep.subr.mxu0 0.0
  %2445 = vmatpush2.msra.mxu0 0.0
  %2446 = vmatprep.subr.mxu0 0.0
  %2447 = vmatpush2.msra.mxu0 0.0
  %2448 = vmatprep.subr.mxu0 0.0
  %2449 = vmatpush2.msra.mxu0 0.0
  %2450 = vmatprep.subr.mxu0 0.0
  %2451 = vmatpush2.msra.mxu0 0.0
  %2452 = vmatprep.subr.mxu0 0.0
  %2453 = vmatpush2.msra.mxu0 0.0
  %2454 = vmatprep.subr.mxu0 0.0
  %2455 = vmatpush2.msra.mxu0 0.0
  %2456 = vmatprep.subr.mxu0 0.0
  %2457 = vmatpush2.msra.mxu0 0.0
  %2458 = vmatprep.subr.mxu0 0.0
  %2459 = vmatpush2.msra.mxu0 0.0
  %2460 = vmatprep.subr.mxu0 0.0
  %2461 = vmatpush2.msra.mxu0 0.0
  %2462 = vmatprep.subr.mxu0 0.0
  %2463 = vmatpush2.msra.mxu0 0.0
  %2464 = vmatprep.subr.mxu0 0.0
  %2465 = vmatpush2.msra.mxu0 0.0
  %2466 = vmatprep.subr.mxu0 0.0
  %2467 = vmatpush2.msra.mxu0 0.0
  %2468 = vmatprep.subr.mxu0 0.0
  %2469 = vmatpush2.msra.mxu0 0.0
  %2470 = vmatprep.subr.mxu0 0.0
  %2471 = vmatpush2.msra.mxu0 0.0
  %2472 = vmatprep.mubr.f32.mxu0 0.0
  %2473 = vmatmul.mubr.f32.gmra.mxu0 %v2397
  %v2474 = vpop.f32.mrf.mxu0
  %v2475 = vadd.f32 0.0, %v2474
  %v2476 = vpop.f32.mrf.mxu0
  %2477 = vmatprep.mubr.f32.mxu0 0.0
  %2478 = vmatmul.mubr.f32.gmra.mxu0 %v2400
  %v2479 = vpop.f32.mrf.mxu0
  %v2480 = vadd.f32 0.0, %v2479
  %v2481 = vpop.f32.mrf.mxu0
  %2482 = vmatprep.mubr.f32.mxu0 0.0
  %2483 = vmatmul.mubr.f32.gmra.mxu0 %v2403
  %v2484 = vpop.f32.mrf.mxu0
  %v2485 = vadd.f32 0.0, %v2484
  %v2486 = vpop.f32.mrf.mxu0
  %2487 = vmatprep.mubr.f32.mxu0 0.0
  %2488 = vmatmul.mubr.f32.gmra.mxu0 %v2406
  %v2489 = vpop.f32.mrf.mxu0
  %v2490 = vadd.f32 0.0, %v2489
  %v2491 = vpop.f32.mrf.mxu0
  %2492 = vdwg.mxu0
  %2497 = vrot.lane.b32.xlu0 %v2475, 112
  %v2498 = vpop.permute.xlu0 %2497
  %2499 = vrot.lane.b32.xlu0 %v2480, 112
  %v2500 = vpop.permute.xlu0 %2499
  %2501 = vrot.lane.b32.xlu0 %v2485, 112
  %v2502 = vpop.permute.xlu0 %2501
  %2503 = vrot.lane.b32.xlu0 %v2490, 112
  %v2504 = vpop.permute.xlu0 %2503
  %v2509 = vadd.f32 %v2392, %v2498
  %v2510 = vadd.f32 %v2393, %v2500
  %v2511 = vadd.f32 %v2394, %v2502
  %v2512 = vadd.f32 %v2395, %v2504
  %v2513 = vmax.f32 %v2509, 0.0
  %v2514 = vmax.f32 %v2510, 0.0
  %v2515 = vmax.f32 %v2511, 0.0
  %v2516 = vmax.f32 %v2512, 0.0
  %v2517 = vld [vmem:[%s16] sm:$0xff]
  %v2518 = vld [vmem:[%s16 + $0x8] sm:$0xff]
  %v2519 = vld [vmem:[%s16 + $0x10] sm:$0xff]
  %v2520 = vld [vmem:[%s16 + $0x18] sm:$0xff]
  %v2521 = vld [vmem:[%s16 + $0x20] sm:$0xff]
  %v2522 = vld [vmem:[%s16 + $0x28] sm:$0xff]
  %v2523 = vld [vmem:[%s16 + $0x30] sm:$0xff]
  %v2524 = vld [vmem:[%s16 + $0x38] sm:$0xff]
  %vm2525 = vcmask 523264
  %v2527 = vsel %vm2525, %v2513, 0
  %v2530 = vsel %vm2525, %v2514, 0
  %v2533 = vsel %vm2525, %v2515, 0
  %v2536 = vsel %vm2525, %v2516, 0
  %2538 = vmatprep.subr.mxu0 0.0
  %2539 = vmatpush1.msra.mxu0 0.0
  %2540 = vmatprep.subr.mxu0 0.0
  %2541 = vmatpush1.msra.mxu0 0.0
  %2542 = vmatprep.subr.mxu0 0.0
  %2543 = vmatpush1.msra.mxu0 0.0
  %2544 = vmatprep.subr.mxu0 0.0
  %2545 = vmatpush1.msra.mxu0 0.0
  %2546 = vmatprep.subr.mxu0 0.0
  %2547 = vmatpush1.msra.mxu0 0.0
  %2548 = vmatprep.subr.mxu0 0.0
  %2549 = vmatpush1.msra.mxu0 0.0
  %2550 = vmatprep.subr.mxu0 0.0
  %2551 = vmatpush1.msra.mxu0 0.0
  %2552 = vmatprep.subr.mxu0 0.0
  %2553 = vmatpush1.msra.mxu0 0.0
  %2554 = vmatprep.subr.mxu0 0.0
  %2555 = vmatpush1.msra.mxu0 %v2524
  %2556 = vmatprep.subr.mxu0 0.0
  %2557 = vmatpush1.msra.mxu0 %v2523
  %2558 = vmatprep.subr.mxu0 0.0
  %2559 = vmatpush1.msra.mxu0 %v2522
  %2560 = vmatprep.subr.mxu0 0.0
  %2561 = vmatpush1.msra.mxu0 %v2521
  %2562 = vmatprep.subr.mxu0 0.0
  %2563 = vmatpush1.msra.mxu0 %v2520
  %2564 = vmatprep.subr.mxu0 0.0
  %2565 = vmatpush1.msra.mxu0 %v2519
  %2566 = vmatprep.subr.mxu0 0.0
  %2567 = vmatpush1.msra.mxu0 %v2518
  %2568 = vmatprep.subr.mxu0 0.0
  %2569 = vmatpush1.msra.mxu0 %v2517
  %2570 = vmatprep.subr.mxu0 0.0
  %2571 = vmatpush2.msra.mxu0 0.0
  %2572 = vmatprep.subr.mxu0 0.0
  %2573 = vmatpush2.msra.mxu0 0.0
  %2574 = vmatprep.subr.mxu0 0.0
  %2575 = vmatpush2.msra.mxu0 0.0
  %2576 = vmatprep.subr.mxu0 0.0
  %2577 = vmatpush2.msra.mxu0 0.0
  %2578 = vmatprep.subr.mxu0 0.0
  %2579 = vmatpush2.msra.mxu0 0.0
  %2580 = vmatprep.subr.mxu0 0.0
  %2581 = vmatpush2.msra.mxu0 0.0
  %2582 = vmatprep.subr.mxu0 0.0
  %2583 = vmatpush2.msra.mxu0 0.0
  %2584 = vmatprep.subr.mxu0 0.0
  %2585 = vmatpush2.msra.mxu0 0.0
  %2586 = vmatprep.subr.mxu0 0.0
  %2587 = vmatpush2.msra.mxu0 0.0
  %2588 = vmatprep.subr.mxu0 0.0
  %2589 = vmatpush2.msra.mxu0 0.0
  %2590 = vmatprep.subr.mxu0 0.0
  %2591 = vmatpush2.msra.mxu0 0.0
  %2592 = vmatprep.subr.mxu0 0.0
  %2593 = vmatpush2.msra.mxu0 0.0
  %2594 = vmatprep.subr.mxu0 0.0
  %2595 = vmatpush2.msra.mxu0 0.0
  %2596 = vmatprep.subr.mxu0 0.0
  %2597 = vmatpush2.msra.mxu0 0.0
  %2598 = vmatprep.subr.mxu0 0.0
  %2599 = vmatpush2.msra.mxu0 0.0
  %2600 = vmatprep.subr.mxu0 0.0
  %2601 = vmatpush2.msra.mxu0 0.0
  %2602 = vmatprep.mubr.f32.mxu0 0.0
  %2603 = vmatmul.mubr.f32.gmra.mxu0 %v2527
  %v2604 = vpop.f32.mrf.mxu0
  %v2605 = vadd.f32 0.0, %v2604
  %v2606 = vpop.f32.mrf.mxu0
  %2607 = vmatprep.mubr.f32.mxu0 0.0
  %2608 = vmatmul.mubr.f32.gmra.mxu0 %v2530
  %v2609 = vpop.f32.mrf.mxu0
  %v2610 = vadd.f32 0.0, %v2609
  %v2611 = vpop.f32.mrf.mxu0
  %2612 = vmatprep.mubr.f32.mxu0 0.0
  %2613 = vmatmul.mubr.f32.gmra.mxu0 %v2533
  %v2614 = vpop.f32.mrf.mxu0
  %v2615 = vadd.f32 0.0, %v2614
  %v2616 = vpop.f32.mrf.mxu0
  %2617 = vmatprep.mubr.f32.mxu0 0.0
  %2618 = vmatmul.mubr.f32.gmra.mxu0 %v2536
  %v2619 = vpop.f32.mrf.mxu0
  %v2620 = vadd.f32 0.0, %v2619
  %v2621 = vpop.f32.mrf.mxu0
  %2622 = vdwg.mxu0
  %v2623 = vpack.c.bf16 %v2610, %v2605
  %v2624 = vpack.c.bf16 %v2620, %v2615
  %2627 = vrot.lane.b32.xlu0 %v2623, 127
  %v2628 = vpop.permute.xlu0 %2627
  %2629 = vrot.lane.b32.xlu0 %v2624, 127
  %v2630 = vpop.permute.xlu0 %2629
  %2631 = vrot.lane.b32.xlu0 %v2623, 126
  %v2632 = vpop.permute.xlu0 %2631
  %2633 = vrot.lane.b32.xlu0 %v2624, 126
  %v2634 = vpop.permute.xlu0 %2633
  %2635 = vrot.lane.b32.xlu0 %v2623, 120
  %v2636 = vpop.permute.xlu0 %2635
  %2637 = vrot.lane.b32.xlu0 %v2624, 120
  %v2638 = vpop.permute.xlu0 %2637
  %2639 = vrot.lane.b32.xlu0 %v2623, 119
  %v2640 = vpop.permute.xlu0 %2639
  %2641 = vrot.lane.b32.xlu0 %v2624, 119
  %v2642 = vpop.permute.xlu0 %2641
  %2643 = vrot.lane.b32.xlu0 %v2623, 118
  %v2644 = vpop.permute.xlu0 %2643
  %2645 = vrot.lane.b32.xlu0 %v2624, 118
  %v2646 = vpop.permute.xlu0 %2645
  %2647 = vrot.lane.b32.xlu0 %v2623, 112
  %v2648 = vpop.permute.xlu0 %2647
  %2649 = vrot.lane.b32.xlu0 %v2624, 112
  %v2650 = vpop.permute.xlu0 %2649
  %2651 = vrot.lane.b32.xlu0 %v2623, 111
  %v2652 = vpop.permute.xlu0 %2651
  %2653 = vrot.lane.b32.xlu0 %v2624, 111
  %v2654 = vpop.permute.xlu0 %2653
  %2655 = vrot.lane.b32.xlu0 %v2623, 110
  %v2656 = vpop.permute.xlu0 %2655
  %2657 = vrot.lane.b32.xlu0 %v2624, 110
  %v2658 = vpop.permute.xlu0 %2657
  %v2659 = vld [vmem:[%s24] sm:$0xff]
  %v2660 = vld [vmem:[%s24 + $0x8] sm:$0xf]
  %v2661 = vld [vmem:[%s24 + $0xc] sm:$0xff]
  %v2662 = vld [vmem:[%s24 + $0x14] sm:$0xf]
  %v2663 = vld [vmem:[%s24 + $0x18] sm:$0xff]
  %v2664 = vld [vmem:[%s24 + $0x20] sm:$0xf]
  %v2665 = vld [vmem:[%s24 + $0x24] sm:$0xff]
  %v2666 = vld [vmem:[%s24 + $0x2c] sm:$0xf]
  %v2675 = vunpack.c.l.b16 %v2659
  %v2676 = vunpack.c.h.b16 %v2659
  %v2677 = vunpack.c.l.b16 %v2660
  %v2678 = vunpack.c.l.b16 %v2661
  %v2679 = vunpack.c.h.b16 %v2661
  %v2680 = vunpack.c.l.b16 %v2662
  %v2681 = vunpack.c.l.b16 %v2663
  %v2682 = vunpack.c.h.b16 %v2663
  %v2683 = vunpack.c.l.b16 %v2664
  %v2684 = vunpack.c.l.b16 %v2665
  %v2685 = vunpack.c.h.b16 %v2665
  %v2686 = vunpack.c.l.b16 %v2666
  %v2687 = vpack.c.b16 %v2678, %v2675
  %v2688 = vpack.c.b16 %v2679, %v2676
  %v2689 = vpack.c.b16 %v2680, %v2677
  %v2690 = vpack.c.b16 %v2684, %v2681
  %v2691 = vpack.c.b16 %v2685, %v2682
  %v2692 = vpack.c.b16 %v2686, %v2683
  %2697 = vrot.lane.b32.xlu0 %v2623, 121
  %v2698 = vpop.permute.xlu0 %2697
  %2699 = vrot.lane.b32.xlu0 %v2624, 121
  %v2700 = vpop.permute.xlu0 %2699
  %2701 = vrot.lane.b32.xlu0 %v2628, 121
  %v2702 = vpop.permute.xlu0 %2701
  %2703 = vrot.lane.b32.xlu0 %v2630, 121
  %v2704 = vpop.permute.xlu0 %2703
  %2705 = vrot.lane.b32.xlu0 %v2632, 121
  %v2706 = vpop.permute.xlu0 %2705
  %2707 = vrot.lane.b32.xlu0 %v2634, 121
  %v2708 = vpop.permute.xlu0 %2707
  %2709 = vrot.lane.b32.xlu0 %v2636, 121
  %v2710 = vpop.permute.xlu0 %2709
  %2711 = vrot.lane.b32.xlu0 %v2638, 121
  %v2712 = vpop.permute.xlu0 %2711
  %2713 = vrot.lane.b32.xlu0 %v2640, 121
  %v2714 = vpop.permute.xlu0 %2713
  %2715 = vrot.lane.b32.xlu0 %v2642, 121
  %v2716 = vpop.permute.xlu0 %2715
  %2717 = vrot.lane.b32.xlu0 %v2644, 121
  %v2718 = vpop.permute.xlu0 %2717
  %2719 = vrot.lane.b32.xlu0 %v2646, 121
  %v2720 = vpop.permute.xlu0 %2719
  %2721 = vrot.lane.b32.xlu0 %v2648, 121
  %v2722 = vpop.permute.xlu0 %2721
  %2723 = vrot.lane.b32.xlu0 %v2650, 121
  %v2724 = vpop.permute.xlu0 %2723
  %2725 = vrot.lane.b32.xlu0 %v2652, 121
  %v2726 = vpop.permute.xlu0 %2725
  %2727 = vrot.lane.b32.xlu0 %v2654, 121
  %v2728 = vpop.permute.xlu0 %2727
  %2729 = vrot.lane.b32.xlu0 %v2656, 121
  %v2730 = vpop.permute.xlu0 %2729
  %2731 = vrot.lane.b32.xlu0 %v2658, 121
  %v2732 = vpop.permute.xlu0 %2731
  %v2752 = vsel %vm557, %v2689, 0
  %v2755 = vsel %vm557, %v2692, 0
  %2757 = vmatprep.subr.bf16.mxu0 0
  %2758 = vmatpush1.bf16.msra.mxu0 %v2712
  %2759 = vmatprep.subr.bf16.mxu0 0
  %2760 = vmatpush1.bf16.msra.mxu0 %v2710
  %2761 = vmatprep.subr.bf16.mxu0 0
  %2762 = vmatpush1.bf16.msra.mxu0 %v2708
  %2763 = vmatprep.subr.bf16.mxu0 0
  %2764 = vmatpush1.bf16.msra.mxu0 %v2706
  %2765 = vmatprep.subr.bf16.mxu0 0
  %2766 = vmatpush1.bf16.msra.mxu0 %v2704
  %2767 = vmatprep.subr.bf16.mxu0 0
  %2768 = vmatpush1.bf16.msra.mxu0 %v2702
  %2769 = vmatprep.subr.bf16.mxu0 0
  %2770 = vmatpush1.bf16.msra.mxu0 %v2700
  %2771 = vmatprep.subr.bf16.mxu0 0
  %2772 = vmatpush1.bf16.msra.mxu0 %v2698
  %2773 = vmatprep.subr.bf16.mxu0 0
  %2774 = vmatpush2.bf16.msra.mxu0 %v2728
  %2775 = vmatprep.subr.bf16.mxu0 0
  %2776 = vmatpush2.bf16.msra.mxu0 %v2726
  %2777 = vmatprep.subr.bf16.mxu0 0
  %2778 = vmatpush2.bf16.msra.mxu0 %v2724
  %2779 = vmatprep.subr.bf16.mxu0 0
  %2780 = vmatpush2.bf16.msra.mxu0 %v2722
  %2781 = vmatprep.subr.bf16.mxu0 0
  %2782 = vmatpush2.bf16.msra.mxu0 %v2720
  %2783 = vmatprep.subr.bf16.mxu0 0
  %2784 = vmatpush2.bf16.msra.mxu0 %v2718
  %2785 = vmatprep.subr.bf16.mxu0 0
  %2786 = vmatpush2.bf16.msra.mxu0 %v2716
  %2787 = vmatprep.subr.bf16.mxu0 0
  %2788 = vmatpush2.bf16.msra.mxu0 %v2714
  %2789 = vmatprep.mubr.bf16.mxu0 %v2688
  %2790 = vmatmul.mubr.bf16.gmra.mxu0 %v2687
  %v2791 = vpop.f32.mrf.mxu0
  %v2792 = vadd.f32 0.0, %v2791
  %v2793 = vpop.f32.mrf.mxu0
  %v2794 = vpop.f32.mrf.mxu0
  %v2795 = vadd.f32 0.0, %v2794
  %v2796 = vpop.f32.mrf.mxu0
  %2797 = vmatprep.mubr.bf16.mxu0 %v2691
  %2798 = vmatmul.mubr.bf16.gmra.mxu0 %v2690
  %v2799 = vpop.f32.mrf.mxu0
  %v2800 = vadd.f32 0.0, %v2799
  %v2801 = vpop.f32.mrf.mxu0
  %v2802 = vpop.f32.mrf.mxu0
  %v2803 = vadd.f32 0.0, %v2802
  %v2804 = vpop.f32.mrf.mxu0
  %2805 = vdwg.mxu0
  %2806 = vmatprep.subr.bf16.mxu0 0
  %2807 = vmatpush1.bf16.msra.mxu0 0
  %2808 = vmatprep.subr.bf16.mxu0 0
  %2809 = vmatpush1.bf16.msra.mxu0 0
  %2810 = vmatprep.subr.bf16.mxu0 0
  %2811 = vmatpush1.bf16.msra.mxu0 0
  %2812 = vmatprep.subr.bf16.mxu0 0
  %2813 = vmatpush1.bf16.msra.mxu0 0
  %2814 = vmatprep.subr.bf16.mxu0 0
  %2815 = vmatpush1.bf16.msra.mxu0 0
  %2816 = vmatprep.subr.bf16.mxu0 0
  %2817 = vmatpush1.bf16.msra.mxu0 0
  %2818 = vmatprep.subr.bf16.mxu0 0
  %2819 = vmatpush1.bf16.msra.mxu0 %v2732
  %2820 = vmatprep.subr.bf16.mxu0 0
  %2821 = vmatpush1.bf16.msra.mxu0 %v2730
  %2822 = vmatprep.subr.bf16.mxu0 0
  %2823 = vmatpush2.bf16.msra.mxu0 0
  %2824 = vmatprep.subr.bf16.mxu0 0
  %2825 = vmatpush2.bf16.msra.mxu0 0
  %2826 = vmatprep.subr.bf16.mxu0 0
  %2827 = vmatpush2.bf16.msra.mxu0 0
  %2828 = vmatprep.subr.bf16.mxu0 0
  %2829 = vmatpush2.bf16.msra.mxu0 0
  %2830 = vmatprep.subr.bf16.mxu0 0
  %2831 = vmatpush2.bf16.msra.mxu0 0
  %2832 = vmatprep.subr.bf16.mxu0 0
  %2833 = vmatpush2.bf16.msra.mxu0 0
  %2834 = vmatprep.subr.bf16.mxu0 0
  %2835 = vmatpush2.bf16.msra.mxu0 0
  %2836 = vmatprep.subr.bf16.mxu0 0
  %2837 = vmatpush2.bf16.msra.mxu0 0
  %2838 = vmatprep.mubr.bf16.mxu0 0
  %2839 = vmatmul.mubr.bf16.gmra.mxu0 %v2752
  %v2840 = vpop.f32.mrf.mxu0
  %v2841 = vadd.f32 %v2792, %v2840
  %v2842 = vpop.f32.mrf.mxu0
  %v2843 = vpop.f32.mrf.mxu0
  %v2844 = vadd.f32 %v2795, %v2843
  %v2845 = vpop.f32.mrf.mxu0
  %2846 = vmatprep.mubr.bf16.mxu0 0
  %2847 = vmatmul.mubr.bf16.gmra.mxu0 %v2755
  %v2848 = vpop.f32.mrf.mxu0
  %v2849 = vadd.f32 %v2800, %v2848
  %v2850 = vpop.f32.mrf.mxu0
  %v2851 = vpop.f32.mrf.mxu0
  %v2852 = vadd.f32 %v2803, %v2851
  %v2853 = vpop.f32.mrf.mxu0
  %2854 = vdwg.mxu0
  %v2855 = vld [vmem:[%s25] sm:$0xff]
  %v2856 = vld [vmem:[%s25 + $0x8] sm:$0xff]
  %v2857 = vld [vmem:[%s25 + $0x10] sm:$0xff]
  %v2858 = vld [vmem:[%s25 + $0x18] sm:$0xff]
  %2860 = vset.pattern.permute.xlu0 0
  %2861 = vperm.xlu0 %2860, %v2855
  %v2862 = vpop.permute.xlu0 %2861
  %2865 = vset.pattern.permute.xlu0 0
  %2866 = vperm.xlu0 %2865, %v2856
  %v2867 = vpop.permute.xlu0 %2866
  %2870 = vset.pattern.permute.xlu0 0
  %2871 = vperm.xlu0 %2870, %v2857
  %v2872 = vpop.permute.xlu0 %2871
  %2875 = vset.pattern.permute.xlu0 0
  %2876 = vperm.xlu0 %2875, %v2858
  %v2877 = vpop.permute.xlu0 %2876
  %v2879 = vmul.f32 %v2841, %v2862
  %v2880 = vmul.f32 %v2844, %v2867
  %v2881 = vmul.f32 %v2849, %v2872
  %v2882 = vmul.f32 %v2852, %v2877
  %2883 = vset.pattern.permute.xlu0 1
  %2884 = vperm.xlu0 %2883, %v2855
  %v2885 = vpop.permute.xlu0 %2884
  %2887 = vset.pattern.permute.xlu0 1
  %2888 = vperm.xlu0 %2887, %v2856
  %v2889 = vpop.permute.xlu0 %2888
  %2891 = vset.pattern.permute.xlu0 1
  %2892 = vperm.xlu0 %2891, %v2857
  %v2893 = vpop.permute.xlu0 %2892
  %2895 = vset.pattern.permute.xlu0 1
  %2896 = vperm.xlu0 %2895, %v2858
  %v2897 = vpop.permute.xlu0 %2896
  %v2899 = vadd.f32 %v2879, %v2885
  %v2900 = vadd.f32 %v2880, %v2889
  %v2901 = vadd.f32 %v2881, %v2893
  %v2902 = vadd.f32 %v2882, %v2897
  %v2903 = vmax.f32 %v2899, 0.0
  %v2904 = vmax.f32 %v2900, 0.0
  %v2905 = vmax.f32 %v2901, 0.0
  %v2906 = vmax.f32 %v2902, 0.0
  %v2908 = vsel %vm2525, %v2903, 0
  %v2911 = vsel %vm2525, %v2904, 0
  %v2914 = vsel %vm2525, %v2905, 0
  %v2917 = vsel %vm2525, %v2906, 0
  %2919 = vmatprep.subr.mxu0 0.0
  %2920 = vmatpush1.msra.mxu0 0.0
  %2921 = vmatprep.subr.mxu0 0.0
  %2922 = vmatpush1.msra.mxu0 0.0
  %2923 = vmatprep.subr.mxu0 0.0
  %2924 = vmatpush1.msra.mxu0 0.0
  %2925 = vmatprep.subr.mxu0 0.0
  %2926 = vmatpush1.msra.mxu0 0.0
  %2927 = vmatprep.subr.mxu0 0.0
  %2928 = vmatpush1.msra.mxu0 0.0
  %2929 = vmatprep.subr.mxu0 0.0
  %2930 = vmatpush1.msra.mxu0 0.0
  %2931 = vmatprep.subr.mxu0 0.0
  %2932 = vmatpush1.msra.mxu0 0.0
  %2933 = vmatprep.subr.mxu0 0.0
  %2934 = vmatpush1.msra.mxu0 0.0
  %2935 = vmatprep.subr.mxu0 0.0
  %2936 = vmatpush1.msra.mxu0 %v2524
  %2937 = vmatprep.subr.mxu0 0.0
  %2938 = vmatpush1.msra.mxu0 %v2523
  %2939 = vmatprep.subr.mxu0 0.0
  %2940 = vmatpush1.msra.mxu0 %v2522
  %2941 = vmatprep.subr.mxu0 0.0
  %2942 = vmatpush1.msra.mxu0 %v2521
  %2943 = vmatprep.subr.mxu0 0.0
  %2944 = vmatpush1.msra.mxu0 %v2520
  %2945 = vmatprep.subr.mxu0 0.0
  %2946 = vmatpush1.msra.mxu0 %v2519
  %2947 = vmatprep.subr.mxu0 0.0
  %2948 = vmatpush1.msra.mxu0 %v2518
  %2949 = vmatprep.subr.mxu0 0.0
  %2950 = vmatpush1.msra.mxu0 %v2517
  %2951 = vmatprep.subr.mxu0 0.0
  %2952 = vmatpush2.msra.mxu0 0.0
  %2953 = vmatprep.subr.mxu0 0.0
  %2954 = vmatpush2.msra.mxu0 0.0
  %2955 = vmatprep.subr.mxu0 0.0
  %2956 = vmatpush2.msra.mxu0 0.0
  %2957 = vmatprep.subr.mxu0 0.0
  %2958 = vmatpush2.msra.mxu0 0.0
  %2959 = vmatprep.subr.mxu0 0.0
  %2960 = vmatpush2.msra.mxu0 0.0
  %2961 = vmatprep.subr.mxu0 0.0
  %2962 = vmatpush2.msra.mxu0 0.0
  %2963 = vmatprep.subr.mxu0 0.0
  %2964 = vmatpush2.msra.mxu0 0.0
  %2965 = vmatprep.subr.mxu0 0.0
  %2966 = vmatpush2.msra.mxu0 0.0
  %2967 = vmatprep.subr.mxu0 0.0
  %2968 = vmatpush2.msra.mxu0 0.0
  %2969 = vmatprep.subr.mxu0 0.0
  %2970 = vmatpush2.msra.mxu0 0.0
  %2971 = vmatprep.subr.mxu0 0.0
  %2972 = vmatpush2.msra.mxu0 0.0
  %2973 = vmatprep.subr.mxu0 0.0
  %2974 = vmatpush2.msra.mxu0 0.0
  %2975 = vmatprep.subr.mxu0 0.0
  %2976 = vmatpush2.msra.mxu0 0.0
  %2977 = vmatprep.subr.mxu0 0.0
  %2978 = vmatpush2.msra.mxu0 0.0
  %2979 = vmatprep.subr.mxu0 0.0
  %2980 = vmatpush2.msra.mxu0 0.0
  %2981 = vmatprep.subr.mxu0 0.0
  %2982 = vmatpush2.msra.mxu0 0.0
  %2983 = vmatprep.mubr.f32.mxu0 0.0
  %2984 = vmatmul.mubr.f32.gmra.mxu0 %v2908
  %v2985 = vpop.f32.mrf.mxu0
  %v2986 = vadd.f32 0.0, %v2985
  %v2987 = vpop.f32.mrf.mxu0
  %2988 = vmatprep.mubr.f32.mxu0 0.0
  %2989 = vmatmul.mubr.f32.gmra.mxu0 %v2911
  %v2990 = vpop.f32.mrf.mxu0
  %v2991 = vadd.f32 0.0, %v2990
  %v2992 = vpop.f32.mrf.mxu0
  %2993 = vmatprep.mubr.f32.mxu0 0.0
  %2994 = vmatmul.mubr.f32.gmra.mxu0 %v2914
  %v2995 = vpop.f32.mrf.mxu0
  %v2996 = vadd.f32 0.0, %v2995
  %v2997 = vpop.f32.mrf.mxu0
  %2998 = vmatprep.mubr.f32.mxu0 0.0
  %2999 = vmatmul.mubr.f32.gmra.mxu0 %v2917
  %v3000 = vpop.f32.mrf.mxu0
  %v3001 = vadd.f32 0.0, %v3000
  %v3002 = vpop.f32.mrf.mxu0
  %3003 = vdwg.mxu0
  %v3004 = vpack.c.bf16 %v2991, %v2986
  %v3005 = vpack.c.bf16 %v3001, %v2996
  %3008 = vrot.lane.b32.xlu0 %v3004, 127
  %v3009 = vpop.permute.xlu0 %3008
  %3010 = vrot.lane.b32.xlu0 %v3005, 127
  %v3011 = vpop.permute.xlu0 %3010
  %3012 = vrot.lane.b32.xlu0 %v3004, 126
  %v3013 = vpop.permute.xlu0 %3012
  %3014 = vrot.lane.b32.xlu0 %v3005, 126
  %v3015 = vpop.permute.xlu0 %3014
  %3016 = vrot.lane.b32.xlu0 %v3004, 120
  %v3017 = vpop.permute.xlu0 %3016
  %3018 = vrot.lane.b32.xlu0 %v3005, 120
  %v3019 = vpop.permute.xlu0 %3018
  %3020 = vrot.lane.b32.xlu0 %v3004, 119
  %v3021 = vpop.permute.xlu0 %3020
  %3022 = vrot.lane.b32.xlu0 %v3005, 119
  %v3023 = vpop.permute.xlu0 %3022
  %3024 = vrot.lane.b32.xlu0 %v3004, 118
  %v3025 = vpop.permute.xlu0 %3024
  %3026 = vrot.lane.b32.xlu0 %v3005, 118
  %v3027 = vpop.permute.xlu0 %3026
  %3028 = vrot.lane.b32.xlu0 %v3004, 112
  %v3029 = vpop.permute.xlu0 %3028
  %3030 = vrot.lane.b32.xlu0 %v3005, 112
  %v3031 = vpop.permute.xlu0 %3030
  %3032 = vrot.lane.b32.xlu0 %v3004, 111
  %v3033 = vpop.permute.xlu0 %3032
  %3034 = vrot.lane.b32.xlu0 %v3005, 111
  %v3035 = vpop.permute.xlu0 %3034
  %3036 = vrot.lane.b32.xlu0 %v3004, 110
  %v3037 = vpop.permute.xlu0 %3036
  %3038 = vrot.lane.b32.xlu0 %v3005, 110
  %v3039 = vpop.permute.xlu0 %3038
  %v3040 = vld [vmem:[%s26] sm:$0xff]
  %v3041 = vld [vmem:[%s26 + $0x8] sm:$0xf]
  %v3042 = vld [vmem:[%s26 + $0xc] sm:$0xff]
  %v3043 = vld [vmem:[%s26 + $0x14] sm:$0xf]
  %v3044 = vld [vmem:[%s26 + $0x18] sm:$0xff]
  %v3045 = vld [vmem:[%s26 + $0x20] sm:$0xf]
  %v3046 = vld [vmem:[%s26 + $0x24] sm:$0xff]
  %v3047 = vld [vmem:[%s26 + $0x2c] sm:$0xf]
  %v3056 = vunpack.c.l.b16 %v3040
  %v3057 = vunpack.c.h.b16 %v3040
  %v3058 = vunpack.c.l.b16 %v3041
  %v3059 = vunpack.c.l.b16 %v3042
  %v3060 = vunpack.c.h.b16 %v3042
  %v3061 = vunpack.c.l.b16 %v3043
  %v3062 = vunpack.c.l.b16 %v3044
  %v3063 = vunpack.c.h.b16 %v3044
  %v3064 = vunpack.c.l.b16 %v3045
  %v3065 = vunpack.c.l.b16 %v3046
  %v3066 = vunpack.c.h.b16 %v3046
  %v3067 = vunpack.c.l.b16 %v3047
  %v3068 = vpack.c.b16 %v3059, %v3056
  %v3069 = vpack.c.b16 %v3060, %v3057
  %v3070 = vpack.c.b16 %v3061, %v3058
  %v3071 = vpack.c.b16 %v3065, %v3062
  %v3072 = vpack.c.b16 %v3066, %v3063
  %v3073 = vpack.c.b16 %v3067, %v3064
  %3078 = vrot.lane.b32.xlu0 %v3004, 121
  %v3079 = vpop.permute.xlu0 %3078
  %3080 = vrot.lane.b32.xlu0 %v3005, 121
  %v3081 = vpop.permute.xlu0 %3080
  %3082 = vrot.lane.b32.xlu0 %v3009, 121
  %v3083 = vpop.permute.xlu0 %3082
  %3084 = vrot.lane.b32.xlu0 %v3011, 121
  %v3085 = vpop.permute.xlu0 %3084
  %3086 = vrot.lane.b32.xlu0 %v3013, 121
  %v3087 = vpop.permute.xlu0 %3086
  %3088 = vrot.lane.b32.xlu0 %v3015, 121
  %v3089 = vpop.permute.xlu0 %3088
  %3090 = vrot.lane.b32.xlu0 %v3017, 121
  %v3091 = vpop.permute.xlu0 %3090
  %3092 = vrot.lane.b32.xlu0 %v3019, 121
  %v3093 = vpop.permute.xlu0 %3092
  %3094 = vrot.lane.b32.xlu0 %v3021, 121
  %v3095 = vpop.permute.xlu0 %3094
  %3096 = vrot.lane.b32.xlu0 %v3023, 121
  %v3097 = vpop.permute.xlu0 %3096
  %3098 = vrot.lane.b32.xlu0 %v3025, 121
  %v3099 = vpop.permute.xlu0 %3098
  %3100 = vrot.lane.b32.xlu0 %v3027, 121
  %v3101 = vpop.permute.xlu0 %3100
  %3102 = vrot.lane.b32.xlu0 %v3029, 121
  %v3103 = vpop.permute.xlu0 %3102
  %3104 = vrot.lane.b32.xlu0 %v3031, 121
  %v3105 = vpop.permute.xlu0 %3104
  %3106 = vrot.lane.b32.xlu0 %v3033, 121
  %v3107 = vpop.permute.xlu0 %3106
  %3108 = vrot.lane.b32.xlu0 %v3035, 121
  %v3109 = vpop.permute.xlu0 %3108
  %3110 = vrot.lane.b32.xlu0 %v3037, 121
  %v3111 = vpop.permute.xlu0 %3110
  %3112 = vrot.lane.b32.xlu0 %v3039, 121
  %v3113 = vpop.permute.xlu0 %3112
  %v3133 = vsel %vm557, %v3070, 0
  %v3136 = vsel %vm557, %v3073, 0
  %3138 = vmatprep.subr.bf16.mxu0 0
  %3139 = vmatpush1.bf16.msra.mxu0 %v3093
  %3140 = vmatprep.subr.bf16.mxu0 0
  %3141 = vmatpush1.bf16.msra.mxu0 %v3091
  %3142 = vmatprep.subr.bf16.mxu0 0
  %3143 = vmatpush1.bf16.msra.mxu0 %v3089
  %3144 = vmatprep.subr.bf16.mxu0 0
  %3145 = vmatpush1.bf16.msra.mxu0 %v3087
  %3146 = vmatprep.subr.bf16.mxu0 0
  %3147 = vmatpush1.bf16.msra.mxu0 %v3085
  %3148 = vmatprep.subr.bf16.mxu0 0
  %3149 = vmatpush1.bf16.msra.mxu0 %v3083
  %3150 = vmatprep.subr.bf16.mxu0 0
  %3151 = vmatpush1.bf16.msra.mxu0 %v3081
  %3152 = vmatprep.subr.bf16.mxu0 0
  %3153 = vmatpush1.bf16.msra.mxu0 %v3079
  %3154 = vmatprep.subr.bf16.mxu0 0
  %3155 = vmatpush2.bf16.msra.mxu0 %v3109
  %3156 = vmatprep.subr.bf16.mxu0 0
  %3157 = vmatpush2.bf16.msra.mxu0 %v3107
  %3158 = vmatprep.subr.bf16.mxu0 0
  %3159 = vmatpush2.bf16.msra.mxu0 %v3105
  %3160 = vmatprep.subr.bf16.mxu0 0
  %3161 = vmatpush2.bf16.msra.mxu0 %v3103
  %3162 = vmatprep.subr.bf16.mxu0 0
  %3163 = vmatpush2.bf16.msra.mxu0 %v3101
  %3164 = vmatprep.subr.bf16.mxu0 0
  %3165 = vmatpush2.bf16.msra.mxu0 %v3099
  %3166 = vmatprep.subr.bf16.mxu0 0
  %3167 = vmatpush2.bf16.msra.mxu0 %v3097
  %3168 = vmatprep.subr.bf16.mxu0 0
  %3169 = vmatpush2.bf16.msra.mxu0 %v3095
  %3170 = vmatprep.mubr.bf16.mxu0 %v3069
  %3171 = vmatmul.mubr.bf16.gmra.mxu0 %v3068
  %v3172 = vpop.f32.mrf.mxu0
  %v3173 = vadd.f32 0.0, %v3172
  %v3174 = vpop.f32.mrf.mxu0
  %v3175 = vpop.f32.mrf.mxu0
  %v3176 = vadd.f32 0.0, %v3175
  %v3177 = vpop.f32.mrf.mxu0
  %3178 = vmatprep.mubr.bf16.mxu0 %v3072
  %3179 = vmatmul.mubr.bf16.gmra.mxu0 %v3071
  %v3180 = vpop.f32.mrf.mxu0
  %v3181 = vadd.f32 0.0, %v3180
  %v3182 = vpop.f32.mrf.mxu0
  %v3183 = vpop.f32.mrf.mxu0
  %v3184 = vadd.f32 0.0, %v3183
  %v3185 = vpop.f32.mrf.mxu0
  %3186 = vdwg.mxu0
  %3187 = vmatprep.subr.bf16.mxu0 0
  %3188 = vmatpush1.bf16.msra.mxu0 0
  %3189 = vmatprep.subr.bf16.mxu0 0
  %3190 = vmatpush1.bf16.msra.mxu0 0
  %3191 = vmatprep.subr.bf16.mxu0 0
  %3192 = vmatpush1.bf16.msra.mxu0 0
  %3193 = vmatprep.subr.bf16.mxu0 0
  %3194 = vmatpush1.bf16.msra.mxu0 0
  %3195 = vmatprep.subr.bf16.mxu0 0
  %3196 = vmatpush1.bf16.msra.mxu0 0
  %3197 = vmatprep.subr.bf16.mxu0 0
  %3198 = vmatpush1.bf16.msra.mxu0 0
  %3199 = vmatprep.subr.bf16.mxu0 0
  %3200 = vmatpush1.bf16.msra.mxu0 %v3113
  %3201 = vmatprep.subr.bf16.mxu0 0
  %3202 = vmatpush1.bf16.msra.mxu0 %v3111
  %3203 = vmatprep.subr.bf16.mxu0 0
  %3204 = vmatpush2.bf16.msra.mxu0 0
  %3205 = vmatprep.subr.bf16.mxu0 0
  %3206 = vmatpush2.bf16.msra.mxu0 0
  %3207 = vmatprep.subr.bf16.mxu0 0
  %3208 = vmatpush2.bf16.msra.mxu0 0
  %3209 = vmatprep.subr.bf16.mxu0 0
  %3210 = vmatpush2.bf16.msra.mxu0 0
  %3211 = vmatprep.subr.bf16.mxu0 0
  %3212 = vmatpush2.bf16.msra.mxu0 0
  %3213 = vmatprep.subr.bf16.mxu0 0
  %3214 = vmatpush2.bf16.msra.mxu0 0
  %3215 = vmatprep.subr.bf16.mxu0 0
  %3216 = vmatpush2.bf16.msra.mxu0 0
  %3217 = vmatprep.subr.bf16.mxu0 0
  %3218 = vmatpush2.bf16.msra.mxu0 0
  %3219 = vmatprep.mubr.bf16.mxu0 0
  %3220 = vmatmul.mubr.bf16.gmra.mxu0 %v3133
  %v3221 = vpop.f32.mrf.mxu0
  %v3222 = vadd.f32 %v3173, %v3221
  %v3223 = vpop.f32.mrf.mxu0
  %v3224 = vpop.f32.mrf.mxu0
  %v3225 = vadd.f32 %v3176, %v3224
  %v3226 = vpop.f32.mrf.mxu0
  %3227 = vmatprep.mubr.bf16.mxu0 0
  %3228 = vmatmul.mubr.bf16.gmra.mxu0 %v3136
  %v3229 = vpop.f32.mrf.mxu0
  %v3230 = vadd.f32 %v3181, %v3229
  %v3231 = vpop.f32.mrf.mxu0
  %v3232 = vpop.f32.mrf.mxu0
  %v3233 = vadd.f32 %v3184, %v3232
  %v3234 = vpop.f32.mrf.mxu0
  %3235 = vdwg.mxu0
  %v3236 = vld [vmem:[%s27] sm:$0xff]
  %v3237 = vld [vmem:[%s27 + $0x8] sm:$0xff]
  %v3238 = vld [vmem:[%s27 + $0x10] sm:$0xff]
  %v3239 = vld [vmem:[%s27 + $0x18] sm:$0xff]
  %3241 = vset.pattern.permute.xlu0 0
  %3242 = vperm.xlu0 %3241, %v3236
  %v3243 = vpop.permute.xlu0 %3242
  %3246 = vset.pattern.permute.xlu0 0
  %3247 = vperm.xlu0 %3246, %v3237
  %v3248 = vpop.permute.xlu0 %3247
  %3251 = vset.pattern.permute.xlu0 0
  %3252 = vperm.xlu0 %3251, %v3238
  %v3253 = vpop.permute.xlu0 %3252
  %3256 = vset.pattern.permute.xlu0 0
  %3257 = vperm.xlu0 %3256, %v3239
  %v3258 = vpop.permute.xlu0 %3257
  %v3260 = vmul.f32 %v3222, %v3243
  %v3261 = vmul.f32 %v3225, %v3248
  %v3262 = vmul.f32 %v3230, %v3253
  %v3263 = vmul.f32 %v3233, %v3258
  %3264 = vset.pattern.permute.xlu0 1
  %3265 = vperm.xlu0 %3264, %v3236
  %v3266 = vpop.permute.xlu0 %3265
  %3268 = vset.pattern.permute.xlu0 1
  %3269 = vperm.xlu0 %3268, %v3237
  %v3270 = vpop.permute.xlu0 %3269
  %3272 = vset.pattern.permute.xlu0 1
  %3273 = vperm.xlu0 %3272, %v3238
  %v3274 = vpop.permute.xlu0 %3273
  %3276 = vset.pattern.permute.xlu0 1
  %3277 = vperm.xlu0 %3276, %v3239
  %v3278 = vpop.permute.xlu0 %3277
  %v3280 = vadd.f32 %v3260, %v3266
  %v3281 = vadd.f32 %v3261, %v3270
  %v3282 = vadd.f32 %v3262, %v3274
  %v3283 = vadd.f32 %v3263, %v3278
  %3288 = vrot.lane.b32.xlu0 %v2605, 112
  %v3289 = vpop.permute.xlu0 %3288
  %3290 = vrot.lane.b32.xlu0 %v2610, 112
  %v3291 = vpop.permute.xlu0 %3290
  %3292 = vrot.lane.b32.xlu0 %v2615, 112
  %v3293 = vpop.permute.xlu0 %3292
  %3294 = vrot.lane.b32.xlu0 %v2620, 112
  %v3295 = vpop.permute.xlu0 %3294
  %v3300 = vadd.f32 %v3280, %v3289
  %v3301 = vadd.f32 %v3281, %v3291
  %v3302 = vadd.f32 %v3282, %v3293
  %v3303 = vadd.f32 %v3283, %v3295
  %v3304 = vmax.f32 %v3300, 0.0
  %v3305 = vmax.f32 %v3301, 0.0
  %v3306 = vmax.f32 %v3302, 0.0
  %v3307 = vmax.f32 %v3303, 0.0
  %v3309 = vsel %vm2525, %v3304, 0
  %v3312 = vsel %vm2525, %v3305, 0
  %v3315 = vsel %vm2525, %v3306, 0
  %v3318 = vsel %vm2525, %v3307, 0
  %3320 = vmatprep.subr.mxu0 0.0
  %3321 = vmatpush1.msra.mxu0 0.0
  %3322 = vmatprep.subr.mxu0 0.0
  %3323 = vmatpush1.msra.mxu0 0.0
  %3324 = vmatprep.subr.mxu0 0.0
  %3325 = vmatpush1.msra.mxu0 0.0
  %3326 = vmatprep.subr.mxu0 0.0
  %3327 = vmatpush1.msra.mxu0 0.0
  %3328 = vmatprep.subr.mxu0 0.0
  %3329 = vmatpush1.msra.mxu0 0.0
  %3330 = vmatprep.subr.mxu0 0.0
  %3331 = vmatpush1.msra.mxu0 0.0
  %3332 = vmatprep.subr.mxu0 0.0
  %3333 = vmatpush1.msra.mxu0 0.0
  %3334 = vmatprep.subr.mxu0 0.0
  %3335 = vmatpush1.msra.mxu0 0.0
  %3336 = vmatprep.subr.mxu0 0.0
  %3337 = vmatpush1.msra.mxu0 %v2524
  %3338 = vmatprep.subr.mxu0 0.0
  %3339 = vmatpush1.msra.mxu0 %v2523
  %3340 = vmatprep.subr.mxu0 0.0
  %3341 = vmatpush1.msra.mxu0 %v2522
  %3342 = vmatprep.subr.mxu0 0.0
  %3343 = vmatpush1.msra.mxu0 %v2521
  %3344 = vmatprep.subr.mxu0 0.0
  %3345 = vmatpush1.msra.mxu0 %v2520
  %3346 = vmatprep.subr.mxu0 0.0
  %3347 = vmatpush1.msra.mxu0 %v2519
  %3348 = vmatprep.subr.mxu0 0.0
  %3349 = vmatpush1.msra.mxu0 %v2518
  %3350 = vmatprep.subr.mxu0 0.0
  %3351 = vmatpush1.msra.mxu0 %v2517
  %3352 = vmatprep.subr.mxu0 0.0
  %3353 = vmatpush2.msra.mxu0 0.0
  %3354 = vmatprep.subr.mxu0 0.0
  %3355 = vmatpush2.msra.mxu0 0.0
  %3356 = vmatprep.subr.mxu0 0.0
  %3357 = vmatpush2.msra.mxu0 0.0
  %3358 = vmatprep.subr.mxu0 0.0
  %3359 = vmatpush2.msra.mxu0 0.0
  %3360 = vmatprep.subr.mxu0 0.0
  %3361 = vmatpush2.msra.mxu0 0.0
  %3362 = vmatprep.subr.mxu0 0.0
  %3363 = vmatpush2.msra.mxu0 0.0
  %3364 = vmatprep.subr.mxu0 0.0
  %3365 = vmatpush2.msra.mxu0 0.0
  %3366 = vmatprep.subr.mxu0 0.0
  %3367 = vmatpush2.msra.mxu0 0.0
  %3368 = vmatprep.subr.mxu0 0.0
  %3369 = vmatpush2.msra.mxu0 0.0
  %3370 = vmatprep.subr.mxu0 0.0
  %3371 = vmatpush2.msra.mxu0 0.0
  %3372 = vmatprep.subr.mxu0 0.0
  %3373 = vmatpush2.msra.mxu0 0.0
  %3374 = vmatprep.subr.mxu0 0.0
  %3375 = vmatpush2.msra.mxu0 0.0
  %3376 = vmatprep.subr.mxu0 0.0
  %3377 = vmatpush2.msra.mxu0 0.0
  %3378 = vmatprep.subr.mxu0 0.0
  %3379 = vmatpush2.msra.mxu0 0.0
  %3380 = vmatprep.subr.mxu0 0.0
  %3381 = vmatpush2.msra.mxu0 0.0
  %3382 = vmatprep.subr.mxu0 0.0
  %3383 = vmatpush2.msra.mxu0 0.0
  %3384 = vmatprep.mubr.f32.mxu0 0.0
  %3385 = vmatmul.mubr.f32.gmra.mxu0 %v3309
  %v3386 = vpop.f32.mrf.mxu0
  %v3387 = vadd.f32 0.0, %v3386
  %v3388 = vpop.f32.mrf.mxu0
  %3389 = vmatprep.mubr.f32.mxu0 0.0
  %3390 = vmatmul.mubr.f32.gmra.mxu0 %v3312
  %v3391 = vpop.f32.mrf.mxu0
  %v3392 = vadd.f32 0.0, %v3391
  %v3393 = vpop.f32.mrf.mxu0
  %3394 = vmatprep.mubr.f32.mxu0 0.0
  %3395 = vmatmul.mubr.f32.gmra.mxu0 %v3315
  %v3396 = vpop.f32.mrf.mxu0
  %v3397 = vadd.f32 0.0, %v3396
  %v3398 = vpop.f32.mrf.mxu0
  %3399 = vmatprep.mubr.f32.mxu0 0.0
  %3400 = vmatmul.mubr.f32.gmra.mxu0 %v3318
  %v3401 = vpop.f32.mrf.mxu0
  %v3402 = vadd.f32 0.0, %v3401
  %v3403 = vpop.f32.mrf.mxu0
  %3404 = vdwg.mxu0
  %v3405 = vld [vmem:[%s17] sm:$0xff]
  %v3406 = vld [vmem:[%s17 + $0x8] sm:$0xff]
  %v3407 = vld [vmem:[%s17 + $0x10] sm:$0xff]
  %v3408 = vld [vmem:[%s17 + $0x18] sm:$0xff]
  %v3409 = vld [vmem:[%s17 + $0x20] sm:$0xff]
  %v3410 = vld [vmem:[%s17 + $0x28] sm:$0xff]
  %v3411 = vld [vmem:[%s17 + $0x30] sm:$0xff]
  %v3412 = vld [vmem:[%s17 + $0x38] sm:$0xff]
  %v3413 = vld [vmem:[%s17 + $0x40] sm:$0xff]
  %v3414 = vld [vmem:[%s17 + $0x48] sm:$0xff]
  %v3415 = vld [vmem:[%s17 + $0x50] sm:$0xff]
  %v3416 = vld [vmem:[%s17 + $0x58] sm:$0xff]
  %v3418 = vsel %vm778, %v3387, 0
  %v3421 = vsel %vm778, %v3392, 0
  %v3424 = vsel %vm778, %v3397, 0
  %v3427 = vsel %vm778, %v3402, 0
  %3429 = vmatprep.subr.mxu0 0.0
  %3430 = vmatpush1.msra.mxu0 0.0
  %3431 = vmatprep.subr.mxu0 0.0
  %3432 = vmatpush1.msra.mxu0 0.0
  %3433 = vmatprep.subr.mxu0 0.0
  %3434 = vmatpush1.msra.mxu0 0.0
  %3435 = vmatprep.subr.mxu0 0.0
  %3436 = vmatpush1.msra.mxu0 0.0
  %3437 = vmatprep.subr.mxu0 0.0
  %3438 = vmatpush1.msra.mxu0 %v3416
  %3439 = vmatprep.subr.mxu0 0.0
  %3440 = vmatpush1.msra.mxu0 %v3415
  %3441 = vmatprep.subr.mxu0 0.0
  %3442 = vmatpush1.msra.mxu0 %v3414
  %3443 = vmatprep.subr.mxu0 0.0
  %3444 = vmatpush1.msra.mxu0 %v3413
  %3445 = vmatprep.subr.mxu0 0.0
  %3446 = vmatpush1.msra.mxu0 %v3412
  %3447 = vmatprep.subr.mxu0 0.0
  %3448 = vmatpush1.msra.mxu0 %v3411
  %3449 = vmatprep.subr.mxu0 0.0
  %3450 = vmatpush1.msra.mxu0 %v3410
  %3451 = vmatprep.subr.mxu0 0.0
  %3452 = vmatpush1.msra.mxu0 %v3409
  %3453 = vmatprep.subr.mxu0 0.0
  %3454 = vmatpush1.msra.mxu0 %v3408
  %3455 = vmatprep.subr.mxu0 0.0
  %3456 = vmatpush1.msra.mxu0 %v3407
  %3457 = vmatprep.subr.mxu0 0.0
  %3458 = vmatpush1.msra.mxu0 %v3406
  %3459 = vmatprep.subr.mxu0 0.0
  %3460 = vmatpush1.msra.mxu0 %v3405
  %3461 = vmatprep.subr.mxu0 0.0
  %3462 = vmatpush2.msra.mxu0 0.0
  %3463 = vmatprep.subr.mxu0 0.0
  %3464 = vmatpush2.msra.mxu0 0.0
  %3465 = vmatprep.subr.mxu0 0.0
  %3466 = vmatpush2.msra.mxu0 0.0
  %3467 = vmatprep.subr.mxu0 0.0
  %3468 = vmatpush2.msra.mxu0 0.0
  %3469 = vmatprep.subr.mxu0 0.0
  %3470 = vmatpush2.msra.mxu0 0.0
  %3471 = vmatprep.subr.mxu0 0.0
  %3472 = vmatpush2.msra.mxu0 0.0
  %3473 = vmatprep.subr.mxu0 0.0
  %3474 = vmatpush2.msra.mxu0 0.0
  %3475 = vmatprep.subr.mxu0 0.0
  %3476 = vmatpush2.msra.mxu0 0.0
  %3477 = vmatprep.subr.mxu0 0.0
  %3478 = vmatpush2.msra.mxu0 0.0
  %3479 = vmatprep.subr.mxu0 0.0
  %3480 = vmatpush2.msra.mxu0 0.0
  %3481 = vmatprep.subr.mxu0 0.0
  %3482 = vmatpush2.msra.mxu0 0.0
  %3483 = vmatprep.subr.mxu0 0.0
  %3484 = vmatpush2.msra.mxu0 0.0
  %3485 = vmatprep.subr.mxu0 0.0
  %3486 = vmatpush2.msra.mxu0 0.0
  %3487 = vmatprep.subr.mxu0 0.0
  %3488 = vmatpush2.msra.mxu0 0.0
  %3489 = vmatprep.subr.mxu0 0.0
  %3490 = vmatpush2.msra.mxu0 0.0
  %3491 = vmatprep.subr.mxu0 0.0
  %3492 = vmatpush2.msra.mxu0 0.0
  %3493 = vmatprep.mubr.f32.mxu0 0.0
  %3494 = vmatmul.mubr.f32.gmra.mxu0 %v3418
  %v3495 = vpop.f32.mrf.mxu0
  %v3496 = vadd.f32 0.0, %v3495
  %v3497 = vpop.f32.mrf.mxu0
  %3498 = vmatprep.mubr.f32.mxu0 0.0
  %3499 = vmatmul.mubr.f32.gmra.mxu0 %v3421
  %v3500 = vpop.f32.mrf.mxu0
  %v3501 = vadd.f32 0.0, %v3500
  %v3502 = vpop.f32.mrf.mxu0
  %3503 = vmatprep.mubr.f32.mxu0 0.0
  %3504 = vmatmul.mubr.f32.gmra.mxu0 %v3424
  %v3505 = vpop.f32.mrf.mxu0
  %v3506 = vadd.f32 0.0, %v3505
  %v3507 = vpop.f32.mrf.mxu0
  %3508 = vmatprep.mubr.f32.mxu0 0.0
  %3509 = vmatmul.mubr.f32.gmra.mxu0 %v3427
  %v3510 = vpop.f32.mrf.mxu0
  %v3511 = vadd.f32 0.0, %v3510
  %v3512 = vpop.f32.mrf.mxu0
  %3513 = vdwg.mxu0
  %3514 = vst.msk [vmem:[%s28] sm:$0xff] %vm2018, %v3496
  %3515 = vst.msk [vmem:[%s28 + $0x8] sm:$0xff] %vm2018, %v3501
  %3516 = vst.msk [vmem:[%s28 + $0x10] sm:$0xff] %vm2018, %v3506
  %3517 = vst.msk [vmem:[%s28 + $0x18] sm:$0xff] %vm2018, %v3511
  // Predicated region
  $region114: #{backbone_forward_features.1} parent=0 // pred_check
    _
  $region115: #{backbone_forward_features.1} parent=0 // pred_check_branch
    %3519 = sbr.rel (0) target = $region117
  $region116: #{backbone_forward_features.1} parent=0 // pred_region
    _
  $region117: #{backbone_forward_features.1} parent=0 // pred_fallthru
    _
  // Predicated region
  $region118: #{backbone_forward_features.1} parent=0 // pred_check
    _
  $region119: #{backbone_forward_features.1} parent=0 // pred_check_branch
    %3521 = sbr.rel (0) target = $region121
  $region120: #{backbone_forward_features.1} parent=0 // pred_region
    _
  $region121: #{backbone_forward_features.1} parent=0 // pred_fallthru
    _

</llo_original>
